<compile_context>
chip_gen: v6e
topology: v6e:2x2x1
jax: 0.10.0
libtpu: 0.0.40
codegen_flags: <defaults>
</compile_context>

<pallas_src>
import functools
from typing import NamedTuple

import jax
import jax.numpy as jnp
from jax.experimental import pallas as pl
from jax.experimental.pallas import tpu as pltpu

LANE = 128
_SUBLANE = 8
_LN_EPS = 1e-5          # torch.nn.LayerNorm default
_MAX_BLOCK_B = 1024     # split batch tiles beyond this (VMEM headroom)


class CriticMeta(NamedTuple):
    repr_dim: int
    action_dim: int
    feature_dim: int
    hidden_dim: int
    num_critics: int


# --------------------------------------------------------------------------
# small helpers
# --------------------------------------------------------------------------
def _rup(n, m):
    return ((n + m - 1) // m) * m


def _pad_last2(x, rows, cols):
    pad = [(0, 0)] * (x.ndim - 2) + [(0, rows - x.shape[-2]),
                                     (0, cols - x.shape[-1])]
    return jnp.pad(x, pad)


def _layernorm(h, gamma, beta, true_dim, eps=_LN_EPS):
    """LayerNorm over the (padded) last axis using the true feature count.

    Requires padded lanes of `h`, `gamma`, `beta` to be exactly zero; then the
    statistics equal the unpadded LayerNorm and padded lanes stay zero.
    The single-pass form is exact here because padded lanes contribute 0 to
    both sums while `true_dim` is used as the divisor.
    """
    inv_n = 1.0 / float(true_dim)
    mu = jnp.sum(h, axis=-1, keepdims=True) * inv_n
    var = jnp.sum(h * h, axis=-1, keepdims=True) * inv_n - mu * mu
    var = jnp.maximum(var, 0.0)
    return (h - mu) * jax.lax.rsqrt(var + eps) * gamma + beta


@functools.lru_cache(maxsize=1)
def _tensorcores_per_chip():
    """Heuristic TensorCores-per-chip: 2 on v7x (and v4/v5p), else 1."""
    try:
        kind = jax.devices()[0].device_kind.lower()
    except Exception:
        return 1
    return 2 if any(tag in kind for tag in ("v7", "v5p", "v4")) else 1


def _default_block_b(batch):
    """One batch tile per TensorCore; split further only for very large B."""
    n_tiles = max(_tensorcores_per_chip(), pl.cdiv(batch, _MAX_BLOCK_B))
    return max(_SUBLANE, _rup(pl.cdiv(batch, n_tiles), _SUBLANE))


@functools.lru_cache(maxsize=1)
def _single_buffer_weights_supported():
    """Probe once whether pipeline_mode=pl.Buffered(1) works in this JAX."""
    def add_kernel(x_ref, w_ref, o_ref):
        o_ref[...] = x_ref[...] + w_ref[...]
    try:
        x = jnp.zeros((16, LANE), jnp.float32)
        w = jnp.zeros((8, LANE), jnp.float32)
        out = pl.pallas_call(
            add_kernel,
            out_shape=jax.ShapeDtypeStruct((16, LANE), jnp.float32),
            grid=(2,),
            in_specs=[pl.BlockSpec((8, LANE), lambda i: (i, 0)),
                      pl.BlockSpec((8, LANE), lambda i: (0, 0),
                                   pipeline_mode=pl.Buffered(1))],
            out_specs=pl.BlockSpec((8, LANE), lambda i: (i, 0)),
        )(x, w)
        jax.block_until_ready(out)
        return True
    except Exception:
        return False


def _vmem_limit_bytes(block_b, r_p, a_p, h_p, e, weight_bytes, single_buf):
    batch_tiles = 2 * 2 * block_b * (r_p + a_p)        # bf16 x double buffer
    out_tiles = 2 * block_b * LANE * 4                  # f32 x double buffer
    acts = 10 * block_b * max(e * h_p, LANE) * 4        # f32 intermediates
    w = weight_bytes * (1 if single_buf else 2)
    est = batch_tiles + out_tiles + acts + w
    return int(min(max(2 * est, 16 * 2 ** 20), 64 * 2 ** 20))


# --------------------------------------------------------------------------
# kernel
# --------------------------------------------------------------------------
def _critic_kernel(state_ref, action_ref,
                   wt_ref, bt_ref, gt_ref, bet_ref,
                   w1h_ref, w1a_ref, b1_ref, g1_ref, be1_ref,
                   w2_ref, b2_ref, g2_ref, be2_ref,
                   w3_ref, b3_ref, g3_ref, be3_ref,
                   w4_ref, b4_ref,
                   q_ref,
                   *, num_critics, feature_dim, hidden_dim, hidden_pad):
    # ---- trunk: Linear -> LayerNorm -> ReLU (shared by all heads) ----
    s_b = state_ref[...]                                  # bf16 (TB, R_p)
    a_b = action_ref[...]                                 # bf16 (TB, A_p)
    h = jnp.dot(s_b, wt_ref[...], preferred_element_type=jnp.float32)
    h = h + bt_ref[...]
    h = jnp.maximum(_layernorm(h, gt_ref[...], bet_ref[...], feature_dim), 0.0)
    h_b = h.astype(jnp.bfloat16)

    # ---- layer 1 for ALL heads in one N-packed (TB, E*H_p) matmul ----
    # concat([h, action]) @ W1 == h @ W1h + action @ W1a  (split rows of W1)
    h1 = (jnp.dot(h_b, w1h_ref[...], preferred_element_type=jnp.float32)
          + jnp.dot(a_b, w1a_ref[...], preferred_element_type=jnp.float32)
          + b1_ref[...])

    # ---- layers 2-3 per head (128-wide, matches every MXU tile) ----
    h3 = []
    for e in range(num_critics):
        x = h1[:, e * hidden_pad:(e + 1) * hidden_pad]
        x = jnp.maximum(_layernorm(x, g1_ref[...], be1_ref[...], hidden_dim),
                        0.0)
        x = jnp.dot(x.astype(jnp.bfloat16), w2_ref[e],
                    preferred_element_type=jnp.float32) + b2_ref[e]
        x = jnp.maximum(_layernorm(x, g2_ref[...], be2_ref[...], hidden_dim),
                        0.0)
        x = jnp.dot(x.astype(jnp.bfloat16), w3_ref[e],
                    preferred_element_type=jnp.float32) + b3_ref[e]
        x = jnp.maximum(_layernorm(x, g3_ref[...], be3_ref[...], hidden_dim),
                        0.0)
        h3.append(x.astype(jnp.bfloat16))

    # ---- fused final projection: one lane-dense matmul for all heads ----
    h3_cat = jnp.concatenate(h3, axis=-1) if num_critics > 1 else h3[0]
    q_ref[...] = (jnp.dot(h3_cat, w4_ref[...],
                          preferred_element_type=jnp.float32) + b4_ref[...])


# --------------------------------------------------------------------------
# one-time parameter packing (hoisted off the per-call path)
# --------------------------------------------------------------------------
def prepare_params(params):
    """Pad / repack parameters once for the Pallas kernel.

    Zero padding keeps the math exact: padded lanes of weights, biases, gammas
    and betas are zero, so every padded activation lane stays exactly zero
    through LayerNorm/ReLU.  (Gamma MUST be zero-padded, not one-padded.)
    """
    f32, bf16 = jnp.float32, jnp.bfloat16
    R, F = params["wt"].shape
    E, in1, H = params["w1"].shape
    A = in1 - F

    R_p, A_p, F_p, H_p = (_rup(d, LANE) for d in (R, A, F, H))
    OUT_P = LANE
    assert E <= OUT_P

    prepped = {
        "wt": _pad_last2(params["wt"], R_p, F_p).astype(bf16),
        "bt": _pad_last2(params["bt"], 1, F_p).astype(f32),
        "gt": _pad_last2(params["gt"], 1, F_p).astype(f32),
        "bet": _pad_last2(params["bet"], 1, F_p).astype(f32),
        "g1": _pad_last2(params["g1"], 1, H_p).astype(f32),
        "be1": _pad_last2(params["be1"], 1, H_p).astype(f32),
        "w2": _pad_last2(params["w2"], H_p, H_p).astype(bf16),
        "b2": _pad_last2(params["b2"], 1, H_p).astype(f32),
        "g2": _pad_last2(params["g2"], 1, H_p).astype(f32),
        "be2": _pad_last2(params["be2"], 1, H_p).astype(f32),
        "w3": _pad_last2(params["w3"], H_p, H_p).astype(bf16),
        "b3": _pad_last2(params["b3"], 1, H_p).astype(f32),
        "g3": _pad_last2(params["g3"], 1, H_p).astype(f32),
        "be3": _pad_last2(params["be3"], 1, H_p).astype(f32),
    }

    # Layer 1: pack the E heads side-by-side along the output (lane) dim and
    # split concat([h, action]) into the h-part and action-part.
    w1 = params["w1"].astype(f32)                      # (E, F + A, H)
    w1h = jnp.zeros((F_p, E * H_p), f32)
    w1a = jnp.zeros((A_p, E * H_p), f32)
    b1 = jnp.zeros((1, E * H_p), f32)
    for e in range(E):
        w1h = w1h.at[:F, e * H_p:e * H_p + H].set(w1[e, :F, :])
        w1a = w1a.at[:A, e * H_p:e * H_p + H].set(w1[e, F:, :])
        b1 = b1.at[0, e * H_p:e * H_p + H].set(params["b1"][e, 0, :])
    prepped["w1h"] = w1h.astype(bf16)
    prepped["w1a"] = w1a.astype(bf16)
    prepped["b1"] = b1

    # Final projection: stack heads along K, head e's output goes to lane e.
    w4 = jnp.zeros((E * H_p, OUT_P), f32)
    b4 = jnp.zeros((1, OUT_P), f32)
    for e in range(E):
        w4 = w4.at[e * H_p:e * H_p + H, e].set(params["w4"][e, :, 0])
        b4 = b4.at[0, e].set(params["b4"][e, 0, 0])
    prepped["w4"] = w4.astype(bf16)
    prepped["b4"] = b4

    meta = CriticMeta(repr_dim=R, action_dim=A, feature_dim=F,
                      hidden_dim=H, num_critics=E)
    return prepped, meta


# --------------------------------------------------------------------------
# forward
# --------------------------------------------------------------------------
def ensemble_critic_forward(state, action, prepped, meta, *, block_b=None):
    """Pallas forward of EnsembleCritic. Returns q of shape (E, B, 1), f32."""
    f32, bf16 = jnp.float32, jnp.bfloat16
    B = state.shape[0]
    E, F, H = meta.num_critics, meta.feature_dim, meta.hidden_dim

    R_p, F_p = prepped["wt"].shape
    A_p = prepped["w1a"].shape[0]
    H_p = prepped["w2"].shape[-1]
    OUT_P = prepped["w4"].shape[-1]

    if block_b is None:
        block_b = _default_block_b(B)
    n_tiles = pl.cdiv(B, block_b)
    B_p = block_b * n_tiles

    # Only per-call work on activations (parameters are pre-packed).
    state_p = _pad_last2(state.astype(f32), B_p, R_p).astype(bf16)
    action_p = _pad_last2(action.astype(f32), B_p, A_p).astype(bf16)

    weight_names = ("wt", "bt", "gt", "bet", "w1h", "w1a", "b1", "g1", "be1",
                    "w2", "b2", "g2", "be2", "w3", "b3", "g3", "be3",
                    "w4", "b4")
    weights = tuple(prepped[k] for k in weight_names)
    weight_bytes = sum(int(w.size) * w.dtype.itemsize for w in weights)

    single_buf = _single_buffer_weights_supported()

    def weight_spec(arr):
        nd = arr.ndim
        idx = lambda i, nd=nd: (0,) * nd
        if single_buf:
            # Grid-invariant weights: no need to double-buffer them.
            return pl.BlockSpec(arr.shape, idx, pipeline_mode=pl.Buffered(1))
        return pl.BlockSpec(arr.shape, idx)

    in_specs = ([pl.BlockSpec((block_b, R_p), lambda i: (i, 0)),
                 pl.BlockSpec((block_b, A_p), lambda i: (i, 0))]
                + [weight_spec(w) for w in weights])

    kernel = functools.partial(_critic_kernel,
                               num_critics=E, feature_dim=F,
                               hidden_dim=H, hidden_pad=H_p)

    out = pl.pallas_call(
        kernel,
        out_shape=jax.ShapeDtypeStruct((B_p, OUT_P), f32),
        grid=(n_tiles,),
        in_specs=in_specs,
        out_specs=pl.BlockSpec((block_b, OUT_P), lambda i: (i, 0)),
        compiler_params=pltpu.CompilerParams(
            dimension_semantics=("parallel",),
            vmem_limit_bytes=_vmem_limit_bytes(
                block_b, R_p, A_p, H_p, E, weight_bytes, single_buf)),
    )(state_p, action_p, *weights)

    # Lane e of the (B_p, 128) output slab holds head e's Q values.
    q = out[:B, :E]                       # (B, E)
    return jnp.transpose(q)[:, :, None]   # (E, B, 1) like PyTorch


# --------------------------------------------------------------------------
# synthetic params + pure-JAX reference (mirrors the PyTorch module)
# --------------------------------------------------------------------------
def make_params(key, repr_dim, feature_dim, hidden_dim, num_actions,
                num_critics=2):
    """Synthetic init mirroring the PyTorch module's shapes.

    Ensembled weights stored (E, in, out) like EnsembledLinear (forward is
    x @ W + b); the trunk Linear stored transposed (in, out).  edac_init:
    hidden biases 0.1, last-layer weight/bias ~ U(-0.003, 0.003).
    """
    E, F, H, A = num_critics, feature_dim, hidden_dim, num_actions
    ks = jax.random.split(key, 6)

    def unif(k, shape, bound):
        return jax.random.uniform(k, shape, jnp.float32, -bound, bound)

    in1 = F + A
    return {
        "wt": unif(ks[0], (repr_dim, F), 1.0 / (repr_dim ** 0.5)),
        "bt": jnp.zeros((1, F), jnp.float32),
        "gt": jnp.ones((1, F), jnp.float32),
        "bet": jnp.zeros((1, F), jnp.float32),
        "w1": unif(ks[1], (E, in1, H), 1.0 / (in1 ** 0.5)),
        "b1": jnp.full((E, 1, H), 0.1, jnp.float32),
        "g1": jnp.ones((1, H), jnp.float32),
        "be1": jnp.zeros((1, H), jnp.float32),
        "w2": unif(ks[2], (E, H, H), 1.0 / (H ** 0.5)),
        "b2": jnp.full((E, 1, H), 0.1, jnp.float32),
        "g2": jnp.ones((1, H), jnp.float32),
        "be2": jnp.zeros((1, H), jnp.float32),
        "w3": unif(ks[3], (E, H, H), 1.0 / (H ** 0.5)),
        "b3": jnp.full((E, 1, H), 0.1, jnp.float32),
        "g3": jnp.ones((1, H), jnp.float32),
        "be3": jnp.zeros((1, H), jnp.float32),
        "w4": unif(ks[4], (E, H, 1), 0.003),
        "b4": unif(ks[5], (E, 1, 1), 0.003),
    }


def reference_forward(state, action, params):
    """Pure-JAX f32 reference matching the PyTorch EnsembleCritic forward."""
    def ln(x, g, b, eps=_LN_EPS):
        mu = jnp.mean(x, axis=-1, keepdims=True)
        var = jnp.mean(jnp.square(x - mu), axis=-1, keepdims=True)
        return (x - mu) / jnp.sqrt(var + eps) * g + b

    h = state @ params["wt"] + params["bt"]
    h = jax.nn.relu(ln(h, params["gt"], params["bet"]))
    x = jnp.concatenate([h, action], axis=-1)
    E = params["w1"].shape[0]
    x = jnp.broadcast_to(x[None], (E,) + x.shape)

    x = jax.nn.relu(ln(jnp.einsum("ebi,eio->ebo", x, params["w1"]) + params["b1"],
                       params["g1"], params["be1"]))
    x = jax.nn.relu(ln(jnp.einsum("ebi,eio->ebo", x, params["w2"]) + params["b2"],
                       params["g2"], params["be2"]))
    x = jax.nn.relu(ln(jnp.einsum("ebi,eio->ebo", x, params["w3"]) + params["b3"],
                       params["g3"], params["be3"]))
    return jnp.einsum("ebi,eio->ebo", x, params["w4"]) + params["b4"]


if __name__ == "__main__":
    # small shapes consistent with the module
    B, REPR, FEAT, HID, ACT, E = 200, 64, 32, 32, 8, 2

    key = jax.random.PRNGKey(0)
    kx, ka, kp = jax.random.split(key, 3)
    state = jax.random.normal(kx, (B, REPR), jnp.float32)
    action = jax.random.uniform(ka, (B, ACT), jnp.float32, -1.0, 1.0)
    params = make_params(kp, REPR, FEAT, HID, ACT, num_critics=E)

    # One-time parameter packing (hoisted off the per-call path).
    prepped, meta = prepare_params(params)
    prepped = jax.tree_util.tree_map(jax.block_until_ready, prepped)

    fwd = jax.jit(functools.partial(ensemble_critic_forward, meta=meta))
    q = jax.block_until_ready(fwd(state, action, prepped))

    assert q.shape == (E, B, 1), q.shape
    assert bool(jnp.all(jnp.isfinite(q)))

    # bf16 matmuls in the kernel vs an f32 reference -> loose tolerance
    q_ref = reference_forward(state, action, params)
    scale = float(jnp.maximum(1.0, jnp.max(jnp.abs(q_ref))))
    max_err = float(jnp.max(jnp.abs(q - q_ref)))
    assert max_err <= 5e-2 * scale, (max_err, scale)

    print("KERNEL_OK")
</pallas_src>

<mosaic_0001>
module attributes {stable_mosaic.version = 11 : i64} {
  func.func @_critic_kernel(%arg0: i32, %arg1: memref<200x128xbf16, #tpu.memory_space<vmem>>, %arg2: memref<200x128xbf16, #tpu.memory_space<vmem>>, %arg3: memref<128x128xbf16, #tpu.memory_space<vmem>>, %arg4: memref<1x128xf32, #tpu.memory_space<vmem>>, %arg5: memref<1x128xf32, #tpu.memory_space<vmem>>, %arg6: memref<1x128xf32, #tpu.memory_space<vmem>>, %arg7: memref<128x256xbf16, #tpu.memory_space<vmem>>, %arg8: memref<128x256xbf16, #tpu.memory_space<vmem>>, %arg9: memref<1x256xf32, #tpu.memory_space<vmem>>, %arg10: memref<1x128xf32, #tpu.memory_space<vmem>>, %arg11: memref<1x128xf32, #tpu.memory_space<vmem>>, %arg12: memref<2x128x128xbf16, #tpu.memory_space<vmem>>, %arg13: memref<2x1x128xf32, #tpu.memory_space<vmem>>, %arg14: memref<1x128xf32, #tpu.memory_space<vmem>>, %arg15: memref<1x128xf32, #tpu.memory_space<vmem>>, %arg16: memref<2x128x128xbf16, #tpu.memory_space<vmem>>, %arg17: memref<2x1x128xf32, #tpu.memory_space<vmem>>, %arg18: memref<1x128xf32, #tpu.memory_space<vmem>>, %arg19: memref<1x128xf32, #tpu.memory_space<vmem>>, %arg20: memref<256x128xbf16, #tpu.memory_space<vmem>>, %arg21: memref<1x128xf32, #tpu.memory_space<vmem>>, %arg22: memref<200x128xf32, #tpu.memory_space<vmem>>) attributes {dimension_semantics = [#tpu.dimension_semantics<parallel>], iteration_bounds = array<i64: 1>, scalar_prefetch = 0 : i64, scratch_operands = 0 : i64, tpu.core_type = #tpu.core_type<tc>, window_params = [{transform_indices = @transform_0, window_bounds = array<i64: 200, 128>}, {transform_indices = @transform_1, window_bounds = array<i64: 200, 128>}, {pipeline_mode = #tpu.pipeline_mode<synchronous>, transform_indices = @transform_2, window_bounds = array<i64: 128, 128>}, {pipeline_mode = #tpu.pipeline_mode<synchronous>, transform_indices = @transform_3, window_bounds = array<i64: 1, 128>}, {pipeline_mode = #tpu.pipeline_mode<synchronous>, transform_indices = @transform_4, window_bounds = array<i64: 1, 128>}, {pipeline_mode = #tpu.pipeline_mode<synchronous>, transform_indices = @transform_5, window_bounds = array<i64: 1, 128>}, {pipeline_mode = #tpu.pipeline_mode<synchronous>, transform_indices = @transform_6, window_bounds = array<i64: 128, 256>}, {pipeline_mode = #tpu.pipeline_mode<synchronous>, transform_indices = @transform_7, window_bounds = array<i64: 128, 256>}, {pipeline_mode = #tpu.pipeline_mode<synchronous>, transform_indices = @transform_8, window_bounds = array<i64: 1, 256>}, {pipeline_mode = #tpu.pipeline_mode<synchronous>, transform_indices = @transform_9, window_bounds = array<i64: 1, 128>}, {pipeline_mode = #tpu.pipeline_mode<synchronous>, transform_indices = @transform_10, window_bounds = array<i64: 1, 128>}, {pipeline_mode = #tpu.pipeline_mode<synchronous>, transform_indices = @transform_11, window_bounds = array<i64: 2, 128, 128>}, {pipeline_mode = #tpu.pipeline_mode<synchronous>, transform_indices = @transform_12, window_bounds = array<i64: 2, 1, 128>}, {pipeline_mode = #tpu.pipeline_mode<synchronous>, transform_indices = @transform_13, window_bounds = array<i64: 1, 128>}, {pipeline_mode = #tpu.pipeline_mode<synchronous>, transform_indices = @transform_14, window_bounds = array<i64: 1, 128>}, {pipeline_mode = #tpu.pipeline_mode<synchronous>, transform_indices = @transform_15, window_bounds = array<i64: 2, 128, 128>}, {pipeline_mode = #tpu.pipeline_mode<synchronous>, transform_indices = @transform_16, window_bounds = array<i64: 2, 1, 128>}, {pipeline_mode = #tpu.pipeline_mode<synchronous>, transform_indices = @transform_17, window_bounds = array<i64: 1, 128>}, {pipeline_mode = #tpu.pipeline_mode<synchronous>, transform_indices = @transform_18, window_bounds = array<i64: 1, 128>}, {pipeline_mode = #tpu.pipeline_mode<synchronous>, transform_indices = @transform_19, window_bounds = array<i64: 256, 128>}, {pipeline_mode = #tpu.pipeline_mode<synchronous>, transform_indices = @transform_20, window_bounds = array<i64: 1, 128>}, {transform_indices = @transform_21, window_bounds = array<i64: 200, 128>}]} {
    %c0 = arith.constant 0 : index
    %c0_0 = arith.constant 0 : index
    %0 = vector.load %arg1[%c0, %c0_0] : memref<200x128xbf16, #tpu.memory_space<vmem>>, vector<200x128xbf16>
    %c0_1 = arith.constant 0 : index
    %c0_2 = arith.constant 0 : index
    %1 = vector.load %arg2[%c0_1, %c0_2] : memref<200x128xbf16, #tpu.memory_space<vmem>>, vector<200x128xbf16>
    %c0_3 = arith.constant 0 : index
    %c0_4 = arith.constant 0 : index
    %2 = vector.load %arg3[%c0_3, %c0_4] : memref<128x128xbf16, #tpu.memory_space<vmem>>, vector<128x128xbf16>
    %cst = arith.constant dense<0.000000e+00> : vector<200x128xf32>
    %3 = tpu.matmul %0, %2, %cst {dimension_numbers = #tpu.dot_dimension_numbers<[1], [0], [0], [1], [0, 0, 1, 1], [], []>} : vector<200x128xbf16>, vector<128x128xbf16>, vector<200x128xf32> -> vector<200x128xf32>
    %c0_5 = arith.constant 0 : index
    %c0_6 = arith.constant 0 : index
    %4 = vector.load %arg4[%c0_5, %c0_6] : memref<1x128xf32, #tpu.memory_space<vmem>>, vector<1x128xf32>
    %5 = vector.broadcast %4 : vector<1x128xf32> to vector<200x128xf32>
    %6 = arith.addf %3, %5 : vector<200x128xf32>
    %c0_7 = arith.constant 0 : index
    %c0_8 = arith.constant 0 : index
    %7 = vector.load %arg5[%c0_7, %c0_8] : memref<1x128xf32, #tpu.memory_space<vmem>>, vector<1x128xf32>
    %c0_9 = arith.constant 0 : index
    %c0_10 = arith.constant 0 : index
    %8 = vector.load %arg6[%c0_9, %c0_10] : memref<1x128xf32, #tpu.memory_space<vmem>>, vector<1x128xf32>
    %cst_11 = arith.constant dense<0.000000e+00> : vector<200xf32>
    %9 = vector.multi_reduction <add>, %6, %cst_11 [1] : vector<200x128xf32> to vector<200xf32>
    %10 = vector.shape_cast %9 : vector<200xf32> to vector<200x1xf32>
    %cst_12 = arith.constant 3.125000e-02 : f32
    %11 = vector.broadcast %cst_12 : f32 to vector<200x1xf32>
    %12 = arith.mulf %10, %11 : vector<200x1xf32>
    %13 = arith.mulf %6, %6 : vector<200x128xf32>
    %cst_13 = arith.constant dense<0.000000e+00> : vector<200xf32>
    %14 = vector.multi_reduction <add>, %13, %cst_13 [1] : vector<200x128xf32> to vector<200xf32>
    %15 = vector.shape_cast %14 : vector<200xf32> to vector<200x1xf32>
    %cst_14 = arith.constant 3.125000e-02 : f32
    %16 = vector.broadcast %cst_14 : f32 to vector<200x1xf32>
    %17 = arith.mulf %15, %16 : vector<200x1xf32>
    %18 = arith.mulf %12, %12 : vector<200x1xf32>
    %19 = arith.subf %17, %18 : vector<200x1xf32>
    %cst_15 = arith.constant 0.000000e+00 : f32
    %20 = vector.broadcast %cst_15 : f32 to vector<200x1xf32>
    %21 = arith.maximumf %19, %20 : vector<200x1xf32>
    %22 = vector.broadcast %12 : vector<200x1xf32> to vector<200x128xf32>
    %23 = arith.subf %6, %22 : vector<200x128xf32>
    %cst_16 = arith.constant 9.99999974E-6 : f32
    %24 = vector.broadcast %cst_16 : f32 to vector<200x1xf32>
    %25 = arith.addf %21, %24 : vector<200x1xf32>
    %26 = math.rsqrt %25 : vector<200x1xf32>
    %27 = vector.broadcast %26 : vector<200x1xf32> to vector<200x128xf32>
    %28 = arith.mulf %23, %27 : vector<200x128xf32>
    %29 = vector.broadcast %7 : vector<1x128xf32> to vector<200x128xf32>
    %30 = arith.mulf %28, %29 : vector<200x128xf32>
    %31 = vector.broadcast %8 : vector<1x128xf32> to vector<200x128xf32>
    %32 = arith.addf %30, %31 : vector<200x128xf32>
    %cst_17 = arith.constant 0.000000e+00 : f32
    %33 = vector.broadcast %cst_17 : f32 to vector<200x128xf32>
    %34 = arith.maximumf %32, %33 : vector<200x128xf32>
    %35 = arith.truncf %34 : vector<200x128xf32> to vector<200x128xbf16>
    %c0_18 = arith.constant 0 : index
    %c0_19 = arith.constant 0 : index
    %36 = vector.load %arg7[%c0_18, %c0_19] : memref<128x256xbf16, #tpu.memory_space<vmem>>, vector<128x256xbf16>
    %cst_20 = arith.constant dense<0.000000e+00> : vector<200x256xf32>
    %37 = tpu.matmul %35, %36, %cst_20 {dimension_numbers = #tpu.dot_dimension_numbers<[1], [0], [0], [1], [0, 0, 1, 1], [], []>} : vector<200x128xbf16>, vector<128x256xbf16>, vector<200x256xf32> -> vector<200x256xf32>
    %c0_21 = arith.constant 0 : index
    %c0_22 = arith.constant 0 : index
    %38 = vector.load %arg8[%c0_21, %c0_22] : memref<128x256xbf16, #tpu.memory_space<vmem>>, vector<128x256xbf16>
    %cst_23 = arith.constant dense<0.000000e+00> : vector<200x256xf32>
    %39 = tpu.matmul %1, %38, %cst_23 {dimension_numbers = #tpu.dot_dimension_numbers<[1], [0], [0], [1], [0, 0, 1, 1], [], []>} : vector<200x128xbf16>, vector<128x256xbf16>, vector<200x256xf32> -> vector<200x256xf32>
    %40 = arith.addf %37, %39 : vector<200x256xf32>
    %c0_24 = arith.constant 0 : index
    %c0_25 = arith.constant 0 : index
    %41 = vector.load %arg9[%c0_24, %c0_25] : memref<1x256xf32, #tpu.memory_space<vmem>>, vector<1x256xf32>
    %42 = vector.broadcast %41 : vector<1x256xf32> to vector<200x256xf32>
    %43 = arith.addf %40, %42 : vector<200x256xf32>
    %44 = vector.extract_strided_slice %43 {offsets = [0, 0], sizes = [200, 128], strides = [1, 1]} : vector<200x256xf32> to vector<200x128xf32>
    %c0_26 = arith.constant 0 : index
    %c0_27 = arith.constant 0 : index
    %45 = vector.load %arg10[%c0_26, %c0_27] : memref<1x128xf32, #tpu.memory_space<vmem>>, vector<1x128xf32>
    %c0_28 = arith.constant 0 : index
    %c0_29 = arith.constant 0 : index
    %46 = vector.load %arg11[%c0_28, %c0_29] : memref<1x128xf32, #tpu.memory_space<vmem>>, vector<1x128xf32>
    %cst_30 = arith.constant dense<0.000000e+00> : vector<200xf32>
    %47 = vector.multi_reduction <add>, %44, %cst_30 [1] : vector<200x128xf32> to vector<200xf32>
    %48 = vector.shape_cast %47 : vector<200xf32> to vector<200x1xf32>
    %cst_31 = arith.constant 3.125000e-02 : f32
    %49 = vector.broadcast %cst_31 : f32 to vector<200x1xf32>
    %50 = arith.mulf %48, %49 : vector<200x1xf32>
    %51 = arith.mulf %44, %44 : vector<200x128xf32>
    %cst_32 = arith.constant dense<0.000000e+00> : vector<200xf32>
    %52 = vector.multi_reduction <add>, %51, %cst_32 [1] : vector<200x128xf32> to vector<200xf32>
    %53 = vector.shape_cast %52 : vector<200xf32> to vector<200x1xf32>
    %cst_33 = arith.constant 3.125000e-02 : f32
    %54 = vector.broadcast %cst_33 : f32 to vector<200x1xf32>
    %55 = arith.mulf %53, %54 : vector<200x1xf32>
    %56 = arith.mulf %50, %50 : vector<200x1xf32>
    %57 = arith.subf %55, %56 : vector<200x1xf32>
    %cst_34 = arith.constant 0.000000e+00 : f32
    %58 = vector.broadcast %cst_34 : f32 to vector<200x1xf32>
    %59 = arith.maximumf %57, %58 : vector<200x1xf32>
    %60 = vector.broadcast %50 : vector<200x1xf32> to vector<200x128xf32>
    %61 = arith.subf %44, %60 : vector<200x128xf32>
    %cst_35 = arith.constant 9.99999974E-6 : f32
    %62 = vector.broadcast %cst_35 : f32 to vector<200x1xf32>
    %63 = arith.addf %59, %62 : vector<200x1xf32>
    %64 = math.rsqrt %63 : vector<200x1xf32>
    %65 = vector.broadcast %64 : vector<200x1xf32> to vector<200x128xf32>
    %66 = arith.mulf %61, %65 : vector<200x128xf32>
    %67 = vector.broadcast %45 : vector<1x128xf32> to vector<200x128xf32>
    %68 = arith.mulf %66, %67 : vector<200x128xf32>
    %69 = vector.broadcast %46 : vector<1x128xf32> to vector<200x128xf32>
    %70 = arith.addf %68, %69 : vector<200x128xf32>
    %cst_36 = arith.constant 0.000000e+00 : f32
    %71 = vector.broadcast %cst_36 : f32 to vector<200x128xf32>
    %72 = arith.maximumf %70, %71 : vector<200x128xf32>
    %73 = arith.truncf %72 : vector<200x128xf32> to vector<200x128xbf16>
    %c0_37 = arith.constant 0 : index
    %c0_38 = arith.constant 0 : index
    %c0_39 = arith.constant 0 : index
    %74 = vector.load %arg12[%c0_37, %c0_38, %c0_39] : memref<2x128x128xbf16, #tpu.memory_space<vmem>>, vector<1x128x128xbf16>
    %75 = vector.shape_cast %74 : vector<1x128x128xbf16> to vector<128x128xbf16>
    %cst_40 = arith.constant dense<0.000000e+00> : vector<200x128xf32>
    %76 = tpu.matmul %73, %75, %cst_40 {dimension_numbers = #tpu.dot_dimension_numbers<[1], [0], [0], [1], [0, 0, 1, 1], [], []>} : vector<200x128xbf16>, vector<128x128xbf16>, vector<200x128xf32> -> vector<200x128xf32>
    %c0_41 = arith.constant 0 : index
    %c0_42 = arith.constant 0 : index
    %c0_43 = arith.constant 0 : index
    %77 = vector.load %arg13[%c0_41, %c0_42, %c0_43] : memref<2x1x128xf32, #tpu.memory_space<vmem>>, vector<1x1x128xf32>
    %78 = vector.shape_cast %77 : vector<1x1x128xf32> to vector<1x128xf32>
    %79 = vector.broadcast %78 : vector<1x128xf32> to vector<200x128xf32>
    %80 = arith.addf %76, %79 : vector<200x128xf32>
    %c0_44 = arith.constant 0 : index
    %c0_45 = arith.constant 0 : index
    %81 = vector.load %arg14[%c0_44, %c0_45] : memref<1x128xf32, #tpu.memory_space<vmem>>, vector<1x128xf32>
    %c0_46 = arith.constant 0 : index
    %c0_47 = arith.constant 0 : index
    %82 = vector.load %arg15[%c0_46, %c0_47] : memref<1x128xf32, #tpu.memory_space<vmem>>, vector<1x128xf32>
    %cst_48 = arith.constant dense<0.000000e+00> : vector<200xf32>
    %83 = vector.multi_reduction <add>, %80, %cst_48 [1] : vector<200x128xf32> to vector<200xf32>
    %84 = vector.shape_cast %83 : vector<200xf32> to vector<200x1xf32>
    %cst_49 = arith.constant 3.125000e-02 : f32
    %85 = vector.broadcast %cst_49 : f32 to vector<200x1xf32>
    %86 = arith.mulf %84, %85 : vector<200x1xf32>
    %87 = arith.mulf %80, %80 : vector<200x128xf32>
    %cst_50 = arith.constant dense<0.000000e+00> : vector<200xf32>
    %88 = vector.multi_reduction <add>, %87, %cst_50 [1] : vector<200x128xf32> to vector<200xf32>
    %89 = vector.shape_cast %88 : vector<200xf32> to vector<200x1xf32>
    %cst_51 = arith.constant 3.125000e-02 : f32
    %90 = vector.broadcast %cst_51 : f32 to vector<200x1xf32>
    %91 = arith.mulf %89, %90 : vector<200x1xf32>
    %92 = arith.mulf %86, %86 : vector<200x1xf32>
    %93 = arith.subf %91, %92 : vector<200x1xf32>
    %cst_52 = arith.constant 0.000000e+00 : f32
    %94 = vector.broadcast %cst_52 : f32 to vector<200x1xf32>
    %95 = arith.maximumf %93, %94 : vector<200x1xf32>
    %96 = vector.broadcast %86 : vector<200x1xf32> to vector<200x128xf32>
    %97 = arith.subf %80, %96 : vector<200x128xf32>
    %cst_53 = arith.constant 9.99999974E-6 : f32
    %98 = vector.broadcast %cst_53 : f32 to vector<200x1xf32>
    %99 = arith.addf %95, %98 : vector<200x1xf32>
    %100 = math.rsqrt %99 : vector<200x1xf32>
    %101 = vector.broadcast %100 : vector<200x1xf32> to vector<200x128xf32>
    %102 = arith.mulf %97, %101 : vector<200x128xf32>
    %103 = vector.broadcast %81 : vector<1x128xf32> to vector<200x128xf32>
    %104 = arith.mulf %102, %103 : vector<200x128xf32>
    %105 = vector.broadcast %82 : vector<1x128xf32> to vector<200x128xf32>
    %106 = arith.addf %104, %105 : vector<200x128xf32>
    %cst_54 = arith.constant 0.000000e+00 : f32
    %107 = vector.broadcast %cst_54 : f32 to vector<200x128xf32>
    %108 = arith.maximumf %106, %107 : vector<200x128xf32>
    %109 = arith.truncf %108 : vector<200x128xf32> to vector<200x128xbf16>
    %c0_55 = arith.constant 0 : index
    %c0_56 = arith.constant 0 : index
    %c0_57 = arith.constant 0 : index
    %110 = vector.load %arg16[%c0_55, %c0_56, %c0_57] : memref<2x128x128xbf16, #tpu.memory_space<vmem>>, vector<1x128x128xbf16>
    %111 = vector.shape_cast %110 : vector<1x128x128xbf16> to vector<128x128xbf16>
    %cst_58 = arith.constant dense<0.000000e+00> : vector<200x128xf32>
    %112 = tpu.matmul %109, %111, %cst_58 {dimension_numbers = #tpu.dot_dimension_numbers<[1], [0], [0], [1], [0, 0, 1, 1], [], []>} : vector<200x128xbf16>, vector<128x128xbf16>, vector<200x128xf32> -> vector<200x128xf32>
    %c0_59 = arith.constant 0 : index
    %c0_60 = arith.constant 0 : index
    %c0_61 = arith.constant 0 : index
    %113 = vector.load %arg17[%c0_59, %c0_60, %c0_61] : memref<2x1x128xf32, #tpu.memory_space<vmem>>, vector<1x1x128xf32>
    %114 = vector.shape_cast %113 : vector<1x1x128xf32> to vector<1x128xf32>
    %115 = vector.broadcast %114 : vector<1x128xf32> to vector<200x128xf32>
    %116 = arith.addf %112, %115 : vector<200x128xf32>
    %c0_62 = arith.constant 0 : index
    %c0_63 = arith.constant 0 : index
    %117 = vector.load %arg18[%c0_62, %c0_63] : memref<1x128xf32, #tpu.memory_space<vmem>>, vector<1x128xf32>
    %c0_64 = arith.constant 0 : index
    %c0_65 = arith.constant 0 : index
    %118 = vector.load %arg19[%c0_64, %c0_65] : memref<1x128xf32, #tpu.memory_space<vmem>>, vector<1x128xf32>
    %cst_66 = arith.constant dense<0.000000e+00> : vector<200xf32>
    %119 = vector.multi_reduction <add>, %116, %cst_66 [1] : vector<200x128xf32> to vector<200xf32>
    %120 = vector.shape_cast %119 : vector<200xf32> to vector<200x1xf32>
    %cst_67 = arith.constant 3.125000e-02 : f32
    %121 = vector.broadcast %cst_67 : f32 to vector<200x1xf32>
    %122 = arith.mulf %120, %121 : vector<200x1xf32>
    %123 = arith.mulf %116, %116 : vector<200x128xf32>
    %cst_68 = arith.constant dense<0.000000e+00> : vector<200xf32>
    %124 = vector.multi_reduction <add>, %123, %cst_68 [1] : vector<200x128xf32> to vector<200xf32>
    %125 = vector.shape_cast %124 : vector<200xf32> to vector<200x1xf32>
    %cst_69 = arith.constant 3.125000e-02 : f32
    %126 = vector.broadcast %cst_69 : f32 to vector<200x1xf32>
    %127 = arith.mulf %125, %126 : vector<200x1xf32>
    %128 = arith.mulf %122, %122 : vector<200x1xf32>
    %129 = arith.subf %127, %128 : vector<200x1xf32>
    %cst_70 = arith.constant 0.000000e+00 : f32
    %130 = vector.broadcast %cst_70 : f32 to vector<200x1xf32>
    %131 = arith.maximumf %129, %130 : vector<200x1xf32>
    %132 = vector.broadcast %122 : vector<200x1xf32> to vector<200x128xf32>
    %133 = arith.subf %116, %132 : vector<200x128xf32>
    %cst_71 = arith.constant 9.99999974E-6 : f32
    %134 = vector.broadcast %cst_71 : f32 to vector<200x1xf32>
    %135 = arith.addf %131, %134 : vector<200x1xf32>
    %136 = math.rsqrt %135 : vector<200x1xf32>
    %137 = vector.broadcast %136 : vector<200x1xf32> to vector<200x128xf32>
    %138 = arith.mulf %133, %137 : vector<200x128xf32>
    %139 = vector.broadcast %117 : vector<1x128xf32> to vector<200x128xf32>
    %140 = arith.mulf %138, %139 : vector<200x128xf32>
    %141 = vector.broadcast %118 : vector<1x128xf32> to vector<200x128xf32>
    %142 = arith.addf %140, %141 : vector<200x128xf32>
    %cst_72 = arith.constant 0.000000e+00 : f32
    %143 = vector.broadcast %cst_72 : f32 to vector<200x128xf32>
    %144 = arith.maximumf %142, %143 : vector<200x128xf32>
    %145 = arith.truncf %144 : vector<200x128xf32> to vector<200x128xbf16>
    %146 = vector.extract_strided_slice %43 {offsets = [0, 128], sizes = [200, 128], strides = [1, 1]} : vector<200x256xf32> to vector<200x128xf32>
    %c0_73 = arith.constant 0 : index
    %c0_74 = arith.constant 0 : index
    %147 = vector.load %arg10[%c0_73, %c0_74] : memref<1x128xf32, #tpu.memory_space<vmem>>, vector<1x128xf32>
    %c0_75 = arith.constant 0 : index
    %c0_76 = arith.constant 0 : index
    %148 = vector.load %arg11[%c0_75, %c0_76] : memref<1x128xf32, #tpu.memory_space<vmem>>, vector<1x128xf32>
    %cst_77 = arith.constant dense<0.000000e+00> : vector<200xf32>
    %149 = vector.multi_reduction <add>, %146, %cst_77 [1] : vector<200x128xf32> to vector<200xf32>
    %150 = vector.shape_cast %149 : vector<200xf32> to vector<200x1xf32>
    %cst_78 = arith.constant 3.125000e-02 : f32
    %151 = vector.broadcast %cst_78 : f32 to vector<200x1xf32>
    %152 = arith.mulf %150, %151 : vector<200x1xf32>
    %153 = arith.mulf %146, %146 : vector<200x128xf32>
    %cst_79 = arith.constant dense<0.000000e+00> : vector<200xf32>
    %154 = vector.multi_reduction <add>, %153, %cst_79 [1] : vector<200x128xf32> to vector<200xf32>
    %155 = vector.shape_cast %154 : vector<200xf32> to vector<200x1xf32>
    %cst_80 = arith.constant 3.125000e-02 : f32
    %156 = vector.broadcast %cst_80 : f32 to vector<200x1xf32>
    %157 = arith.mulf %155, %156 : vector<200x1xf32>
    %158 = arith.mulf %152, %152 : vector<200x1xf32>
    %159 = arith.subf %157, %158 : vector<200x1xf32>
    %cst_81 = arith.constant 0.000000e+00 : f32
    %160 = vector.broadcast %cst_81 : f32 to vector<200x1xf32>
    %161 = arith.maximumf %159, %160 : vector<200x1xf32>
    %162 = vector.broadcast %152 : vector<200x1xf32> to vector<200x128xf32>
    %163 = arith.subf %146, %162 : vector<200x128xf32>
    %cst_82 = arith.constant 9.99999974E-6 : f32
    %164 = vector.broadcast %cst_82 : f32 to vector<200x1xf32>
    %165 = arith.addf %161, %164 : vector<200x1xf32>
    %166 = math.rsqrt %165 : vector<200x1xf32>
    %167 = vector.broadcast %166 : vector<200x1xf32> to vector<200x128xf32>
    %168 = arith.mulf %163, %167 : vector<200x128xf32>
    %169 = vector.broadcast %147 : vector<1x128xf32> to vector<200x128xf32>
    %170 = arith.mulf %168, %169 : vector<200x128xf32>
    %171 = vector.broadcast %148 : vector<1x128xf32> to vector<200x128xf32>
    %172 = arith.addf %170, %171 : vector<200x128xf32>
    %cst_83 = arith.constant 0.000000e+00 : f32
    %173 = vector.broadcast %cst_83 : f32 to vector<200x128xf32>
    %174 = arith.maximumf %172, %173 : vector<200x128xf32>
    %175 = arith.truncf %174 : vector<200x128xf32> to vector<200x128xbf16>
    %c1 = arith.constant 1 : index
    %c0_84 = arith.constant 0 : index
    %c0_85 = arith.constant 0 : index
    %176 = vector.load %arg12[%c1, %c0_84, %c0_85] : memref<2x128x128xbf16, #tpu.memory_space<vmem>>, vector<1x128x128xbf16>
    %177 = vector.shape_cast %176 : vector<1x128x128xbf16> to vector<128x128xbf16>
    %cst_86 = arith.constant dense<0.000000e+00> : vector<200x128xf32>
    %178 = tpu.matmul %175, %177, %cst_86 {dimension_numbers = #tpu.dot_dimension_numbers<[1], [0], [0], [1], [0, 0, 1, 1], [], []>} : vector<200x128xbf16>, vector<128x128xbf16>, vector<200x128xf32> -> vector<200x128xf32>
    %c1_87 = arith.constant 1 : index
    %c0_88 = arith.constant 0 : index
    %c0_89 = arith.constant 0 : index
    %179 = vector.load %arg13[%c1_87, %c0_88, %c0_89] : memref<2x1x128xf32, #tpu.memory_space<vmem>>, vector<1x1x128xf32>
    %180 = vector.shape_cast %179 : vector<1x1x128xf32> to vector<1x128xf32>
    %181 = vector.broadcast %180 : vector<1x128xf32> to vector<200x128xf32>
    %182 = arith.addf %178, %181 : vector<200x128xf32>
    %c0_90 = arith.constant 0 : index
    %c0_91 = arith.constant 0 : index
    %183 = vector.load %arg14[%c0_90, %c0_91] : memref<1x128xf32, #tpu.memory_space<vmem>>, vector<1x128xf32>
    %c0_92 = arith.constant 0 : index
    %c0_93 = arith.constant 0 : index
    %184 = vector.load %arg15[%c0_92, %c0_93] : memref<1x128xf32, #tpu.memory_space<vmem>>, vector<1x128xf32>
    %cst_94 = arith.constant dense<0.000000e+00> : vector<200xf32>
    %185 = vector.multi_reduction <add>, %182, %cst_94 [1] : vector<200x128xf32> to vector<200xf32>
    %186 = vector.shape_cast %185 : vector<200xf32> to vector<200x1xf32>
    %cst_95 = arith.constant 3.125000e-02 : f32
    %187 = vector.broadcast %cst_95 : f32 to vector<200x1xf32>
    %188 = arith.mulf %186, %187 : vector<200x1xf32>
    %189 = arith.mulf %182, %182 : vector<200x128xf32>
    %cst_96 = arith.constant dense<0.000000e+00> : vector<200xf32>
    %190 = vector.multi_reduction <add>, %189, %cst_96 [1] : vector<200x128xf32> to vector<200xf32>
    %191 = vector.shape_cast %190 : vector<200xf32> to vector<200x1xf32>
    %cst_97 = arith.constant 3.125000e-02 : f32
    %192 = vector.broadcast %cst_97 : f32 to vector<200x1xf32>
    %193 = arith.mulf %191, %192 : vector<200x1xf32>
    %194 = arith.mulf %188, %188 : vector<200x1xf32>
    %195 = arith.subf %193, %194 : vector<200x1xf32>
    %cst_98 = arith.constant 0.000000e+00 : f32
    %196 = vector.broadcast %cst_98 : f32 to vector<200x1xf32>
    %197 = arith.maximumf %195, %196 : vector<200x1xf32>
    %198 = vector.broadcast %188 : vector<200x1xf32> to vector<200x128xf32>
    %199 = arith.subf %182, %198 : vector<200x128xf32>
    %cst_99 = arith.constant 9.99999974E-6 : f32
    %200 = vector.broadcast %cst_99 : f32 to vector<200x1xf32>
    %201 = arith.addf %197, %200 : vector<200x1xf32>
    %202 = math.rsqrt %201 : vector<200x1xf32>
    %203 = vector.broadcast %202 : vector<200x1xf32> to vector<200x128xf32>
    %204 = arith.mulf %199, %203 : vector<200x128xf32>
    %205 = vector.broadcast %183 : vector<1x128xf32> to vector<200x128xf32>
    %206 = arith.mulf %204, %205 : vector<200x128xf32>
    %207 = vector.broadcast %184 : vector<1x128xf32> to vector<200x128xf32>
    %208 = arith.addf %206, %207 : vector<200x128xf32>
    %cst_100 = arith.constant 0.000000e+00 : f32
    %209 = vector.broadcast %cst_100 : f32 to vector<200x128xf32>
    %210 = arith.maximumf %208, %209 : vector<200x128xf32>
    %211 = arith.truncf %210 : vector<200x128xf32> to vector<200x128xbf16>
    %c1_101 = arith.constant 1 : index
    %c0_102 = arith.constant 0 : index
    %c0_103 = arith.constant 0 : index
    %212 = vector.load %arg16[%c1_101, %c0_102, %c0_103] : memref<2x128x128xbf16, #tpu.memory_space<vmem>>, vector<1x128x128xbf16>
    %213 = vector.shape_cast %212 : vector<1x128x128xbf16> to vector<128x128xbf16>
    %cst_104 = arith.constant dense<0.000000e+00> : vector<200x128xf32>
    %214 = tpu.matmul %211, %213, %cst_104 {dimension_numbers = #tpu.dot_dimension_numbers<[1], [0], [0], [1], [0, 0, 1, 1], [], []>} : vector<200x128xbf16>, vector<128x128xbf16>, vector<200x128xf32> -> vector<200x128xf32>
    %c1_105 = arith.constant 1 : index
    %c0_106 = arith.constant 0 : index
    %c0_107 = arith.constant 0 : index
    %215 = vector.load %arg17[%c1_105, %c0_106, %c0_107] : memref<2x1x128xf32, #tpu.memory_space<vmem>>, vector<1x1x128xf32>
    %216 = vector.shape_cast %215 : vector<1x1x128xf32> to vector<1x128xf32>
    %217 = vector.broadcast %216 : vector<1x128xf32> to vector<200x128xf32>
    %218 = arith.addf %214, %217 : vector<200x128xf32>
    %c0_108 = arith.constant 0 : index
    %c0_109 = arith.constant 0 : index
    %219 = vector.load %arg18[%c0_108, %c0_109] : memref<1x128xf32, #tpu.memory_space<vmem>>, vector<1x128xf32>
    %c0_110 = arith.constant 0 : index
    %c0_111 = arith.constant 0 : index
    %220 = vector.load %arg19[%c0_110, %c0_111] : memref<1x128xf32, #tpu.memory_space<vmem>>, vector<1x128xf32>
    %cst_112 = arith.constant dense<0.000000e+00> : vector<200xf32>
    %221 = vector.multi_reduction <add>, %218, %cst_112 [1] : vector<200x128xf32> to vector<200xf32>
    %222 = vector.shape_cast %221 : vector<200xf32> to vector<200x1xf32>
    %cst_113 = arith.constant 3.125000e-02 : f32
    %223 = vector.broadcast %cst_113 : f32 to vector<200x1xf32>
    %224 = arith.mulf %222, %223 : vector<200x1xf32>
    %225 = arith.mulf %218, %218 : vector<200x128xf32>
    %cst_114 = arith.constant dense<0.000000e+00> : vector<200xf32>
    %226 = vector.multi_reduction <add>, %225, %cst_114 [1] : vector<200x128xf32> to vector<200xf32>
    %227 = vector.shape_cast %226 : vector<200xf32> to vector<200x1xf32>
    %cst_115 = arith.constant 3.125000e-02 : f32
    %228 = vector.broadcast %cst_115 : f32 to vector<200x1xf32>
    %229 = arith.mulf %227, %228 : vector<200x1xf32>
    %230 = arith.mulf %224, %224 : vector<200x1xf32>
    %231 = arith.subf %229, %230 : vector<200x1xf32>
    %cst_116 = arith.constant 0.000000e+00 : f32
    %232 = vector.broadcast %cst_116 : f32 to vector<200x1xf32>
    %233 = arith.maximumf %231, %232 : vector<200x1xf32>
    %234 = vector.broadcast %224 : vector<200x1xf32> to vector<200x128xf32>
    %235 = arith.subf %218, %234 : vector<200x128xf32>
    %cst_117 = arith.constant 9.99999974E-6 : f32
    %236 = vector.broadcast %cst_117 : f32 to vector<200x1xf32>
    %237 = arith.addf %233, %236 : vector<200x1xf32>
    %238 = math.rsqrt %237 : vector<200x1xf32>
    %239 = vector.broadcast %238 : vector<200x1xf32> to vector<200x128xf32>
    %240 = arith.mulf %235, %239 : vector<200x128xf32>
    %241 = vector.broadcast %219 : vector<1x128xf32> to vector<200x128xf32>
    %242 = arith.mulf %240, %241 : vector<200x128xf32>
    %243 = vector.broadcast %220 : vector<1x128xf32> to vector<200x128xf32>
    %244 = arith.addf %242, %243 : vector<200x128xf32>
    %cst_118 = arith.constant 0.000000e+00 : f32
    %245 = vector.broadcast %cst_118 : f32 to vector<200x128xf32>
    %246 = arith.maximumf %244, %245 : vector<200x128xf32>
    %247 = arith.truncf %246 : vector<200x128xf32> to vector<200x128xbf16>
    %248 = tpu.concatenate %145, %247 in 1 : vector<200x128xbf16>, vector<200x128xbf16> -> vector<200x256xbf16>
    %c0_119 = arith.constant 0 : index
    %c0_120 = arith.constant 0 : index
    %249 = vector.load %arg20[%c0_119, %c0_120] : memref<256x128xbf16, #tpu.memory_space<vmem>>, vector<256x128xbf16>
    %cst_121 = arith.constant dense<0.000000e+00> : vector<200x128xf32>
    %250 = tpu.matmul %248, %249, %cst_121 {dimension_numbers = #tpu.dot_dimension_numbers<[1], [0], [0], [1], [0, 0, 1, 1], [], []>} : vector<200x256xbf16>, vector<256x128xbf16>, vector<200x128xf32> -> vector<200x128xf32>
    %c0_122 = arith.constant 0 : index
    %c0_123 = arith.constant 0 : index
    %251 = vector.load %arg21[%c0_122, %c0_123] : memref<1x128xf32, #tpu.memory_space<vmem>>, vector<1x128xf32>
    %252 = vector.broadcast %251 : vector<1x128xf32> to vector<200x128xf32>
    %253 = arith.addf %250, %252 : vector<200x128xf32>
    %c0_124 = arith.constant 0 : index
    %c0_125 = arith.constant 0 : index
    %254 = vector.load %arg22[%c0_124, %c0_125] : memref<200x128xf32, #tpu.memory_space<vmem>>, vector<200x128xf32>
    tpu.vector_store %arg22[%c0_124, %c0_125], %253 {strides = array<i32>} : memref<200x128xf32, #tpu.memory_space<vmem>>, vector<200x128xf32>,
    return
  }
  func.func @transform_0(%arg0: i32) -> (i32, i32) {
    %c0_i32 = arith.constant 0 : i32
    %c0_i32_0 = arith.constant 0 : i32
    return %arg0, %c0_i32 : i32, i32
  }
  func.func @transform_1(%arg0: i32) -> (i32, i32) {
    %c0_i32 = arith.constant 0 : i32
    %c0_i32_0 = arith.constant 0 : i32
    return %arg0, %c0_i32 : i32, i32
  }
  func.func @transform_2(%arg0: i32) -> (i32, i32) {
    %c0_i32 = arith.constant 0 : i32
    %c0_i32_0 = arith.constant 0 : i32
    %c0_i32_1 = arith.constant 0 : i32
    return %c0_i32, %c0_i32_0 : i32, i32
  }
  func.func @transform_3(%arg0: i32) -> (i32, i32) {
    %c0_i32 = arith.constant 0 : i32
    %c0_i32_0 = arith.constant 0 : i32
    %c0_i32_1 = arith.constant 0 : i32
    return %c0_i32, %c0_i32_0 : i32, i32
  }
  func.func @transform_4(%arg0: i32) -> (i32, i32) {
    %c0_i32 = arith.constant 0 : i32
    %c0_i32_0 = arith.constant 0 : i32
    %c0_i32_1 = arith.constant 0 : i32
    return %c0_i32, %c0_i32_0 : i32, i32
  }
  func.func @transform_5(%arg0: i32) -> (i32, i32) {
    %c0_i32 = arith.constant 0 : i32
    %c0_i32_0 = arith.constant 0 : i32
    %c0_i32_1 = arith.constant 0 : i32
    return %c0_i32, %c0_i32_0 : i32, i32
  }
  func.func @transform_6(%arg0: i32) -> (i32, i32) {
    %c0_i32 = arith.constant 0 : i32
    %c0_i32_0 = arith.constant 0 : i32
    %c0_i32_1 = arith.constant 0 : i32
    return %c0_i32, %c0_i32_0 : i32, i32
  }
  func.func @transform_7(%arg0: i32) -> (i32, i32) {
    %c0_i32 = arith.constant 0 : i32
    %c0_i32_0 = arith.constant 0 : i32
    %c0_i32_1 = arith.constant 0 : i32
    return %c0_i32, %c0_i32_0 : i32, i32
  }
  func.func @transform_8(%arg0: i32) -> (i32, i32) {
    %c0_i32 = arith.constant 0 : i32
    %c0_i32_0 = arith.constant 0 : i32
    %c0_i32_1 = arith.constant 0 : i32
    return %c0_i32, %c0_i32_0 : i32, i32
  }
  func.func @transform_9(%arg0: i32) -> (i32, i32) {
    %c0_i32 = arith.constant 0 : i32
    %c0_i32_0 = arith.constant 0 : i32
    %c0_i32_1 = arith.constant 0 : i32
    return %c0_i32, %c0_i32_0 : i32, i32
  }
  func.func @transform_10(%arg0: i32) -> (i32, i32) {
    %c0_i32 = arith.constant 0 : i32
    %c0_i32_0 = arith.constant 0 : i32
    %c0_i32_1 = arith.constant 0 : i32
    return %c0_i32, %c0_i32_0 : i32, i32
  }
  func.func @transform_11(%arg0: i32) -> (i32, i32, i32) {
    %c0_i32 = arith.constant 0 : i32
    %c0_i32_0 = arith.constant 0 : i32
    %c0_i32_1 = arith.constant 0 : i32
    %c0_i32_2 = arith.constant 0 : i32
    return %c0_i32, %c0_i32_0, %c0_i32_1 : i32, i32, i32
  }
  func.func @transform_12(%arg0: i32) -> (i32, i32, i32) {
    %c0_i32 = arith.constant 0 : i32
    %c0_i32_0 = arith.constant 0 : i32
    %c0_i32_1 = arith.constant 0 : i32
    %c0_i32_2 = arith.constant 0 : i32
    return %c0_i32, %c0_i32_0, %c0_i32_1 : i32, i32, i32
  }
  func.func @transform_13(%arg0: i32) -> (i32, i32) {
    %c0_i32 = arith.constant 0 : i32
    %c0_i32_0 = arith.constant 0 : i32
    %c0_i32_1 = arith.constant 0 : i32
    return %c0_i32, %c0_i32_0 : i32, i32
  }
  func.func @transform_14(%arg0: i32) -> (i32, i32) {
    %c0_i32 = arith.constant 0 : i32
    %c0_i32_0 = arith.constant 0 : i32
    %c0_i32_1 = arith.constant 0 : i32
    return %c0_i32, %c0_i32_0 : i32, i32
  }
  func.func @transform_15(%arg0: i32) -> (i32, i32, i32) {
    %c0_i32 = arith.constant 0 : i32
    %c0_i32_0 = arith.constant 0 : i32
    %c0_i32_1 = arith.constant 0 : i32
    %c0_i32_2 = arith.constant 0 : i32
    return %c0_i32, %c0_i32_0, %c0_i32_1 : i32, i32, i32
  }
  func.func @transform_16(%arg0: i32) -> (i32, i32, i32) {
    %c0_i32 = arith.constant 0 : i32
    %c0_i32_0 = arith.constant 0 : i32
    %c0_i32_1 = arith.constant 0 : i32
    %c0_i32_2 = arith.constant 0 : i32
    return %c0_i32, %c0_i32_0, %c0_i32_1 : i32, i32, i32
  }
  func.func @transform_17(%arg0: i32) -> (i32, i32) {
    %c0_i32 = arith.constant 0 : i32
    %c0_i32_0 = arith.constant 0 : i32
    %c0_i32_1 = arith.constant 0 : i32
    return %c0_i32, %c0_i32_0 : i32, i32
  }
  func.func @transform_18(%arg0: i32) -> (i32, i32) {
    %c0_i32 = arith.constant 0 : i32
    %c0_i32_0 = arith.constant 0 : i32
    %c0_i32_1 = arith.constant 0 : i32
    return %c0_i32, %c0_i32_0 : i32, i32
  }
  func.func @transform_19(%arg0: i32) -> (i32, i32) {
    %c0_i32 = arith.constant 0 : i32
    %c0_i32_0 = arith.constant 0 : i32
    %c0_i32_1 = arith.constant 0 : i32
    return %c0_i32, %c0_i32_0 : i32, i32
  }
  func.func @transform_20(%arg0: i32) -> (i32, i32) {
    %c0_i32 = arith.constant 0 : i32
    %c0_i32_0 = arith.constant 0 : i32
    %c0_i32_1 = arith.constant 0 : i32
    return %c0_i32, %c0_i32_0 : i32, i32
  }
  func.func @transform_21(%arg0: i32) -> (i32, i32) {
    %c0_i32 = arith.constant 0 : i32
    %c0_i32_0 = arith.constant 0 : i32
    return %arg0, %c0_i32 : i32, i32
  }
}

</mosaic_0001>

<llo_original>
// kernel: ensemble_critic_forward.1
$region0: #{ensemble_critic_forward.1}
  #allocation0 [shape = 'u32[]', space=smem, size = 0x4, offset = 0x4, fixed_abs, tag = 'smem constant byte address 0x4 - core index']
  #allocation1 [shape = 'u32[144,128]{1,0:T(1,128)}', space=vmem, size = 0x12000, scoped, tag = 'internal scratch']
  %s0 = inlined_call_operand.vmem [shape: bf16[200,128], index: 0, kind: input, shape index: {}]
  %s1 = inlined_call_operand.vmem [shape: bf16[200,128], index: 1, kind: input, shape index: {}]
  %s2 = inlined_call_operand.vmem [shape: bf16[128,128], index: 2, kind: input, shape index: {}]
  %s3 = inlined_call_operand.vmem [shape: f32[1,128], index: 3, kind: input, shape index: {}]
  %s4 = inlined_call_operand.vmem [shape: f32[1,128], index: 4, kind: input, shape index: {}]
  %s5 = inlined_call_operand.vmem [shape: f32[1,128], index: 5, kind: input, shape index: {}]
  %s6 = inlined_call_operand.vmem [shape: bf16[128,256], index: 6, kind: input, shape index: {}]
  %s7 = inlined_call_operand.vmem [shape: bf16[128,256], index: 7, kind: input, shape index: {}]
  %s8 = inlined_call_operand.vmem [shape: f32[1,256], index: 8, kind: input, shape index: {}]
  %s9 = inlined_call_operand.vmem [shape: f32[1,128], index: 9, kind: input, shape index: {}]
  %s10 = inlined_call_operand.vmem [shape: f32[1,128], index: 10, kind: input, shape index: {}]
  %s11 = inlined_call_operand.vmem [shape: bf16[2,128,128], index: 11, kind: input, shape index: {}]
  %s12 = inlined_call_operand.vmem [shape: f32[2,1,128], index: 12, kind: input, shape index: {}]
  %s13 = inlined_call_operand.vmem [shape: f32[1,128], index: 13, kind: input, shape index: {}]
  %s14 = inlined_call_operand.vmem [shape: f32[1,128], index: 14, kind: input, shape index: {}]
  %s15 = inlined_call_operand.vmem [shape: bf16[2,128,128], index: 15, kind: input, shape index: {}]
  %s16 = inlined_call_operand.vmem [shape: f32[2,1,128], index: 16, kind: input, shape index: {}]
  %s17 = inlined_call_operand.vmem [shape: f32[1,128], index: 17, kind: input, shape index: {}]
  %s18 = inlined_call_operand.vmem [shape: f32[1,128], index: 18, kind: input, shape index: {}]
  %s19 = inlined_call_operand.vmem [shape: bf16[256,128], index: 19, kind: input, shape index: {}]
  %s20 = inlined_call_operand.vmem [shape: f32[1,128], index: 20, kind: input, shape index: {}]
  %s21 = inlined_call_operand.vmem [shape: f32[200,128], index: 21, kind: output, shape index: {}]
  %s22 = sld [smem:[#allocation0]]
  $region94: #{ensemble_critic_forward.1} parent=0
    _
  %s24 = ssub.s32 1, %s22
  %s25 = scalar_select 0, %s24, %s22
  // Predicated region
  $region2: #{ensemble_critic_forward.1} parent=0 // pred_check
    _
  $region3: #{ensemble_critic_forward.1} parent=0 // pred_check_branch
    %27 = sbr.rel (0) target = $region5
  $region4: #{ensemble_critic_forward.1} parent=0 // pred_region
    _
  $region5: #{ensemble_critic_forward.1} parent=0 // pred_fallthru
    _
  // Predicated region
  $region6: #{ensemble_critic_forward.1} parent=0 // pred_check
    _
  $region7: #{ensemble_critic_forward.1} parent=0 // pred_check_branch
    %29 = sbr.rel (0) target = $region9
  $region8: #{ensemble_critic_forward.1} parent=0 // pred_region
    _
  $region9: #{ensemble_critic_forward.1} parent=0 // pred_fallthru
    _
  // Predicated region
  $region10: #{ensemble_critic_forward.1} parent=0 // pred_check
    _
  $region11: #{ensemble_critic_forward.1} parent=0 // pred_check_branch
    %31 = sbr.rel (0) target = $region13
  $region12: #{ensemble_critic_forward.1} parent=0 // pred_region
    _
  $region13: #{ensemble_critic_forward.1} parent=0 // pred_fallthru
    _
  // Predicated region
  $region14: #{ensemble_critic_forward.1} parent=0 // pred_check
    _
  $region15: #{ensemble_critic_forward.1} parent=0 // pred_check_branch
    %33 = sbr.rel (0) target = $region17
  $region16: #{ensemble_critic_forward.1} parent=0 // pred_region
    _
  $region17: #{ensemble_critic_forward.1} parent=0 // pred_fallthru
    _
  // Predicated region
  $region18: #{ensemble_critic_forward.1} parent=0 // pred_check
    _
  $region19: #{ensemble_critic_forward.1} parent=0 // pred_check_branch
    %35 = sbr.rel (0) target = $region21
  $region20: #{ensemble_critic_forward.1} parent=0 // pred_region
    _
  $region21: #{ensemble_critic_forward.1} parent=0 // pred_fallthru
    _
  // Predicated region
  $region22: #{ensemble_critic_forward.1} parent=0 // pred_check
    _
  $region23: #{ensemble_critic_forward.1} parent=0 // pred_check_branch
    %37 = sbr.rel (0) target = $region25
  $region24: #{ensemble_critic_forward.1} parent=0 // pred_region
    _
  $region25: #{ensemble_critic_forward.1} parent=0 // pred_fallthru
    _
  // Predicated region
  $region26: #{ensemble_critic_forward.1} parent=0 // pred_check
    _
  $region27: #{ensemble_critic_forward.1} parent=0 // pred_check_branch
    %39 = sbr.rel (0) target = $region29
  $region28: #{ensemble_critic_forward.1} parent=0 // pred_region
    _
  $region29: #{ensemble_critic_forward.1} parent=0 // pred_fallthru
    _
  // Predicated region
  $region30: #{ensemble_critic_forward.1} parent=0 // pred_check
    _
  $region31: #{ensemble_critic_forward.1} parent=0 // pred_check_branch
    %41 = sbr.rel (0) target = $region33
  $region32: #{ensemble_critic_forward.1} parent=0 // pred_region
    _
  $region33: #{ensemble_critic_forward.1} parent=0 // pred_fallthru
    _
  // Predicated region
  $region34: #{ensemble_critic_forward.1} parent=0 // pred_check
    _
  $region35: #{ensemble_critic_forward.1} parent=0 // pred_check_branch
    %43 = sbr.rel (0) target = $region37
  $region36: #{ensemble_critic_forward.1} parent=0 // pred_region
    _
  $region37: #{ensemble_critic_forward.1} parent=0 // pred_fallthru
    _
  // Predicated region
  $region38: #{ensemble_critic_forward.1} parent=0 // pred_check
    _
  $region39: #{ensemble_critic_forward.1} parent=0 // pred_check_branch
    %45 = sbr.rel (0) target = $region41
  $region40: #{ensemble_critic_forward.1} parent=0 // pred_region
    _
  $region41: #{ensemble_critic_forward.1} parent=0 // pred_fallthru
    _
  // Predicated region
  $region42: #{ensemble_critic_forward.1} parent=0 // pred_check
    _
  $region43: #{ensemble_critic_forward.1} parent=0 // pred_check_branch
    %47 = sbr.rel (0) target = $region45
  $region44: #{ensemble_critic_forward.1} parent=0 // pred_region
    _
  $region45: #{ensemble_critic_forward.1} parent=0 // pred_fallthru
    _
  // Predicated region
  $region46: #{ensemble_critic_forward.1} parent=0 // pred_check
    _
  $region47: #{ensemble_critic_forward.1} parent=0 // pred_check_branch
    %49 = sbr.rel (0) target = $region49
  $region48: #{ensemble_critic_forward.1} parent=0 // pred_region
    _
  $region49: #{ensemble_critic_forward.1} parent=0 // pred_fallthru
    _
  // Predicated region
  $region50: #{ensemble_critic_forward.1} parent=0 // pred_check
    _
  $region51: #{ensemble_critic_forward.1} parent=0 // pred_check_branch
    %51 = sbr.rel (0) target = $region53
  $region52: #{ensemble_critic_forward.1} parent=0 // pred_region
    _
  $region53: #{ensemble_critic_forward.1} parent=0 // pred_fallthru
    _
  // Predicated region
  $region54: #{ensemble_critic_forward.1} parent=0 // pred_check
    _
  $region55: #{ensemble_critic_forward.1} parent=0 // pred_check_branch
    %53 = sbr.rel (0) target = $region57
  $region56: #{ensemble_critic_forward.1} parent=0 // pred_region
    _
  $region57: #{ensemble_critic_forward.1} parent=0 // pred_fallthru
    _
  // Predicated region
  $region58: #{ensemble_critic_forward.1} parent=0 // pred_check
    _
  $region59: #{ensemble_critic_forward.1} parent=0 // pred_check_branch
    %55 = sbr.rel (0) target = $region61
  $region60: #{ensemble_critic_forward.1} parent=0 // pred_region
    _
  $region61: #{ensemble_critic_forward.1} parent=0 // pred_fallthru
    _
  // Predicated region
  $region62: #{ensemble_critic_forward.1} parent=0 // pred_check
    _
  $region63: #{ensemble_critic_forward.1} parent=0 // pred_check_branch
    %57 = sbr.rel (0) target = $region65
  $region64: #{ensemble_critic_forward.1} parent=0 // pred_region
    _
  $region65: #{ensemble_critic_forward.1} parent=0 // pred_fallthru
    _
  // Predicated region
  $region66: #{ensemble_critic_forward.1} parent=0 // pred_check
    _
  $region67: #{ensemble_critic_forward.1} parent=0 // pred_check_branch
    %59 = sbr.rel (0) target = $region69
  $region68: #{ensemble_critic_forward.1} parent=0 // pred_region
    _
  $region69: #{ensemble_critic_forward.1} parent=0 // pred_fallthru
    _
  // Predicated region
  $region70: #{ensemble_critic_forward.1} parent=0 // pred_check
    _
  $region71: #{ensemble_critic_forward.1} parent=0 // pred_check_branch
    %61 = sbr.rel (0) target = $region73
  $region72: #{ensemble_critic_forward.1} parent=0 // pred_region
    _
  $region73: #{ensemble_critic_forward.1} parent=0 // pred_fallthru
    _
  // Predicated region
  $region74: #{ensemble_critic_forward.1} parent=0 // pred_check
    _
  $region75: #{ensemble_critic_forward.1} parent=0 // pred_check_branch
    %63 = sbr.rel (0) target = $region77
  $region76: #{ensemble_critic_forward.1} parent=0 // pred_region
    _
  $region77: #{ensemble_critic_forward.1} parent=0 // pred_fallthru
    _
  // Predicated region
  $region78: #{ensemble_critic_forward.1} parent=0 // pred_check
    _
  $region79: #{ensemble_critic_forward.1} parent=0 // pred_check_branch
    %65 = sbr.rel (0) target = $region81
  $region80: #{ensemble_critic_forward.1} parent=0 // pred_region
    _
  $region81: #{ensemble_critic_forward.1} parent=0 // pred_fallthru
    _
  // Predicated region
  $region82: #{ensemble_critic_forward.1} parent=0 // pred_check
    _
  $region83: #{ensemble_critic_forward.1} parent=0 // pred_check_branch
    %67 = sbr.rel (0) target = $region85
  $region84: #{ensemble_critic_forward.1} parent=0 // pred_region
    _
  $region85: #{ensemble_critic_forward.1} parent=0 // pred_fallthru
    _
  %v69 = vld [vmem:[%s0] sm:$0xf]
  %v70 = vld [vmem:[%s0 + $0x4] sm:$0xf]
  %v71 = vld [vmem:[%s0 + $0x8] sm:$0xf]
  %v72 = vld [vmem:[%s0 + $0xc] sm:$0xf]
  %v73 = vld [vmem:[%s0 + $0x10] sm:$0xf]
  %v74 = vld [vmem:[%s0 + $0x14] sm:$0xf]
  %v75 = vld [vmem:[%s0 + $0x18] sm:$0xf]
  %v76 = vld [vmem:[%s0 + $0x1c] sm:$0xf]
  %v77 = vld [vmem:[%s0 + $0x20] sm:$0xf]
  %v78 = vld [vmem:[%s0 + $0x24] sm:$0xf]
  %v79 = vld [vmem:[%s0 + $0x28] sm:$0xf]
  %v80 = vld [vmem:[%s0 + $0x2c] sm:$0xf]
  %v81 = vld [vmem:[%s0 + $0x30] sm:$0xf]
  %v82 = vld [vmem:[%s0 + $0x34] sm:$0xf]
  %v83 = vld [vmem:[%s0 + $0x38] sm:$0xf]
  %v84 = vld [vmem:[%s0 + $0x3c] sm:$0xf]
  %v85 = vld [vmem:[%s0 + $0x40] sm:$0xf]
  %v86 = vld [vmem:[%s0 + $0x44] sm:$0xf]
  %v87 = vld [vmem:[%s0 + $0x48] sm:$0xf]
  %v88 = vld [vmem:[%s0 + $0x4c] sm:$0xf]
  %v89 = vld [vmem:[%s0 + $0x50] sm:$0xf]
  %v90 = vld [vmem:[%s0 + $0x54] sm:$0xf]
  %v91 = vld [vmem:[%s0 + $0x58] sm:$0xf]
  %v92 = vld [vmem:[%s0 + $0x5c] sm:$0xf]
  %v93 = vld [vmem:[%s0 + $0x60] sm:$0xf]
  %v94 = vld [vmem:[%s1] sm:$0xf]
  %v95 = vld [vmem:[%s1 + $0x4] sm:$0xf]
  %v96 = vld [vmem:[%s1 + $0x8] sm:$0xf]
  %v97 = vld [vmem:[%s1 + $0xc] sm:$0xf]
  %v98 = vld [vmem:[%s1 + $0x10] sm:$0xf]
  %v99 = vld [vmem:[%s1 + $0x14] sm:$0xf]
  %v100 = vld [vmem:[%s1 + $0x18] sm:$0xf]
  %v101 = vld [vmem:[%s1 + $0x1c] sm:$0xf]
  %v102 = vld [vmem:[%s1 + $0x20] sm:$0xf]
  %v103 = vld [vmem:[%s1 + $0x24] sm:$0xf]
  %v104 = vld [vmem:[%s1 + $0x28] sm:$0xf]
  %v105 = vld [vmem:[%s1 + $0x2c] sm:$0xf]
  %v106 = vld [vmem:[%s1 + $0x30] sm:$0xf]
  %v107 = vld [vmem:[%s1 + $0x34] sm:$0xf]
  %v108 = vld [vmem:[%s1 + $0x38] sm:$0xf]
  %v109 = vld [vmem:[%s1 + $0x3c] sm:$0xf]
  %v110 = vld [vmem:[%s1 + $0x40] sm:$0xf]
  %v111 = vld [vmem:[%s1 + $0x44] sm:$0xf]
  %v112 = vld [vmem:[%s1 + $0x48] sm:$0xf]
  %v113 = vld [vmem:[%s1 + $0x4c] sm:$0xf]
  %v114 = vld [vmem:[%s1 + $0x50] sm:$0xf]
  %v115 = vld [vmem:[%s1 + $0x54] sm:$0xf]
  %v116 = vld [vmem:[%s1 + $0x58] sm:$0xf]
  %v117 = vld [vmem:[%s1 + $0x5c] sm:$0xf]
  %v118 = vld [vmem:[%s1 + $0x60] sm:$0xf]
  %v119 = vld [vmem:[%s2] sm:$0xf]
  %v120 = vld [vmem:[%s2 + $0x4] sm:$0xf]
  %v121 = vld [vmem:[%s2 + $0x8] sm:$0xf]
  %v122 = vld [vmem:[%s2 + $0xc] sm:$0xf]
  %v123 = vld [vmem:[%s2 + $0x10] sm:$0xf]
  %v124 = vld [vmem:[%s2 + $0x14] sm:$0xf]
  %v125 = vld [vmem:[%s2 + $0x18] sm:$0xf]
  %v126 = vld [vmem:[%s2 + $0x1c] sm:$0xf]
  %v127 = vld [vmem:[%s2 + $0x20] sm:$0xf]
  %v128 = vld [vmem:[%s2 + $0x24] sm:$0xf]
  %v129 = vld [vmem:[%s2 + $0x28] sm:$0xf]
  %v130 = vld [vmem:[%s2 + $0x2c] sm:$0xf]
  %v131 = vld [vmem:[%s2 + $0x30] sm:$0xf]
  %v132 = vld [vmem:[%s2 + $0x34] sm:$0xf]
  %v133 = vld [vmem:[%s2 + $0x38] sm:$0xf]
  %v134 = vld [vmem:[%s2 + $0x3c] sm:$0xf]
  %v135 = vld [vmem:[%s3] sm:$0x1]
  %v137 = vlaneseq
  %v138 = vshrl.u32 %v137, 7
  %v139 = vsub.s32 0, %v138
  %v140 = vrot.slane %v135, %v139
  %v167 = vunpack.c.l.b16 %v69
  %v168 = vunpack.c.l.b16 %v70
  %v169 = vunpack.c.l.b16 %v71
  %v170 = vunpack.c.l.b16 %v72
  %v171 = vunpack.c.l.b16 %v73
  %v172 = vunpack.c.l.b16 %v74
  %v173 = vunpack.c.l.b16 %v75
  %v174 = vunpack.c.l.b16 %v76
  %v175 = vunpack.c.l.b16 %v77
  %v176 = vunpack.c.l.b16 %v78
  %v177 = vunpack.c.l.b16 %v79
  %v178 = vunpack.c.l.b16 %v80
  %v179 = vunpack.c.l.b16 %v81
  %v180 = vunpack.c.l.b16 %v82
  %v181 = vunpack.c.l.b16 %v83
  %v182 = vunpack.c.l.b16 %v84
  %v183 = vunpack.c.l.b16 %v85
  %v184 = vunpack.c.l.b16 %v86
  %v185 = vunpack.c.l.b16 %v87
  %v186 = vunpack.c.l.b16 %v88
  %v187 = vunpack.c.l.b16 %v89
  %v188 = vunpack.c.l.b16 %v90
  %v189 = vunpack.c.l.b16 %v91
  %v190 = vunpack.c.l.b16 %v92
  %v191 = vunpack.c.l.b16 %v93
  %v192 = vpack.c.b16 %v168, %v167
  %v193 = vpack.c.b16 %v170, %v169
  %v194 = vpack.c.b16 %v172, %v171
  %v195 = vpack.c.b16 %v174, %v173
  %v196 = vpack.c.b16 %v176, %v175
  %v197 = vpack.c.b16 %v178, %v177
  %v198 = vpack.c.b16 %v180, %v179
  %v199 = vpack.c.b16 %v182, %v181
  %v200 = vpack.c.b16 %v184, %v183
  %v201 = vpack.c.b16 %v186, %v185
  %v202 = vpack.c.b16 %v188, %v187
  %v203 = vpack.c.b16 %v190, %v189
  %v204 = vpack.c.b16 %v191, %v191
  %v234 = vunpack.c.l.b16 %v119
  %v235 = vunpack.c.l.b16 %v120
  %v236 = vunpack.c.l.b16 %v121
  %v237 = vunpack.c.l.b16 %v122
  %v238 = vunpack.c.l.b16 %v123
  %v239 = vunpack.c.l.b16 %v124
  %v240 = vunpack.c.l.b16 %v125
  %v241 = vunpack.c.l.b16 %v126
  %v242 = vunpack.c.l.b16 %v127
  %v243 = vunpack.c.l.b16 %v128
  %v244 = vunpack.c.l.b16 %v129
  %v245 = vunpack.c.l.b16 %v130
  %v246 = vunpack.c.l.b16 %v131
  %v247 = vunpack.c.l.b16 %v132
  %v248 = vunpack.c.l.b16 %v133
  %v249 = vunpack.c.l.b16 %v134
  %v250 = vpack.c.b16 %v235, %v234
  %v251 = vpack.c.b16 %v237, %v236
  %v252 = vpack.c.b16 %v239, %v238
  %v253 = vpack.c.b16 %v241, %v240
  %v254 = vpack.c.b16 %v243, %v242
  %v255 = vpack.c.b16 %v245, %v244
  %v256 = vpack.c.b16 %v247, %v246
  %v257 = vpack.c.b16 %v249, %v248
  %266 = vmatprep.subr.bf16.mxu0 0
  %267 = vmatpush1.bf16.msra.mxu0 %v257
  %268 = vmatprep.subr.bf16.mxu0 0
  %269 = vmatpush1.bf16.msra.mxu0 %v256
  %270 = vmatprep.subr.bf16.mxu0 0
  %271 = vmatpush1.bf16.msra.mxu0 %v255
  %272 = vmatprep.subr.bf16.mxu0 0
  %273 = vmatpush1.bf16.msra.mxu0 %v254
  %274 = vmatprep.subr.bf16.mxu0 0
  %275 = vmatpush1.bf16.msra.mxu0 %v253
  %276 = vmatprep.subr.bf16.mxu0 0
  %277 = vmatpush1.bf16.msra.mxu0 %v252
  %278 = vmatprep.subr.bf16.mxu0 0
  %279 = vmatpush1.bf16.msra.mxu0 %v251
  %280 = vmatprep.subr.bf16.mxu0 0
  %281 = vmatpush1.bf16.msra.mxu0 %v250
  %282 = vmatprep.subr.bf16.mxu0 0
  %283 = vmatpush2.bf16.msra.mxu0 0
  %284 = vmatprep.subr.bf16.mxu0 0
  %285 = vmatpush2.bf16.msra.mxu0 0
  %286 = vmatprep.subr.bf16.mxu0 0
  %287 = vmatpush2.bf16.msra.mxu0 0
  %288 = vmatprep.subr.bf16.mxu0 0
  %289 = vmatpush2.bf16.msra.mxu0 0
  %290 = vmatprep.subr.bf16.mxu0 0
  %291 = vmatpush2.bf16.msra.mxu0 0
  %292 = vmatprep.subr.bf16.mxu0 0
  %293 = vmatpush2.bf16.msra.mxu0 0
  %294 = vmatprep.subr.bf16.mxu0 0
  %295 = vmatpush2.bf16.msra.mxu0 0
  %296 = vmatprep.subr.bf16.mxu0 0
  %297 = vmatpush2.bf16.msra.mxu0 0
  %298 = vmatprep.mubr.bf16.mxu0 0
  %299 = vmatmul.mubr.bf16.gmra.mxu0 %v192
  %v300 = vpop.f32.mrf.mxu0
  %v301 = vadd.f32 %v140, %v300
  %v302 = vpop.f32.mrf.mxu0
  %v303 = vpop.f32.mrf.mxu0
  %v304 = vadd.f32 %v140, %v303
  %v305 = vpop.f32.mrf.mxu0
  %306 = vmatprep.mubr.bf16.mxu0 0
  %307 = vmatmul.mubr.bf16.gmra.mxu0 %v193
  %v308 = vpop.f32.mrf.mxu0
  %v309 = vadd.f32 %v140, %v308
  %v310 = vpop.f32.mrf.mxu0
  %v311 = vpop.f32.mrf.mxu0
  %v312 = vadd.f32 %v140, %v311
  %v313 = vpop.f32.mrf.mxu0
  %314 = vmatprep.mubr.bf16.mxu0 0
  %315 = vmatmul.mubr.bf16.gmra.mxu0 %v194
  %v316 = vpop.f32.mrf.mxu0
  %v317 = vadd.f32 %v140, %v316
  %v318 = vpop.f32.mrf.mxu0
  %v319 = vpop.f32.mrf.mxu0
  %v320 = vadd.f32 %v140, %v319
  %v321 = vpop.f32.mrf.mxu0
  %322 = vmatprep.mubr.bf16.mxu0 0
  %323 = vmatmul.mubr.bf16.gmra.mxu0 %v195
  %v324 = vpop.f32.mrf.mxu0
  %v325 = vadd.f32 %v140, %v324
  %v326 = vpop.f32.mrf.mxu0
  %v327 = vpop.f32.mrf.mxu0
  %v328 = vadd.f32 %v140, %v327
  %v329 = vpop.f32.mrf.mxu0
  %330 = vmatprep.mubr.bf16.mxu0 0
  %331 = vmatmul.mubr.bf16.gmra.mxu0 %v196
  %v332 = vpop.f32.mrf.mxu0
  %v333 = vadd.f32 %v140, %v332
  %v334 = vpop.f32.mrf.mxu0
  %v335 = vpop.f32.mrf.mxu0
  %v336 = vadd.f32 %v140, %v335
  %v337 = vpop.f32.mrf.mxu0
  %338 = vmatprep.mubr.bf16.mxu0 0
  %339 = vmatmul.mubr.bf16.gmra.mxu0 %v197
  %v340 = vpop.f32.mrf.mxu0
  %v341 = vadd.f32 %v140, %v340
  %v342 = vpop.f32.mrf.mxu0
  %v343 = vpop.f32.mrf.mxu0
  %v344 = vadd.f32 %v140, %v343
  %v345 = vpop.f32.mrf.mxu0
  %346 = vmatprep.mubr.bf16.mxu0 0
  %347 = vmatmul.mubr.bf16.gmra.mxu0 %v198
  %v348 = vpop.f32.mrf.mxu0
  %v349 = vadd.f32 %v140, %v348
  %v350 = vpop.f32.mrf.mxu0
  %v351 = vpop.f32.mrf.mxu0
  %v352 = vadd.f32 %v140, %v351
  %v353 = vpop.f32.mrf.mxu0
  %354 = vmatprep.mubr.bf16.mxu0 0
  %355 = vmatmul.mubr.bf16.gmra.mxu0 %v199
  %v356 = vpop.f32.mrf.mxu0
  %v357 = vadd.f32 %v140, %v356
  %v358 = vpop.f32.mrf.mxu0
  %v359 = vpop.f32.mrf.mxu0
  %v360 = vadd.f32 %v140, %v359
  %v361 = vpop.f32.mrf.mxu0
  %362 = vmatprep.mubr.bf16.mxu0 0
  %363 = vmatmul.mubr.bf16.gmra.mxu0 %v200
  %v364 = vpop.f32.mrf.mxu0
  %v365 = vadd.f32 %v140, %v364
  %v366 = vpop.f32.mrf.mxu0
  %v367 = vpop.f32.mrf.mxu0
  %v368 = vadd.f32 %v140, %v367
  %v369 = vpop.f32.mrf.mxu0
  %370 = vmatprep.mubr.bf16.mxu0 0
  %371 = vmatmul.mubr.bf16.gmra.mxu0 %v201
  %v372 = vpop.f32.mrf.mxu0
  %v373 = vadd.f32 %v140, %v372
  %v374 = vpop.f32.mrf.mxu0
  %v375 = vpop.f32.mrf.mxu0
  %v376 = vadd.f32 %v140, %v375
  %v377 = vpop.f32.mrf.mxu0
  %378 = vmatprep.mubr.bf16.mxu0 0
  %379 = vmatmul.mubr.bf16.gmra.mxu0 %v202
  %v380 = vpop.f32.mrf.mxu0
  %v381 = vadd.f32 %v140, %v380
  %v382 = vpop.f32.mrf.mxu0
  %v383 = vpop.f32.mrf.mxu0
  %v384 = vadd.f32 %v140, %v383
  %v385 = vpop.f32.mrf.mxu0
  %386 = vmatprep.mubr.bf16.mxu0 0
  %387 = vmatmul.mubr.bf16.gmra.mxu0 %v203
  %v388 = vpop.f32.mrf.mxu0
  %v389 = vadd.f32 %v140, %v388
  %v390 = vpop.f32.mrf.mxu0
  %v391 = vpop.f32.mrf.mxu0
  %v392 = vadd.f32 %v140, %v391
  %v393 = vpop.f32.mrf.mxu0
  %394 = vmatprep.mubr.bf16.mxu0 0
  %395 = vmatmul.mubr.bf16.gmra.mxu0 %v204
  %v396 = vpop.f32.mrf.mxu0
  %v397 = vadd.f32 %v140, %v396
  %v398 = vpop.f32.mrf.mxu0
  %v399 = vpop.f32.mrf.mxu0
  %v400 = vpop.f32.mrf.mxu0
  %401 = vdwg.mxu0
  %v402 = vld [vmem:[%s4] sm:$0x1]
  %v403 = vld [vmem:[%s5] sm:$0x1]
  %404 = vadd.xlane.f32.xlu0 %v301
  %v405 = vpop.xlane.xlu0 %404
  %406 = vadd.xlane.f32.xlu0 %v304
  %v407 = vpop.xlane.xlu0 %406
  %408 = vadd.xlane.f32.xlu0 %v309
  %v409 = vpop.xlane.xlu0 %408
  %410 = vadd.xlane.f32.xlu0 %v312
  %v411 = vpop.xlane.xlu0 %410
  %412 = vadd.xlane.f32.xlu0 %v317
  %v413 = vpop.xlane.xlu0 %412
  %414 = vadd.xlane.f32.xlu0 %v320
  %v415 = vpop.xlane.xlu0 %414
  %416 = vadd.xlane.f32.xlu0 %v325
  %v417 = vpop.xlane.xlu0 %416
  %418 = vadd.xlane.f32.xlu0 %v328
  %v419 = vpop.xlane.xlu0 %418
  %420 = vadd.xlane.f32.xlu0 %v333
  %v421 = vpop.xlane.xlu0 %420
  %422 = vadd.xlane.f32.xlu0 %v336
  %v423 = vpop.xlane.xlu0 %422
  %424 = vadd.xlane.f32.xlu0 %v341
  %v425 = vpop.xlane.xlu0 %424
  %426 = vadd.xlane.f32.xlu0 %v344
  %v427 = vpop.xlane.xlu0 %426
  %428 = vadd.xlane.f32.xlu0 %v349
  %v429 = vpop.xlane.xlu0 %428
  %430 = vadd.xlane.f32.xlu0 %v352
  %v431 = vpop.xlane.xlu0 %430
  %432 = vadd.xlane.f32.xlu0 %v357
  %v433 = vpop.xlane.xlu0 %432
  %434 = vadd.xlane.f32.xlu0 %v360
  %v435 = vpop.xlane.xlu0 %434
  %436 = vadd.xlane.f32.xlu0 %v365
  %v437 = vpop.xlane.xlu0 %436
  %438 = vadd.xlane.f32.xlu0 %v368
  %v439 = vpop.xlane.xlu0 %438
  %440 = vadd.xlane.f32.xlu0 %v373
  %v441 = vpop.xlane.xlu0 %440
  %442 = vadd.xlane.f32.xlu0 %v376
  %v443 = vpop.xlane.xlu0 %442
  %444 = vadd.xlane.f32.xlu0 %v381
  %v445 = vpop.xlane.xlu0 %444
  %446 = vadd.xlane.f32.xlu0 %v384
  %v447 = vpop.xlane.xlu0 %446
  %448 = vadd.xlane.f32.xlu0 %v389
  %v449 = vpop.xlane.xlu0 %448
  %450 = vadd.xlane.f32.xlu0 %v392
  %v451 = vpop.xlane.xlu0 %450
  %452 = vadd.xlane.f32.xlu0 %v397
  %v453 = vpop.xlane.xlu0 %452
  %v454 = vmul.f32 %v405, 0.03125
  %v455 = vmul.f32 %v407, 0.03125
  %v456 = vmul.f32 %v409, 0.03125
  %v457 = vmul.f32 %v411, 0.03125
  %v458 = vmul.f32 %v413, 0.03125
  %v459 = vmul.f32 %v415, 0.03125
  %v460 = vmul.f32 %v417, 0.03125
  %v461 = vmul.f32 %v419, 0.03125
  %v462 = vmul.f32 %v421, 0.03125
  %v463 = vmul.f32 %v423, 0.03125
  %v464 = vmul.f32 %v425, 0.03125
  %v465 = vmul.f32 %v427, 0.03125
  %v466 = vmul.f32 %v429, 0.03125
  %v467 = vmul.f32 %v431, 0.03125
  %v468 = vmul.f32 %v433, 0.03125
  %v469 = vmul.f32 %v435, 0.03125
  %v470 = vmul.f32 %v437, 0.03125
  %v471 = vmul.f32 %v439, 0.03125
  %v472 = vmul.f32 %v441, 0.03125
  %v473 = vmul.f32 %v443, 0.03125
  %v474 = vmul.f32 %v445, 0.03125
  %v475 = vmul.f32 %v447, 0.03125
  %v476 = vmul.f32 %v449, 0.03125
  %v477 = vmul.f32 %v451, 0.03125
  %v478 = vmul.f32 %v453, 0.03125
  %v479 = vmul.f32 %v301, %v301
  %v480 = vmul.f32 %v304, %v304
  %v481 = vmul.f32 %v309, %v309
  %v482 = vmul.f32 %v312, %v312
  %v483 = vmul.f32 %v317, %v317
  %v484 = vmul.f32 %v320, %v320
  %v485 = vmul.f32 %v325, %v325
  %v486 = vmul.f32 %v328, %v328
  %v487 = vmul.f32 %v333, %v333
  %v488 = vmul.f32 %v336, %v336
  %v489 = vmul.f32 %v341, %v341
  %v490 = vmul.f32 %v344, %v344
  %v491 = vmul.f32 %v349, %v349
  %v492 = vmul.f32 %v352, %v352
  %v493 = vmul.f32 %v357, %v357
  %v494 = vmul.f32 %v360, %v360
  %v495 = vmul.f32 %v365, %v365
  %v496 = vmul.f32 %v368, %v368
  %v497 = vmul.f32 %v373, %v373
  %v498 = vmul.f32 %v376, %v376
  %v499 = vmul.f32 %v381, %v381
  %v500 = vmul.f32 %v384, %v384
  %v501 = vmul.f32 %v389, %v389
  %v502 = vmul.f32 %v392, %v392
  %v503 = vmul.f32 %v397, %v397
  %504 = vadd.xlane.f32.xlu0 %v479
  %v505 = vpop.xlane.xlu0 %504
  %506 = vadd.xlane.f32.xlu0 %v480
  %v507 = vpop.xlane.xlu0 %506
  %508 = vadd.xlane.f32.xlu0 %v481
  %v509 = vpop.xlane.xlu0 %508
  %510 = vadd.xlane.f32.xlu0 %v482
  %v511 = vpop.xlane.xlu0 %510
  %512 = vadd.xlane.f32.xlu0 %v483
  %v513 = vpop.xlane.xlu0 %512
  %514 = vadd.xlane.f32.xlu0 %v484
  %v515 = vpop.xlane.xlu0 %514
  %516 = vadd.xlane.f32.xlu0 %v485
  %v517 = vpop.xlane.xlu0 %516
  %518 = vadd.xlane.f32.xlu0 %v486
  %v519 = vpop.xlane.xlu0 %518
  %520 = vadd.xlane.f32.xlu0 %v487
  %v521 = vpop.xlane.xlu0 %520
  %522 = vadd.xlane.f32.xlu0 %v488
  %v523 = vpop.xlane.xlu0 %522
  %524 = vadd.xlane.f32.xlu0 %v489
  %v525 = vpop.xlane.xlu0 %524
  %526 = vadd.xlane.f32.xlu0 %v490
  %v527 = vpop.xlane.xlu0 %526
  %528 = vadd.xlane.f32.xlu0 %v491
  %v529 = vpop.xlane.xlu0 %528
  %530 = vadd.xlane.f32.xlu0 %v492
  %v531 = vpop.xlane.xlu0 %530
  %532 = vadd.xlane.f32.xlu0 %v493
  %v533 = vpop.xlane.xlu0 %532
  %534 = vadd.xlane.f32.xlu0 %v494
  %v535 = vpop.xlane.xlu0 %534
  %536 = vadd.xlane.f32.xlu0 %v495
  %v537 = vpop.xlane.xlu0 %536
  %538 = vadd.xlane.f32.xlu0 %v496
  %v539 = vpop.xlane.xlu0 %538
  %540 = vadd.xlane.f32.xlu0 %v497
  %v541 = vpop.xlane.xlu0 %540
  %542 = vadd.xlane.f32.xlu0 %v498
  %v543 = vpop.xlane.xlu0 %542
  %544 = vadd.xlane.f32.xlu0 %v499
  %v545 = vpop.xlane.xlu0 %544
  %546 = vadd.xlane.f32.xlu0 %v500
  %v547 = vpop.xlane.xlu0 %546
  %548 = vadd.xlane.f32.xlu0 %v501
  %v549 = vpop.xlane.xlu0 %548
  %550 = vadd.xlane.f32.xlu0 %v502
  %v551 = vpop.xlane.xlu0 %550
  %552 = vadd.xlane.f32.xlu0 %v503
  %v553 = vpop.xlane.xlu0 %552
  %v554 = vmul.f32 %v505, 0.03125
  %v555 = vmul.f32 %v507, 0.03125
  %v556 = vmul.f32 %v509, 0.03125
  %v557 = vmul.f32 %v511, 0.03125
  %v558 = vmul.f32 %v513, 0.03125
  %v559 = vmul.f32 %v515, 0.03125
  %v560 = vmul.f32 %v517, 0.03125
  %v561 = vmul.f32 %v519, 0.03125
  %v562 = vmul.f32 %v521, 0.03125
  %v563 = vmul.f32 %v523, 0.03125
  %v564 = vmul.f32 %v525, 0.03125
  %v565 = vmul.f32 %v527, 0.03125
  %v566 = vmul.f32 %v529, 0.03125
  %v567 = vmul.f32 %v531, 0.03125
  %v568 = vmul.f32 %v533, 0.03125
  %v569 = vmul.f32 %v535, 0.03125
  %v570 = vmul.f32 %v537, 0.03125
  %v571 = vmul.f32 %v539, 0.03125
  %v572 = vmul.f32 %v541, 0.03125
  %v573 = vmul.f32 %v543, 0.03125
  %v574 = vmul.f32 %v545, 0.03125
  %v575 = vmul.f32 %v547, 0.03125
  %v576 = vmul.f32 %v549, 0.03125
  %v577 = vmul.f32 %v551, 0.03125
  %v578 = vmul.f32 %v553, 0.03125
  %v579 = vmul.f32 %v454, %v454
  %v580 = vmul.f32 %v455, %v455
  %v581 = vmul.f32 %v456, %v456
  %v582 = vmul.f32 %v457, %v457
  %v583 = vmul.f32 %v458, %v458
  %v584 = vmul.f32 %v459, %v459
  %v585 = vmul.f32 %v460, %v460
  %v586 = vmul.f32 %v461, %v461
  %v587 = vmul.f32 %v462, %v462
  %v588 = vmul.f32 %v463, %v463
  %v589 = vmul.f32 %v464, %v464
  %v590 = vmul.f32 %v465, %v465
  %v591 = vmul.f32 %v466, %v466
  %v592 = vmul.f32 %v467, %v467
  %v593 = vmul.f32 %v468, %v468
  %v594 = vmul.f32 %v469, %v469
  %v595 = vmul.f32 %v470, %v470
  %v596 = vmul.f32 %v471, %v471
  %v597 = vmul.f32 %v472, %v472
  %v598 = vmul.f32 %v473, %v473
  %v599 = vmul.f32 %v474, %v474
  %v600 = vmul.f32 %v475, %v475
  %v601 = vmul.f32 %v476, %v476
  %v602 = vmul.f32 %v477, %v477
  %v603 = vmul.f32 %v478, %v478
  %v604 = vsub.f32 %v554, %v579
  %v605 = vsub.f32 %v555, %v580
  %v606 = vsub.f32 %v556, %v581
  %v607 = vsub.f32 %v557, %v582
  %v608 = vsub.f32 %v558, %v583
  %v609 = vsub.f32 %v559, %v584
  %v610 = vsub.f32 %v560, %v585
  %v611 = vsub.f32 %v561, %v586
  %v612 = vsub.f32 %v562, %v587
  %v613 = vsub.f32 %v563, %v588
  %v614 = vsub.f32 %v564, %v589
  %v615 = vsub.f32 %v565, %v590
  %v616 = vsub.f32 %v566, %v591
  %v617 = vsub.f32 %v567, %v592
  %v618 = vsub.f32 %v568, %v593
  %v619 = vsub.f32 %v569, %v594
  %v620 = vsub.f32 %v570, %v595
  %v621 = vsub.f32 %v571, %v596
  %v622 = vsub.f32 %v572, %v597
  %v623 = vsub.f32 %v573, %v598
  %v624 = vsub.f32 %v574, %v599
  %v625 = vsub.f32 %v575, %v600
  %v626 = vsub.f32 %v576, %v601
  %v627 = vsub.f32 %v577, %v602
  %v628 = vsub.f32 %v578, %v603
  %v629 = vmax.f32 %v604, 0.0
  %v630 = vmax.f32 %v605, 0.0
  %v631 = vmax.f32 %v606, 0.0
  %v632 = vmax.f32 %v607, 0.0
  %v633 = vmax.f32 %v608, 0.0
  %v634 = vmax.f32 %v609, 0.0
  %v635 = vmax.f32 %v610, 0.0
  %v636 = vmax.f32 %v611, 0.0
  %v637 = vmax.f32 %v612, 0.0
  %v638 = vmax.f32 %v613, 0.0
  %v639 = vmax.f32 %v614, 0.0
  %v640 = vmax.f32 %v615, 0.0
  %v641 = vmax.f32 %v616, 0.0
  %v642 = vmax.f32 %v617, 0.0
  %v643 = vmax.f32 %v618, 0.0
  %v644 = vmax.f32 %v619, 0.0
  %v645 = vmax.f32 %v620, 0.0
  %v646 = vmax.f32 %v621, 0.0
  %v647 = vmax.f32 %v622, 0.0
  %v648 = vmax.f32 %v623, 0.0
  %v649 = vmax.f32 %v624, 0.0
  %v650 = vmax.f32 %v625, 0.0
  %v651 = vmax.f32 %v626, 0.0
  %v652 = vmax.f32 %v627, 0.0
  %v653 = vmax.f32 %v628, 0.0
  %v654 = vsub.f32 %v301, %v454
  %v655 = vsub.f32 %v304, %v455
  %v656 = vsub.f32 %v309, %v456
  %v657 = vsub.f32 %v312, %v457
  %v658 = vsub.f32 %v317, %v458
  %v659 = vsub.f32 %v320, %v459
  %v660 = vsub.f32 %v325, %v460
  %v661 = vsub.f32 %v328, %v461
  %v662 = vsub.f32 %v333, %v462
  %v663 = vsub.f32 %v336, %v463
  %v664 = vsub.f32 %v341, %v464
  %v665 = vsub.f32 %v344, %v465
  %v666 = vsub.f32 %v349, %v466
  %v667 = vsub.f32 %v352, %v467
  %v668 = vsub.f32 %v357, %v468
  %v669 = vsub.f32 %v360, %v469
  %v670 = vsub.f32 %v365, %v470
  %v671 = vsub.f32 %v368, %v471
  %v672 = vsub.f32 %v373, %v472
  %v673 = vsub.f32 %v376, %v473
  %v674 = vsub.f32 %v381, %v474
  %v675 = vsub.f32 %v384, %v475
  %v676 = vsub.f32 %v389, %v476
  %v677 = vsub.f32 %v392, %v477
  %v678 = vsub.f32 %v397, %v478
  %v679 = vadd.f32 %v629, 1e-05
  %v680 = vadd.f32 %v630, 1e-05
  %v681 = vadd.f32 %v631, 1e-05
  %v682 = vadd.f32 %v632, 1e-05
  %v683 = vadd.f32 %v633, 1e-05
  %v684 = vadd.f32 %v634, 1e-05
  %v685 = vadd.f32 %v635, 1e-05
  %v686 = vadd.f32 %v636, 1e-05
  %v687 = vadd.f32 %v637, 1e-05
  %v688 = vadd.f32 %v638, 1e-05
  %v689 = vadd.f32 %v639, 1e-05
  %v690 = vadd.f32 %v640, 1e-05
  %v691 = vadd.f32 %v641, 1e-05
  %v692 = vadd.f32 %v642, 1e-05
  %v693 = vadd.f32 %v643, 1e-05
  %v694 = vadd.f32 %v644, 1e-05
  %v695 = vadd.f32 %v645, 1e-05
  %v696 = vadd.f32 %v646, 1e-05
  %v697 = vadd.f32 %v647, 1e-05
  %v698 = vadd.f32 %v648, 1e-05
  %v699 = vadd.f32 %v649, 1e-05
  %v700 = vadd.f32 %v650, 1e-05
  %v701 = vadd.f32 %v651, 1e-05
  %v702 = vadd.f32 %v652, 1e-05
  %v703 = vadd.f32 %v653, 1e-05
  %v704 = vrsqrt.pop %v679
  %v705 = vrsqrt.pop %v680
  %v706 = vrsqrt.pop %v681
  %v707 = vrsqrt.pop %v682
  %v708 = vrsqrt.pop %v683
  %v709 = vrsqrt.pop %v684
  %v710 = vrsqrt.pop %v685
  %v711 = vrsqrt.pop %v686
  %v712 = vrsqrt.pop %v687
  %v713 = vrsqrt.pop %v688
  %v714 = vrsqrt.pop %v689
  %v715 = vrsqrt.pop %v690
  %v716 = vrsqrt.pop %v691
  %v717 = vrsqrt.pop %v692
  %v718 = vrsqrt.pop %v693
  %v719 = vrsqrt.pop %v694
  %v720 = vrsqrt.pop %v695
  %v721 = vrsqrt.pop %v696
  %v722 = vrsqrt.pop %v697
  %v723 = vrsqrt.pop %v698
  %v724 = vrsqrt.pop %v699
  %v725 = vrsqrt.pop %v700
  %v726 = vrsqrt.pop %v701
  %v727 = vrsqrt.pop %v702
  %v728 = vrsqrt.pop %v703
  %v729 = vmul.f32 %v654, %v704
  %v730 = vmul.f32 %v655, %v705
  %v731 = vmul.f32 %v656, %v706
  %v732 = vmul.f32 %v657, %v707
  %v733 = vmul.f32 %v658, %v708
  %v734 = vmul.f32 %v659, %v709
  %v735 = vmul.f32 %v660, %v710
  %v736 = vmul.f32 %v661, %v711
  %v737 = vmul.f32 %v662, %v712
  %v738 = vmul.f32 %v663, %v713
  %v739 = vmul.f32 %v664, %v714
  %v740 = vmul.f32 %v665, %v715
  %v741 = vmul.f32 %v666, %v716
  %v742 = vmul.f32 %v667, %v717
  %v743 = vmul.f32 %v668, %v718
  %v744 = vmul.f32 %v669, %v719
  %v745 = vmul.f32 %v670, %v720
  %v746 = vmul.f32 %v671, %v721
  %v747 = vmul.f32 %v672, %v722
  %v748 = vmul.f32 %v673, %v723
  %v749 = vmul.f32 %v674, %v724
  %v750 = vmul.f32 %v675, %v725
  %v751 = vmul.f32 %v676, %v726
  %v752 = vmul.f32 %v677, %v727
  %v753 = vmul.f32 %v678, %v728
  %v755 = vlaneseq
  %v756 = vshrl.u32 %v755, 7
  %v757 = vsub.s32 0, %v756
  %v758 = vrot.slane %v402, %v757
  %v760 = vmul.f32 %v729, %v758
  %v761 = vmul.f32 %v730, %v758
  %v762 = vmul.f32 %v731, %v758
  %v763 = vmul.f32 %v732, %v758
  %v764 = vmul.f32 %v733, %v758
  %v765 = vmul.f32 %v734, %v758
  %v766 = vmul.f32 %v735, %v758
  %v767 = vmul.f32 %v736, %v758
  %v768 = vmul.f32 %v737, %v758
  %v769 = vmul.f32 %v738, %v758
  %v770 = vmul.f32 %v739, %v758
  %v771 = vmul.f32 %v740, %v758
  %v772 = vmul.f32 %v741, %v758
  %v773 = vmul.f32 %v742, %v758
  %v774 = vmul.f32 %v743, %v758
  %v775 = vmul.f32 %v744, %v758
  %v776 = vmul.f32 %v745, %v758
  %v777 = vmul.f32 %v746, %v758
  %v778 = vmul.f32 %v747, %v758
  %v779 = vmul.f32 %v748, %v758
  %v780 = vmul.f32 %v749, %v758
  %v781 = vmul.f32 %v750, %v758
  %v782 = vmul.f32 %v751, %v758
  %v783 = vmul.f32 %v752, %v758
  %v784 = vmul.f32 %v753, %v758
  %v786 = vlaneseq
  %v787 = vshrl.u32 %v786, 7
  %v788 = vsub.s32 0, %v787
  %v789 = vrot.slane %v403, %v788
  %v791 = vadd.f32 %v760, %v789
  %v792 = vadd.f32 %v761, %v789
  %v793 = vadd.f32 %v762, %v789
  %v794 = vadd.f32 %v763, %v789
  %v795 = vadd.f32 %v764, %v789
  %v796 = vadd.f32 %v765, %v789
  %v797 = vadd.f32 %v766, %v789
  %v798 = vadd.f32 %v767, %v789
  %v799 = vadd.f32 %v768, %v789
  %v800 = vadd.f32 %v769, %v789
  %v801 = vadd.f32 %v770, %v789
  %v802 = vadd.f32 %v771, %v789
  %v803 = vadd.f32 %v772, %v789
  %v804 = vadd.f32 %v773, %v789
  %v805 = vadd.f32 %v774, %v789
  %v806 = vadd.f32 %v775, %v789
  %v807 = vadd.f32 %v776, %v789
  %v808 = vadd.f32 %v777, %v789
  %v809 = vadd.f32 %v778, %v789
  %v810 = vadd.f32 %v779, %v789
  %v811 = vadd.f32 %v780, %v789
  %v812 = vadd.f32 %v781, %v789
  %v813 = vadd.f32 %v782, %v789
  %v814 = vadd.f32 %v783, %v789
  %v815 = vadd.f32 %v784, %v789
  %v816 = vmax.f32 %v791, 0.0
  %v817 = vmax.f32 %v792, 0.0
  %v818 = vmax.f32 %v793, 0.0
  %v819 = vmax.f32 %v794, 0.0
  %v820 = vmax.f32 %v795, 0.0
  %v821 = vmax.f32 %v796, 0.0
  %v822 = vmax.f32 %v797, 0.0
  %v823 = vmax.f32 %v798, 0.0
  %v824 = vmax.f32 %v799, 0.0
  %v825 = vmax.f32 %v800, 0.0
  %v826 = vmax.f32 %v801, 0.0
  %v827 = vmax.f32 %v802, 0.0
  %v828 = vmax.f32 %v803, 0.0
  %v829 = vmax.f32 %v804, 0.0
  %v830 = vmax.f32 %v805, 0.0
  %v831 = vmax.f32 %v806, 0.0
  %v832 = vmax.f32 %v807, 0.0
  %v833 = vmax.f32 %v808, 0.0
  %v834 = vmax.f32 %v809, 0.0
  %v835 = vmax.f32 %v810, 0.0
  %v836 = vmax.f32 %v811, 0.0
  %v837 = vmax.f32 %v812, 0.0
  %v838 = vmax.f32 %v813, 0.0
  %v839 = vmax.f32 %v814, 0.0
  %v840 = vmax.f32 %v815, 0.0
  %v841 = vpack.c.bf16 %v817, %v816
  %v842 = vpack.c.bf16 %v819, %v818
  %v843 = vpack.c.bf16 %v821, %v820
  %v844 = vpack.c.bf16 %v823, %v822
  %v845 = vpack.c.bf16 %v825, %v824
  %v846 = vpack.c.bf16 %v827, %v826
  %v847 = vpack.c.bf16 %v829, %v828
  %v848 = vpack.c.bf16 %v831, %v830
  %v849 = vpack.c.bf16 %v833, %v832
  %v850 = vpack.c.bf16 %v835, %v834
  %v851 = vpack.c.bf16 %v837, %v836
  %v852 = vpack.c.bf16 %v839, %v838
  %v853 = vpack.c.bf16 %v840, %v840
  %v854 = vld [vmem:[%s6] sm:$0xff]
  %v855 = vld [vmem:[%s6 + $0x8] sm:$0xff]
  %v856 = vld [vmem:[%s6 + $0x10] sm:$0xff]
  %v857 = vld [vmem:[%s6 + $0x18] sm:$0xff]
  %v858 = vld [vmem:[%s6 + $0x20] sm:$0xff]
  %v859 = vld [vmem:[%s6 + $0x28] sm:$0xff]
  %v860 = vld [vmem:[%s6 + $0x30] sm:$0xff]
  %v861 = vld [vmem:[%s6 + $0x38] sm:$0xff]
  %v862 = vld [vmem:[%s6 + $0x40] sm:$0xff]
  %v863 = vld [vmem:[%s6 + $0x48] sm:$0xff]
  %v864 = vld [vmem:[%s6 + $0x50] sm:$0xff]
  %v865 = vld [vmem:[%s6 + $0x58] sm:$0xff]
  %v866 = vld [vmem:[%s6 + $0x60] sm:$0xff]
  %v867 = vld [vmem:[%s6 + $0x68] sm:$0xff]
  %v868 = vld [vmem:[%s6 + $0x70] sm:$0xff]
  %v869 = vld [vmem:[%s6 + $0x78] sm:$0xff]
  %v870 = vld [vmem:[%s7] sm:$0xff]
  %v871 = vld [vmem:[%s7 + $0x8] sm:$0xff]
  %v872 = vld [vmem:[%s7 + $0x10] sm:$0xff]
  %v873 = vld [vmem:[%s7 + $0x18] sm:$0xff]
  %v874 = vld [vmem:[%s7 + $0x20] sm:$0xff]
  %v875 = vld [vmem:[%s7 + $0x28] sm:$0xff]
  %v876 = vld [vmem:[%s7 + $0x30] sm:$0xff]
  %v877 = vld [vmem:[%s7 + $0x38] sm:$0xff]
  %v878 = vld [vmem:[%s7 + $0x40] sm:$0xff]
  %v879 = vld [vmem:[%s7 + $0x48] sm:$0xff]
  %v880 = vld [vmem:[%s7 + $0x50] sm:$0xff]
  %v881 = vld [vmem:[%s7 + $0x58] sm:$0xff]
  %v882 = vld [vmem:[%s7 + $0x60] sm:$0xff]
  %v883 = vld [vmem:[%s7 + $0x68] sm:$0xff]
  %v884 = vld [vmem:[%s7 + $0x70] sm:$0xff]
  %v885 = vld [vmem:[%s7 + $0x78] sm:$0xff]
  %v911 = vunpack.c.l.b16 %v94
  %v912 = vunpack.c.l.b16 %v95
  %v913 = vunpack.c.l.b16 %v96
  %v914 = vunpack.c.l.b16 %v97
  %v915 = vunpack.c.l.b16 %v98
  %v916 = vunpack.c.l.b16 %v99
  %v917 = vunpack.c.l.b16 %v100
  %v918 = vunpack.c.l.b16 %v101
  %v919 = vunpack.c.l.b16 %v102
  %v920 = vunpack.c.l.b16 %v103
  %v921 = vunpack.c.l.b16 %v104
  %v922 = vunpack.c.l.b16 %v105
  %v923 = vunpack.c.l.b16 %v106
  %v924 = vunpack.c.l.b16 %v107
  %v925 = vunpack.c.l.b16 %v108
  %v926 = vunpack.c.l.b16 %v109
  %v927 = vunpack.c.l.b16 %v110
  %v928 = vunpack.c.l.b16 %v111
  %v929 = vunpack.c.l.b16 %v112
  %v930 = vunpack.c.l.b16 %v113
  %v931 = vunpack.c.l.b16 %v114
  %v932 = vunpack.c.l.b16 %v115
  %v933 = vunpack.c.l.b16 %v116
  %v934 = vunpack.c.l.b16 %v117
  %v935 = vunpack.c.l.b16 %v118
  %v936 = vpack.c.b16 %v912, %v911
  %v937 = vpack.c.b16 %v914, %v913
  %v938 = vpack.c.b16 %v916, %v915
  %v939 = vpack.c.b16 %v918, %v917
  %v940 = vpack.c.b16 %v920, %v919
  %v941 = vpack.c.b16 %v922, %v921
  %v942 = vpack.c.b16 %v924, %v923
  %v943 = vpack.c.b16 %v926, %v925
  %v944 = vpack.c.b16 %v928, %v927
  %v945 = vpack.c.b16 %v930, %v929
  %v946 = vpack.c.b16 %v932, %v931
  %v947 = vpack.c.b16 %v934, %v933
  %v948 = vpack.c.b16 %v935, %v935
  %v978 = vunpack.c.l.b16 %v870
  %v979 = vunpack.c.h.b16 %v870
  %v980 = vunpack.c.l.b16 %v871
  %v981 = vunpack.c.h.b16 %v871
  %v982 = vunpack.c.l.b16 %v872
  %v983 = vunpack.c.h.b16 %v872
  %v984 = vunpack.c.l.b16 %v873
  %v985 = vunpack.c.h.b16 %v873
  %v986 = vunpack.c.l.b16 %v874
  %v987 = vunpack.c.h.b16 %v874
  %v988 = vunpack.c.l.b16 %v875
  %v989 = vunpack.c.h.b16 %v875
  %v990 = vunpack.c.l.b16 %v876
  %v991 = vunpack.c.h.b16 %v876
  %v992 = vunpack.c.l.b16 %v877
  %v993 = vunpack.c.h.b16 %v877
  %v994 = vunpack.c.l.b16 %v878
  %v995 = vunpack.c.h.b16 %v878
  %v996 = vunpack.c.l.b16 %v879
  %v997 = vunpack.c.h.b16 %v879
  %v998 = vunpack.c.l.b16 %v880
  %v999 = vunpack.c.h.b16 %v880
  %v1000 = vunpack.c.l.b16 %v881
  %v1001 = vunpack.c.h.b16 %v881
  %v1002 = vunpack.c.l.b16 %v882
  %v1003 = vunpack.c.h.b16 %v882
  %v1004 = vunpack.c.l.b16 %v883
  %v1005 = vunpack.c.h.b16 %v883
  %v1006 = vunpack.c.l.b16 %v884
  %v1007 = vunpack.c.h.b16 %v884
  %v1008 = vunpack.c.l.b16 %v885
  %v1009 = vunpack.c.h.b16 %v885
  %v1010 = vpack.c.b16 %v980, %v978
  %v1011 = vpack.c.b16 %v981, %v979
  %v1012 = vpack.c.b16 %v984, %v982
  %v1013 = vpack.c.b16 %v985, %v983
  %v1014 = vpack.c.b16 %v988, %v986
  %v1015 = vpack.c.b16 %v989, %v987
  %v1016 = vpack.c.b16 %v992, %v990
  %v1017 = vpack.c.b16 %v993, %v991
  %v1018 = vpack.c.b16 %v996, %v994
  %v1019 = vpack.c.b16 %v997, %v995
  %v1020 = vpack.c.b16 %v1000, %v998
  %v1021 = vpack.c.b16 %v1001, %v999
  %v1022 = vpack.c.b16 %v1004, %v1002
  %v1023 = vpack.c.b16 %v1005, %v1003
  %v1024 = vpack.c.b16 %v1008, %v1006
  %v1025 = vpack.c.b16 %v1009, %v1007
  %1042 = vmatprep.subr.bf16.mxu0 %v1025
  %1043 = vmatpush1.bf16.msra.mxu0 %v1024
  %1044 = vmatprep.subr.bf16.mxu0 %v1023
  %1045 = vmatpush1.bf16.msra.mxu0 %v1022
  %1046 = vmatprep.subr.bf16.mxu0 %v1021
  %1047 = vmatpush1.bf16.msra.mxu0 %v1020
  %1048 = vmatprep.subr.bf16.mxu0 %v1019
  %1049 = vmatpush1.bf16.msra.mxu0 %v1018
  %1050 = vmatprep.subr.bf16.mxu0 %v1017
  %1051 = vmatpush1.bf16.msra.mxu0 %v1016
  %1052 = vmatprep.subr.bf16.mxu0 %v1015
  %1053 = vmatpush1.bf16.msra.mxu0 %v1014
  %1054 = vmatprep.subr.bf16.mxu0 %v1013
  %1055 = vmatpush1.bf16.msra.mxu0 %v1012
  %1056 = vmatprep.subr.bf16.mxu0 %v1011
  %1057 = vmatpush1.bf16.msra.mxu0 %v1010
  %1058 = vmatprep.subr.bf16.mxu0 0
  %1059 = vmatpush2.bf16.msra.mxu0 0
  %1060 = vmatprep.subr.bf16.mxu0 0
  %1061 = vmatpush2.bf16.msra.mxu0 0
  %1062 = vmatprep.subr.bf16.mxu0 0
  %1063 = vmatpush2.bf16.msra.mxu0 0
  %1064 = vmatprep.subr.bf16.mxu0 0
  %1065 = vmatpush2.bf16.msra.mxu0 0
  %1066 = vmatprep.subr.bf16.mxu0 0
  %1067 = vmatpush2.bf16.msra.mxu0 0
  %1068 = vmatprep.subr.bf16.mxu0 0
  %1069 = vmatpush2.bf16.msra.mxu0 0
  %1070 = vmatprep.subr.bf16.mxu0 0
  %1071 = vmatpush2.bf16.msra.mxu0 0
  %1072 = vmatprep.subr.bf16.mxu0 0
  %1073 = vmatpush2.bf16.msra.mxu0 0
  %1074 = vmatprep.mubr.bf16.mxu0 0
  %1075 = vmatmul.mubr.bf16.gmra.mxu0 %v936
  %v1076 = vpop.f32.mrf.mxu0
  %v1077 = vadd.f32 0.0, %v1076
  %v1078 = vpop.f32.mrf.mxu0
  %v1079 = vadd.f32 0.0, %v1078
  %v1080 = vpop.f32.mrf.mxu0
  %v1081 = vadd.f32 0.0, %v1080
  %v1082 = vpop.f32.mrf.mxu0
  %v1083 = vadd.f32 0.0, %v1082
  %1084 = vmatprep.mubr.bf16.mxu0 0
  %1085 = vmatmul.mubr.bf16.gmra.mxu0 %v937
  %v1086 = vpop.f32.mrf.mxu0
  %v1087 = vadd.f32 0.0, %v1086
  %v1088 = vpop.f32.mrf.mxu0
  %v1089 = vadd.f32 0.0, %v1088
  %v1090 = vpop.f32.mrf.mxu0
  %v1091 = vadd.f32 0.0, %v1090
  %v1092 = vpop.f32.mrf.mxu0
  %v1093 = vadd.f32 0.0, %v1092
  %1094 = vmatprep.mubr.bf16.mxu0 0
  %1095 = vmatmul.mubr.bf16.gmra.mxu0 %v938
  %v1096 = vpop.f32.mrf.mxu0
  %v1097 = vadd.f32 0.0, %v1096
  %v1098 = vpop.f32.mrf.mxu0
  %v1099 = vadd.f32 0.0, %v1098
  %v1100 = vpop.f32.mrf.mxu0
  %v1101 = vadd.f32 0.0, %v1100
  %v1102 = vpop.f32.mrf.mxu0
  %v1103 = vadd.f32 0.0, %v1102
  %1104 = vmatprep.mubr.bf16.mxu0 0
  %1105 = vmatmul.mubr.bf16.gmra.mxu0 %v939
  %v1106 = vpop.f32.mrf.mxu0
  %v1107 = vadd.f32 0.0, %v1106
  %v1108 = vpop.f32.mrf.mxu0
  %v1109 = vadd.f32 0.0, %v1108
  %v1110 = vpop.f32.mrf.mxu0
  %v1111 = vadd.f32 0.0, %v1110
  %v1112 = vpop.f32.mrf.mxu0
  %v1113 = vadd.f32 0.0, %v1112
  %1114 = vmatprep.mubr.bf16.mxu0 0
  %1115 = vmatmul.mubr.bf16.gmra.mxu0 %v940
  %v1116 = vpop.f32.mrf.mxu0
  %v1117 = vadd.f32 0.0, %v1116
  %v1118 = vpop.f32.mrf.mxu0
  %v1119 = vadd.f32 0.0, %v1118
  %v1120 = vpop.f32.mrf.mxu0
  %v1121 = vadd.f32 0.0, %v1120
  %v1122 = vpop.f32.mrf.mxu0
  %v1123 = vadd.f32 0.0, %v1122
  %1124 = vmatprep.mubr.bf16.mxu0 0
  %1125 = vmatmul.mubr.bf16.gmra.mxu0 %v941
  %v1126 = vpop.f32.mrf.mxu0
  %v1127 = vadd.f32 0.0, %v1126
  %v1128 = vpop.f32.mrf.mxu0
  %v1129 = vadd.f32 0.0, %v1128
  %v1130 = vpop.f32.mrf.mxu0
  %v1131 = vadd.f32 0.0, %v1130
  %v1132 = vpop.f32.mrf.mxu0
  %v1133 = vadd.f32 0.0, %v1132
  %1134 = vmatprep.mubr.bf16.mxu0 0
  %1135 = vmatmul.mubr.bf16.gmra.mxu0 %v942
  %v1136 = vpop.f32.mrf.mxu0
  %v1137 = vadd.f32 0.0, %v1136
  %v1138 = vpop.f32.mrf.mxu0
  %v1139 = vadd.f32 0.0, %v1138
  %v1140 = vpop.f32.mrf.mxu0
  %v1141 = vadd.f32 0.0, %v1140
  %v1142 = vpop.f32.mrf.mxu0
  %v1143 = vadd.f32 0.0, %v1142
  %1144 = vmatprep.mubr.bf16.mxu0 0
  %1145 = vmatmul.mubr.bf16.gmra.mxu0 %v943
  %v1146 = vpop.f32.mrf.mxu0
  %v1147 = vadd.f32 0.0, %v1146
  %v1148 = vpop.f32.mrf.mxu0
  %v1149 = vadd.f32 0.0, %v1148
  %v1150 = vpop.f32.mrf.mxu0
  %v1151 = vadd.f32 0.0, %v1150
  %v1152 = vpop.f32.mrf.mxu0
  %v1153 = vadd.f32 0.0, %v1152
  %1154 = vmatprep.mubr.bf16.mxu0 0
  %1155 = vmatmul.mubr.bf16.gmra.mxu0 %v944
  %v1156 = vpop.f32.mrf.mxu0
  %v1157 = vadd.f32 0.0, %v1156
  %v1158 = vpop.f32.mrf.mxu0
  %v1159 = vadd.f32 0.0, %v1158
  %v1160 = vpop.f32.mrf.mxu0
  %v1161 = vadd.f32 0.0, %v1160
  %v1162 = vpop.f32.mrf.mxu0
  %v1163 = vadd.f32 0.0, %v1162
  %1164 = vmatprep.mubr.bf16.mxu0 0
  %1165 = vmatmul.mubr.bf16.gmra.mxu0 %v945
  %v1166 = vpop.f32.mrf.mxu0
  %v1167 = vadd.f32 0.0, %v1166
  %v1168 = vpop.f32.mrf.mxu0
  %v1169 = vadd.f32 0.0, %v1168
  %v1170 = vpop.f32.mrf.mxu0
  %v1171 = vadd.f32 0.0, %v1170
  %v1172 = vpop.f32.mrf.mxu0
  %v1173 = vadd.f32 0.0, %v1172
  %1174 = vmatprep.mubr.bf16.mxu0 0
  %1175 = vmatmul.mubr.bf16.gmra.mxu0 %v946
  %v1176 = vpop.f32.mrf.mxu0
  %v1177 = vadd.f32 0.0, %v1176
  %v1178 = vpop.f32.mrf.mxu0
  %v1179 = vadd.f32 0.0, %v1178
  %v1180 = vpop.f32.mrf.mxu0
  %v1181 = vadd.f32 0.0, %v1180
  %v1182 = vpop.f32.mrf.mxu0
  %v1183 = vadd.f32 0.0, %v1182
  %1184 = vmatprep.mubr.bf16.mxu0 0
  %1185 = vmatmul.mubr.bf16.gmra.mxu0 %v947
  %v1186 = vpop.f32.mrf.mxu0
  %v1187 = vadd.f32 0.0, %v1186
  %v1188 = vpop.f32.mrf.mxu0
  %v1189 = vadd.f32 0.0, %v1188
  %v1190 = vpop.f32.mrf.mxu0
  %v1191 = vadd.f32 0.0, %v1190
  %v1192 = vpop.f32.mrf.mxu0
  %v1193 = vadd.f32 0.0, %v1192
  %1194 = vmatprep.mubr.bf16.mxu0 0
  %1195 = vmatmul.mubr.bf16.gmra.mxu0 %v948
  %v1196 = vpop.f32.mrf.mxu0
  %v1197 = vadd.f32 0.0, %v1196
  %v1198 = vpop.f32.mrf.mxu0
  %v1199 = vadd.f32 0.0, %v1198
  %v1200 = vpop.f32.mrf.mxu0
  %v1201 = vpop.f32.mrf.mxu0
  %1202 = vdwg.mxu0
  %v1219 = vunpack.c.l.b16 %v854
  %v1220 = vunpack.c.h.b16 %v854
  %v1221 = vunpack.c.l.b16 %v855
  %v1222 = vunpack.c.h.b16 %v855
  %v1223 = vunpack.c.l.b16 %v856
  %v1224 = vunpack.c.h.b16 %v856
  %v1225 = vunpack.c.l.b16 %v857
  %v1226 = vunpack.c.h.b16 %v857
  %v1227 = vunpack.c.l.b16 %v858
  %v1228 = vunpack.c.h.b16 %v858
  %v1229 = vunpack.c.l.b16 %v859
  %v1230 = vunpack.c.h.b16 %v859
  %v1231 = vunpack.c.l.b16 %v860
  %v1232 = vunpack.c.h.b16 %v860
  %v1233 = vunpack.c.l.b16 %v861
  %v1234 = vunpack.c.h.b16 %v861
  %v1235 = vunpack.c.l.b16 %v862
  %v1236 = vunpack.c.h.b16 %v862
  %v1237 = vunpack.c.l.b16 %v863
  %v1238 = vunpack.c.h.b16 %v863
  %v1239 = vunpack.c.l.b16 %v864
  %v1240 = vunpack.c.h.b16 %v864
  %v1241 = vunpack.c.l.b16 %v865
  %v1242 = vunpack.c.h.b16 %v865
  %v1243 = vunpack.c.l.b16 %v866
  %v1244 = vunpack.c.h.b16 %v866
  %v1245 = vunpack.c.l.b16 %v867
  %v1246 = vunpack.c.h.b16 %v867
  %v1247 = vunpack.c.l.b16 %v868
  %v1248 = vunpack.c.h.b16 %v868
  %v1249 = vunpack.c.l.b16 %v869
  %v1250 = vunpack.c.h.b16 %v869
  %v1251 = vpack.c.b16 %v1221, %v1219
  %v1252 = vpack.c.b16 %v1222, %v1220
  %v1253 = vpack.c.b16 %v1225, %v1223
  %v1254 = vpack.c.b16 %v1226, %v1224
  %v1255 = vpack.c.b16 %v1229, %v1227
  %v1256 = vpack.c.b16 %v1230, %v1228
  %v1257 = vpack.c.b16 %v1233, %v1231
  %v1258 = vpack.c.b16 %v1234, %v1232
  %v1259 = vpack.c.b16 %v1237, %v1235
  %v1260 = vpack.c.b16 %v1238, %v1236
  %v1261 = vpack.c.b16 %v1241, %v1239
  %v1262 = vpack.c.b16 %v1242, %v1240
  %v1263 = vpack.c.b16 %v1245, %v1243
  %v1264 = vpack.c.b16 %v1246, %v1244
  %v1265 = vpack.c.b16 %v1249, %v1247
  %v1266 = vpack.c.b16 %v1250, %v1248
  %1283 = vmatprep.subr.bf16.mxu0 %v1266
  %1284 = vmatpush1.bf16.msra.mxu0 %v1265
  %1285 = vmatprep.subr.bf16.mxu0 %v1264
  %1286 = vmatpush1.bf16.msra.mxu0 %v1263
  %1287 = vmatprep.subr.bf16.mxu0 %v1262
  %1288 = vmatpush1.bf16.msra.mxu0 %v1261
  %1289 = vmatprep.subr.bf16.mxu0 %v1260
  %1290 = vmatpush1.bf16.msra.mxu0 %v1259
  %1291 = vmatprep.subr.bf16.mxu0 %v1258
  %1292 = vmatpush1.bf16.msra.mxu0 %v1257
  %1293 = vmatprep.subr.bf16.mxu0 %v1256
  %1294 = vmatpush1.bf16.msra.mxu0 %v1255
  %1295 = vmatprep.subr.bf16.mxu0 %v1254
  %1296 = vmatpush1.bf16.msra.mxu0 %v1253
  %1297 = vmatprep.subr.bf16.mxu0 %v1252
  %1298 = vmatpush1.bf16.msra.mxu0 %v1251
  %1299 = vmatprep.subr.bf16.mxu0 0
  %1300 = vmatpush2.bf16.msra.mxu0 0
  %1301 = vmatprep.subr.bf16.mxu0 0
  %1302 = vmatpush2.bf16.msra.mxu0 0
  %1303 = vmatprep.subr.bf16.mxu0 0
  %1304 = vmatpush2.bf16.msra.mxu0 0
  %1305 = vmatprep.subr.bf16.mxu0 0
  %1306 = vmatpush2.bf16.msra.mxu0 0
  %1307 = vmatprep.subr.bf16.mxu0 0
  %1308 = vmatpush2.bf16.msra.mxu0 0
  %1309 = vmatprep.subr.bf16.mxu0 0
  %1310 = vmatpush2.bf16.msra.mxu0 0
  %1311 = vmatprep.subr.bf16.mxu0 0
  %1312 = vmatpush2.bf16.msra.mxu0 0
  %1313 = vmatprep.subr.bf16.mxu0 0
  %1314 = vmatpush2.bf16.msra.mxu0 0
  %1315 = vmatprep.mubr.bf16.mxu0 0
  %1316 = vmatmul.mubr.bf16.gmra.mxu0 %v841
  %v1317 = vpop.f32.mrf.mxu0
  %v1318 = vadd.f32 %v1077, %v1317
  %v1319 = vpop.f32.mrf.mxu0
  %v1320 = vadd.f32 %v1079, %v1319
  %v1321 = vpop.f32.mrf.mxu0
  %v1322 = vadd.f32 %v1081, %v1321
  %v1323 = vpop.f32.mrf.mxu0
  %v1324 = vadd.f32 %v1083, %v1323
  %1325 = vmatprep.mubr.bf16.mxu0 0
  %1326 = vmatmul.mubr.bf16.gmra.mxu0 %v842
  %v1327 = vpop.f32.mrf.mxu0
  %v1328 = vadd.f32 %v1087, %v1327
  %v1329 = vpop.f32.mrf.mxu0
  %v1330 = vadd.f32 %v1089, %v1329
  %v1331 = vpop.f32.mrf.mxu0
  %v1332 = vadd.f32 %v1091, %v1331
  %v1333 = vpop.f32.mrf.mxu0
  %v1334 = vadd.f32 %v1093, %v1333
  %1335 = vmatprep.mubr.bf16.mxu0 0
  %1336 = vmatmul.mubr.bf16.gmra.mxu0 %v843
  %v1337 = vpop.f32.mrf.mxu0
  %v1338 = vadd.f32 %v1097, %v1337
  %v1339 = vpop.f32.mrf.mxu0
  %v1340 = vadd.f32 %v1099, %v1339
  %v1341 = vpop.f32.mrf.mxu0
  %v1342 = vadd.f32 %v1101, %v1341
  %v1343 = vpop.f32.mrf.mxu0
  %v1344 = vadd.f32 %v1103, %v1343
  %1345 = vmatprep.mubr.bf16.mxu0 0
  %1346 = vmatmul.mubr.bf16.gmra.mxu0 %v844
  %v1347 = vpop.f32.mrf.mxu0
  %v1348 = vadd.f32 %v1107, %v1347
  %v1349 = vpop.f32.mrf.mxu0
  %v1350 = vadd.f32 %v1109, %v1349
  %v1351 = vpop.f32.mrf.mxu0
  %v1352 = vadd.f32 %v1111, %v1351
  %v1353 = vpop.f32.mrf.mxu0
  %v1354 = vadd.f32 %v1113, %v1353
  %1355 = vmatprep.mubr.bf16.mxu0 0
  %1356 = vmatmul.mubr.bf16.gmra.mxu0 %v845
  %v1357 = vpop.f32.mrf.mxu0
  %v1358 = vadd.f32 %v1117, %v1357
  %v1359 = vpop.f32.mrf.mxu0
  %v1360 = vadd.f32 %v1119, %v1359
  %v1361 = vpop.f32.mrf.mxu0
  %v1362 = vadd.f32 %v1121, %v1361
  %v1363 = vpop.f32.mrf.mxu0
  %v1364 = vadd.f32 %v1123, %v1363
  %1365 = vmatprep.mubr.bf16.mxu0 0
  %1366 = vmatmul.mubr.bf16.gmra.mxu0 %v846
  %v1367 = vpop.f32.mrf.mxu0
  %v1368 = vadd.f32 %v1127, %v1367
  %v1369 = vpop.f32.mrf.mxu0
  %v1370 = vadd.f32 %v1129, %v1369
  %v1371 = vpop.f32.mrf.mxu0
  %v1372 = vadd.f32 %v1131, %v1371
  %v1373 = vpop.f32.mrf.mxu0
  %v1374 = vadd.f32 %v1133, %v1373
  %1375 = vmatprep.mubr.bf16.mxu0 0
  %1376 = vmatmul.mubr.bf16.gmra.mxu0 %v847
  %v1377 = vpop.f32.mrf.mxu0
  %v1378 = vadd.f32 %v1137, %v1377
  %v1379 = vpop.f32.mrf.mxu0
  %v1380 = vadd.f32 %v1139, %v1379
  %v1381 = vpop.f32.mrf.mxu0
  %v1382 = vadd.f32 %v1141, %v1381
  %v1383 = vpop.f32.mrf.mxu0
  %v1384 = vadd.f32 %v1143, %v1383
  %1385 = vmatprep.mubr.bf16.mxu0 0
  %1386 = vmatmul.mubr.bf16.gmra.mxu0 %v848
  %v1387 = vpop.f32.mrf.mxu0
  %v1388 = vadd.f32 %v1147, %v1387
  %v1389 = vpop.f32.mrf.mxu0
  %v1390 = vadd.f32 %v1149, %v1389
  %v1391 = vpop.f32.mrf.mxu0
  %v1392 = vadd.f32 %v1151, %v1391
  %v1393 = vpop.f32.mrf.mxu0
  %v1394 = vadd.f32 %v1153, %v1393
  %1395 = vmatprep.mubr.bf16.mxu0 0
  %1396 = vmatmul.mubr.bf16.gmra.mxu0 %v849
  %v1397 = vpop.f32.mrf.mxu0
  %v1398 = vadd.f32 %v1157, %v1397
  %v1399 = vpop.f32.mrf.mxu0
  %v1400 = vadd.f32 %v1159, %v1399
  %v1401 = vpop.f32.mrf.mxu0
  %v1402 = vadd.f32 %v1161, %v1401
  %v1403 = vpop.f32.mrf.mxu0
  %v1404 = vadd.f32 %v1163, %v1403
  %1405 = vmatprep.mubr.bf16.mxu0 0
  %1406 = vmatmul.mubr.bf16.gmra.mxu0 %v850
  %v1407 = vpop.f32.mrf.mxu0
  %v1408 = vadd.f32 %v1167, %v1407
  %v1409 = vpop.f32.mrf.mxu0
  %v1410 = vadd.f32 %v1169, %v1409
  %v1411 = vpop.f32.mrf.mxu0
  %v1412 = vadd.f32 %v1171, %v1411
  %v1413 = vpop.f32.mrf.mxu0
  %v1414 = vadd.f32 %v1173, %v1413
  %1415 = vmatprep.mubr.bf16.mxu0 0
  %1416 = vmatmul.mubr.bf16.gmra.mxu0 %v851
  %v1417 = vpop.f32.mrf.mxu0
  %v1418 = vadd.f32 %v1177, %v1417
  %v1419 = vpop.f32.mrf.mxu0
  %v1420 = vadd.f32 %v1179, %v1419
  %v1421 = vpop.f32.mrf.mxu0
  %v1422 = vadd.f32 %v1181, %v1421
  %v1423 = vpop.f32.mrf.mxu0
  %v1424 = vadd.f32 %v1183, %v1423
  %1425 = vmatprep.mubr.bf16.mxu0 0
  %1426 = vmatmul.mubr.bf16.gmra.mxu0 %v852
  %v1427 = vpop.f32.mrf.mxu0
  %v1428 = vadd.f32 %v1187, %v1427
  %v1429 = vpop.f32.mrf.mxu0
  %v1430 = vadd.f32 %v1189, %v1429
  %v1431 = vpop.f32.mrf.mxu0
  %v1432 = vadd.f32 %v1191, %v1431
  %v1433 = vpop.f32.mrf.mxu0
  %v1434 = vadd.f32 %v1193, %v1433
  %1435 = vmatprep.mubr.bf16.mxu0 0
  %1436 = vmatmul.mubr.bf16.gmra.mxu0 %v853
  %v1437 = vpop.f32.mrf.mxu0
  %v1438 = vadd.f32 %v1197, %v1437
  %v1439 = vpop.f32.mrf.mxu0
  %v1440 = vadd.f32 %v1199, %v1439
  %v1441 = vpop.f32.mrf.mxu0
  %v1442 = vpop.f32.mrf.mxu0
  %1443 = vdwg.mxu0
  %v1444 = vld [vmem:[%s8] sm:$0x3]
  %v1446 = vlaneseq
  %v1447 = vshrl.u32 %v1446, 7
  %v1448 = vsub.s32 0, %v1447
  %v1449 = vrot.slane %v1444, %v1448
  %v1450 = vlaneseq
  %v1451 = vshrl.u32 %v1450, 7
  %v1452 = vsub.s32 1, %v1451
  %v1453 = vrot.slane %v1444, %v1452
  %v1456 = vadd.f32 %v1318, %v1449
  %v1457 = vadd.f32 %v1320, %v1453
  %v1458 = vadd.f32 %v1322, %v1449
  %v1459 = vadd.f32 %v1324, %v1453
  %v1460 = vadd.f32 %v1328, %v1449
  %v1461 = vadd.f32 %v1330, %v1453
  %v1462 = vadd.f32 %v1332, %v1449
  %v1463 = vadd.f32 %v1334, %v1453
  %v1464 = vadd.f32 %v1338, %v1449
  %v1465 = vadd.f32 %v1340, %v1453
  %v1466 = vadd.f32 %v1342, %v1449
  %v1467 = vadd.f32 %v1344, %v1453
  %v1468 = vadd.f32 %v1348, %v1449
  %v1469 = vadd.f32 %v1350, %v1453
  %v1470 = vadd.f32 %v1352, %v1449
  %v1471 = vadd.f32 %v1354, %v1453
  %v1472 = vadd.f32 %v1358, %v1449
  %v1473 = vadd.f32 %v1360, %v1453
  %v1474 = vadd.f32 %v1362, %v1449
  %v1475 = vadd.f32 %v1364, %v1453
  %v1476 = vadd.f32 %v1368, %v1449
  %v1477 = vadd.f32 %v1370, %v1453
  %v1478 = vadd.f32 %v1372, %v1449
  %v1479 = vadd.f32 %v1374, %v1453
  %v1480 = vadd.f32 %v1378, %v1449
  %v1481 = vadd.f32 %v1380, %v1453
  %v1482 = vadd.f32 %v1382, %v1449
  %v1483 = vadd.f32 %v1384, %v1453
  %v1484 = vadd.f32 %v1388, %v1449
  %v1485 = vadd.f32 %v1390, %v1453
  %v1486 = vadd.f32 %v1392, %v1449
  %v1487 = vadd.f32 %v1394, %v1453
  %v1488 = vadd.f32 %v1398, %v1449
  %v1489 = vadd.f32 %v1400, %v1453
  %v1490 = vadd.f32 %v1402, %v1449
  %v1491 = vadd.f32 %v1404, %v1453
  %v1492 = vadd.f32 %v1408, %v1449
  %v1493 = vadd.f32 %v1410, %v1453
  %v1494 = vadd.f32 %v1412, %v1449
  %v1495 = vadd.f32 %v1414, %v1453
  %v1496 = vadd.f32 %v1418, %v1449
  %v1497 = vadd.f32 %v1420, %v1453
  %v1498 = vadd.f32 %v1422, %v1449
  %v1499 = vadd.f32 %v1424, %v1453
  %v1500 = vadd.f32 %v1428, %v1449
  %v1501 = vadd.f32 %v1430, %v1453
  %v1502 = vadd.f32 %v1432, %v1449
  %v1503 = vadd.f32 %v1434, %v1453
  %v1504 = vadd.f32 %v1438, %v1449
  %v1505 = vadd.f32 %v1440, %v1453
  %v1506 = vld [vmem:[%s9] sm:$0x1]
  %v1507 = vld [vmem:[%s10] sm:$0x1]
  %1508 = vadd.xlane.f32.xlu0 %v1456
  %v1509 = vpop.xlane.xlu0 %1508
  %1510 = vadd.xlane.f32.xlu0 %v1458
  %v1511 = vpop.xlane.xlu0 %1510
  %1512 = vadd.xlane.f32.xlu0 %v1460
  %v1513 = vpop.xlane.xlu0 %1512
  %1514 = vadd.xlane.f32.xlu0 %v1462
  %v1515 = vpop.xlane.xlu0 %1514
  %1516 = vadd.xlane.f32.xlu0 %v1464
  %v1517 = vpop.xlane.xlu0 %1516
  %1518 = vadd.xlane.f32.xlu0 %v1466
  %v1519 = vpop.xlane.xlu0 %1518
  %1520 = vadd.xlane.f32.xlu0 %v1468
  %v1521 = vpop.xlane.xlu0 %1520
  %1522 = vadd.xlane.f32.xlu0 %v1470
  %v1523 = vpop.xlane.xlu0 %1522
  %1524 = vadd.xlane.f32.xlu0 %v1472
  %v1525 = vpop.xlane.xlu0 %1524
  %1526 = vadd.xlane.f32.xlu0 %v1474
  %v1527 = vpop.xlane.xlu0 %1526
  %1528 = vadd.xlane.f32.xlu0 %v1476
  %v1529 = vpop.xlane.xlu0 %1528
  %1530 = vadd.xlane.f32.xlu0 %v1478
  %v1531 = vpop.xlane.xlu0 %1530
  %1532 = vadd.xlane.f32.xlu0 %v1480
  %v1533 = vpop.xlane.xlu0 %1532
  %1534 = vadd.xlane.f32.xlu0 %v1482
  %v1535 = vpop.xlane.xlu0 %1534
  %1536 = vadd.xlane.f32.xlu0 %v1484
  %v1537 = vpop.xlane.xlu0 %1536
  %1538 = vadd.xlane.f32.xlu0 %v1486
  %v1539 = vpop.xlane.xlu0 %1538
  %1540 = vadd.xlane.f32.xlu0 %v1488
  %v1541 = vpop.xlane.xlu0 %1540
  %1542 = vadd.xlane.f32.xlu0 %v1490
  %v1543 = vpop.xlane.xlu0 %1542
  %1544 = vadd.xlane.f32.xlu0 %v1492
  %v1545 = vpop.xlane.xlu0 %1544
  %1546 = vadd.xlane.f32.xlu0 %v1494
  %v1547 = vpop.xlane.xlu0 %1546
  %1548 = vadd.xlane.f32.xlu0 %v1496
  %v1549 = vpop.xlane.xlu0 %1548
  %1550 = vadd.xlane.f32.xlu0 %v1498
  %v1551 = vpop.xlane.xlu0 %1550
  %1552 = vadd.xlane.f32.xlu0 %v1500
  %v1553 = vpop.xlane.xlu0 %1552
  %1554 = vadd.xlane.f32.xlu0 %v1502
  %v1555 = vpop.xlane.xlu0 %1554
  %1556 = vadd.xlane.f32.xlu0 %v1504
  %v1557 = vpop.xlane.xlu0 %1556
  %v1558 = vmul.f32 %v1509, 0.03125
  %v1559 = vmul.f32 %v1511, 0.03125
  %v1560 = vmul.f32 %v1513, 0.03125
  %v1561 = vmul.f32 %v1515, 0.03125
  %v1562 = vmul.f32 %v1517, 0.03125
  %v1563 = vmul.f32 %v1519, 0.03125
  %v1564 = vmul.f32 %v1521, 0.03125
  %v1565 = vmul.f32 %v1523, 0.03125
  %v1566 = vmul.f32 %v1525, 0.03125
  %v1567 = vmul.f32 %v1527, 0.03125
  %v1568 = vmul.f32 %v1529, 0.03125
  %v1569 = vmul.f32 %v1531, 0.03125
  %v1570 = vmul.f32 %v1533, 0.03125
  %v1571 = vmul.f32 %v1535, 0.03125
  %v1572 = vmul.f32 %v1537, 0.03125
  %v1573 = vmul.f32 %v1539, 0.03125
  %v1574 = vmul.f32 %v1541, 0.03125
  %v1575 = vmul.f32 %v1543, 0.03125
  %v1576 = vmul.f32 %v1545, 0.03125
  %v1577 = vmul.f32 %v1547, 0.03125
  %v1578 = vmul.f32 %v1549, 0.03125
  %v1579 = vmul.f32 %v1551, 0.03125
  %v1580 = vmul.f32 %v1553, 0.03125
  %v1581 = vmul.f32 %v1555, 0.03125
  %v1582 = vmul.f32 %v1557, 0.03125
  %v1583 = vmul.f32 %v1456, %v1456
  %v1584 = vmul.f32 %v1458, %v1458
  %v1585 = vmul.f32 %v1460, %v1460
  %v1586 = vmul.f32 %v1462, %v1462
  %v1587 = vmul.f32 %v1464, %v1464
  %v1588 = vmul.f32 %v1466, %v1466
  %v1589 = vmul.f32 %v1468, %v1468
  %v1590 = vmul.f32 %v1470, %v1470
  %v1591 = vmul.f32 %v1472, %v1472
  %v1592 = vmul.f32 %v1474, %v1474
  %v1593 = vmul.f32 %v1476, %v1476
  %v1594 = vmul.f32 %v1478, %v1478
  %v1595 = vmul.f32 %v1480, %v1480
  %v1596 = vmul.f32 %v1482, %v1482
  %v1597 = vmul.f32 %v1484, %v1484
  %v1598 = vmul.f32 %v1486, %v1486
  %v1599 = vmul.f32 %v1488, %v1488
  %v1600 = vmul.f32 %v1490, %v1490
  %v1601 = vmul.f32 %v1492, %v1492
  %v1602 = vmul.f32 %v1494, %v1494
  %v1603 = vmul.f32 %v1496, %v1496
  %v1604 = vmul.f32 %v1498, %v1498
  %v1605 = vmul.f32 %v1500, %v1500
  %v1606 = vmul.f32 %v1502, %v1502
  %v1607 = vmul.f32 %v1504, %v1504
  %1608 = vadd.xlane.f32.xlu0 %v1583
  %v1609 = vpop.xlane.xlu0 %1608
  %1610 = vadd.xlane.f32.xlu0 %v1584
  %v1611 = vpop.xlane.xlu0 %1610
  %1612 = vadd.xlane.f32.xlu0 %v1585
  %v1613 = vpop.xlane.xlu0 %1612
  %1614 = vadd.xlane.f32.xlu0 %v1586
  %v1615 = vpop.xlane.xlu0 %1614
  %1616 = vadd.xlane.f32.xlu0 %v1587
  %v1617 = vpop.xlane.xlu0 %1616
  %1618 = vadd.xlane.f32.xlu0 %v1588
  %v1619 = vpop.xlane.xlu0 %1618
  %1620 = vadd.xlane.f32.xlu0 %v1589
  %v1621 = vpop.xlane.xlu0 %1620
  %1622 = vadd.xlane.f32.xlu0 %v1590
  %v1623 = vpop.xlane.xlu0 %1622
  %1624 = vadd.xlane.f32.xlu0 %v1591
  %v1625 = vpop.xlane.xlu0 %1624
  %1626 = vadd.xlane.f32.xlu0 %v1592
  %v1627 = vpop.xlane.xlu0 %1626
  %1628 = vadd.xlane.f32.xlu0 %v1593
  %v1629 = vpop.xlane.xlu0 %1628
  %1630 = vadd.xlane.f32.xlu0 %v1594
  %v1631 = vpop.xlane.xlu0 %1630
  %1632 = vadd.xlane.f32.xlu0 %v1595
  %v1633 = vpop.xlane.xlu0 %1632
  %1634 = vadd.xlane.f32.xlu0 %v1596
  %v1635 = vpop.xlane.xlu0 %1634
  %1636 = vadd.xlane.f32.xlu0 %v1597
  %v1637 = vpop.xlane.xlu0 %1636
  %1638 = vadd.xlane.f32.xlu0 %v1598
  %v1639 = vpop.xlane.xlu0 %1638
  %1640 = vadd.xlane.f32.xlu0 %v1599
  %v1641 = vpop.xlane.xlu0 %1640
  %1642 = vadd.xlane.f32.xlu0 %v1600
  %v1643 = vpop.xlane.xlu0 %1642
  %1644 = vadd.xlane.f32.xlu0 %v1601
  %v1645 = vpop.xlane.xlu0 %1644
  %1646 = vadd.xlane.f32.xlu0 %v1602
  %v1647 = vpop.xlane.xlu0 %1646
  %1648 = vadd.xlane.f32.xlu0 %v1603
  %v1649 = vpop.xlane.xlu0 %1648
  %1650 = vadd.xlane.f32.xlu0 %v1604
  %v1651 = vpop.xlane.xlu0 %1650
  %1652 = vadd.xlane.f32.xlu0 %v1605
  %v1653 = vpop.xlane.xlu0 %1652
  %1654 = vadd.xlane.f32.xlu0 %v1606
  %v1655 = vpop.xlane.xlu0 %1654
  %1656 = vadd.xlane.f32.xlu0 %v1607
  %v1657 = vpop.xlane.xlu0 %1656
  %v1658 = vmul.f32 %v1609, 0.03125
  %v1659 = vmul.f32 %v1611, 0.03125
  %v1660 = vmul.f32 %v1613, 0.03125
  %v1661 = vmul.f32 %v1615, 0.03125
  %v1662 = vmul.f32 %v1617, 0.03125
  %v1663 = vmul.f32 %v1619, 0.03125
  %v1664 = vmul.f32 %v1621, 0.03125
  %v1665 = vmul.f32 %v1623, 0.03125
  %v1666 = vmul.f32 %v1625, 0.03125
  %v1667 = vmul.f32 %v1627, 0.03125
  %v1668 = vmul.f32 %v1629, 0.03125
  %v1669 = vmul.f32 %v1631, 0.03125
  %v1670 = vmul.f32 %v1633, 0.03125
  %v1671 = vmul.f32 %v1635, 0.03125
  %v1672 = vmul.f32 %v1637, 0.03125
  %v1673 = vmul.f32 %v1639, 0.03125
  %v1674 = vmul.f32 %v1641, 0.03125
  %v1675 = vmul.f32 %v1643, 0.03125
  %v1676 = vmul.f32 %v1645, 0.03125
  %v1677 = vmul.f32 %v1647, 0.03125
  %v1678 = vmul.f32 %v1649, 0.03125
  %v1679 = vmul.f32 %v1651, 0.03125
  %v1680 = vmul.f32 %v1653, 0.03125
  %v1681 = vmul.f32 %v1655, 0.03125
  %v1682 = vmul.f32 %v1657, 0.03125
  %v1683 = vmul.f32 %v1558, %v1558
  %v1684 = vmul.f32 %v1559, %v1559
  %v1685 = vmul.f32 %v1560, %v1560
  %v1686 = vmul.f32 %v1561, %v1561
  %v1687 = vmul.f32 %v1562, %v1562
  %v1688 = vmul.f32 %v1563, %v1563
  %v1689 = vmul.f32 %v1564, %v1564
  %v1690 = vmul.f32 %v1565, %v1565
  %v1691 = vmul.f32 %v1566, %v1566
  %v1692 = vmul.f32 %v1567, %v1567
  %v1693 = vmul.f32 %v1568, %v1568
  %v1694 = vmul.f32 %v1569, %v1569
  %v1695 = vmul.f32 %v1570, %v1570
  %v1696 = vmul.f32 %v1571, %v1571
  %v1697 = vmul.f32 %v1572, %v1572
  %v1698 = vmul.f32 %v1573, %v1573
  %v1699 = vmul.f32 %v1574, %v1574
  %v1700 = vmul.f32 %v1575, %v1575
  %v1701 = vmul.f32 %v1576, %v1576
  %v1702 = vmul.f32 %v1577, %v1577
  %v1703 = vmul.f32 %v1578, %v1578
  %v1704 = vmul.f32 %v1579, %v1579
  %v1705 = vmul.f32 %v1580, %v1580
  %v1706 = vmul.f32 %v1581, %v1581
  %v1707 = vmul.f32 %v1582, %v1582
  %v1708 = vsub.f32 %v1658, %v1683
  %v1709 = vsub.f32 %v1659, %v1684
  %v1710 = vsub.f32 %v1660, %v1685
  %v1711 = vsub.f32 %v1661, %v1686
  %v1712 = vsub.f32 %v1662, %v1687
  %v1713 = vsub.f32 %v1663, %v1688
  %v1714 = vsub.f32 %v1664, %v1689
  %v1715 = vsub.f32 %v1665, %v1690
  %v1716 = vsub.f32 %v1666, %v1691
  %v1717 = vsub.f32 %v1667, %v1692
  %v1718 = vsub.f32 %v1668, %v1693
  %v1719 = vsub.f32 %v1669, %v1694
  %v1720 = vsub.f32 %v1670, %v1695
  %v1721 = vsub.f32 %v1671, %v1696
  %v1722 = vsub.f32 %v1672, %v1697
  %v1723 = vsub.f32 %v1673, %v1698
  %v1724 = vsub.f32 %v1674, %v1699
  %v1725 = vsub.f32 %v1675, %v1700
  %v1726 = vsub.f32 %v1676, %v1701
  %v1727 = vsub.f32 %v1677, %v1702
  %v1728 = vsub.f32 %v1678, %v1703
  %v1729 = vsub.f32 %v1679, %v1704
  %v1730 = vsub.f32 %v1680, %v1705
  %v1731 = vsub.f32 %v1681, %v1706
  %v1732 = vsub.f32 %v1682, %v1707
  %v1733 = vmax.f32 %v1708, 0.0
  %v1734 = vmax.f32 %v1709, 0.0
  %v1735 = vmax.f32 %v1710, 0.0
  %v1736 = vmax.f32 %v1711, 0.0
  %v1737 = vmax.f32 %v1712, 0.0
  %v1738 = vmax.f32 %v1713, 0.0
  %v1739 = vmax.f32 %v1714, 0.0
  %v1740 = vmax.f32 %v1715, 0.0
  %v1741 = vmax.f32 %v1716, 0.0
  %v1742 = vmax.f32 %v1717, 0.0
  %v1743 = vmax.f32 %v1718, 0.0
  %v1744 = vmax.f32 %v1719, 0.0
  %v1745 = vmax.f32 %v1720, 0.0
  %v1746 = vmax.f32 %v1721, 0.0
  %v1747 = vmax.f32 %v1722, 0.0
  %v1748 = vmax.f32 %v1723, 0.0
  %v1749 = vmax.f32 %v1724, 0.0
  %v1750 = vmax.f32 %v1725, 0.0
  %v1751 = vmax.f32 %v1726, 0.0
  %v1752 = vmax.f32 %v1727, 0.0
  %v1753 = vmax.f32 %v1728, 0.0
  %v1754 = vmax.f32 %v1729, 0.0
  %v1755 = vmax.f32 %v1730, 0.0
  %v1756 = vmax.f32 %v1731, 0.0
  %v1757 = vmax.f32 %v1732, 0.0
  %v1758 = vsub.f32 %v1456, %v1558
  %v1759 = vsub.f32 %v1458, %v1559
  %v1760 = vsub.f32 %v1460, %v1560
  %v1761 = vsub.f32 %v1462, %v1561
  %v1762 = vsub.f32 %v1464, %v1562
  %v1763 = vsub.f32 %v1466, %v1563
  %v1764 = vsub.f32 %v1468, %v1564
  %v1765 = vsub.f32 %v1470, %v1565
  %v1766 = vsub.f32 %v1472, %v1566
  %v1767 = vsub.f32 %v1474, %v1567
  %v1768 = vsub.f32 %v1476, %v1568
  %v1769 = vsub.f32 %v1478, %v1569
  %v1770 = vsub.f32 %v1480, %v1570
  %v1771 = vsub.f32 %v1482, %v1571
  %v1772 = vsub.f32 %v1484, %v1572
  %v1773 = vsub.f32 %v1486, %v1573
  %v1774 = vsub.f32 %v1488, %v1574
  %v1775 = vsub.f32 %v1490, %v1575
  %v1776 = vsub.f32 %v1492, %v1576
  %v1777 = vsub.f32 %v1494, %v1577
  %v1778 = vsub.f32 %v1496, %v1578
  %v1779 = vsub.f32 %v1498, %v1579
  %v1780 = vsub.f32 %v1500, %v1580
  %v1781 = vsub.f32 %v1502, %v1581
  %v1782 = vsub.f32 %v1504, %v1582
  %v1783 = vadd.f32 %v1733, 1e-05
  %v1784 = vadd.f32 %v1734, 1e-05
  %v1785 = vadd.f32 %v1735, 1e-05
  %v1786 = vadd.f32 %v1736, 1e-05
  %v1787 = vadd.f32 %v1737, 1e-05
  %v1788 = vadd.f32 %v1738, 1e-05
  %v1789 = vadd.f32 %v1739, 1e-05
  %v1790 = vadd.f32 %v1740, 1e-05
  %v1791 = vadd.f32 %v1741, 1e-05
  %v1792 = vadd.f32 %v1742, 1e-05
  %v1793 = vadd.f32 %v1743, 1e-05
  %v1794 = vadd.f32 %v1744, 1e-05
  %v1795 = vadd.f32 %v1745, 1e-05
  %v1796 = vadd.f32 %v1746, 1e-05
  %v1797 = vadd.f32 %v1747, 1e-05
  %v1798 = vadd.f32 %v1748, 1e-05
  %v1799 = vadd.f32 %v1749, 1e-05
  %v1800 = vadd.f32 %v1750, 1e-05
  %v1801 = vadd.f32 %v1751, 1e-05
  %v1802 = vadd.f32 %v1752, 1e-05
  %v1803 = vadd.f32 %v1753, 1e-05
  %v1804 = vadd.f32 %v1754, 1e-05
  %v1805 = vadd.f32 %v1755, 1e-05
  %v1806 = vadd.f32 %v1756, 1e-05
  %v1807 = vadd.f32 %v1757, 1e-05
  %v1808 = vrsqrt.pop %v1783
  %v1809 = vrsqrt.pop %v1784
  %v1810 = vrsqrt.pop %v1785
  %v1811 = vrsqrt.pop %v1786
  %v1812 = vrsqrt.pop %v1787
  %v1813 = vrsqrt.pop %v1788
  %v1814 = vrsqrt.pop %v1789
  %v1815 = vrsqrt.pop %v1790
  %v1816 = vrsqrt.pop %v1791
  %v1817 = vrsqrt.pop %v1792
  %v1818 = vrsqrt.pop %v1793
  %v1819 = vrsqrt.pop %v1794
  %v1820 = vrsqrt.pop %v1795
  %v1821 = vrsqrt.pop %v1796
  %v1822 = vrsqrt.pop %v1797
  %v1823 = vrsqrt.pop %v1798
  %v1824 = vrsqrt.pop %v1799
  %v1825 = vrsqrt.pop %v1800
  %v1826 = vrsqrt.pop %v1801
  %v1827 = vrsqrt.pop %v1802
  %v1828 = vrsqrt.pop %v1803
  %v1829 = vrsqrt.pop %v1804
  %v1830 = vrsqrt.pop %v1805
  %v1831 = vrsqrt.pop %v1806
  %v1832 = vrsqrt.pop %v1807
  %v1833 = vmul.f32 %v1758, %v1808
  %v1834 = vmul.f32 %v1759, %v1809
  %v1835 = vmul.f32 %v1760, %v1810
  %v1836 = vmul.f32 %v1761, %v1811
  %v1837 = vmul.f32 %v1762, %v1812
  %v1838 = vmul.f32 %v1763, %v1813
  %v1839 = vmul.f32 %v1764, %v1814
  %v1840 = vmul.f32 %v1765, %v1815
  %v1841 = vmul.f32 %v1766, %v1816
  %v1842 = vmul.f32 %v1767, %v1817
  %v1843 = vmul.f32 %v1768, %v1818
  %v1844 = vmul.f32 %v1769, %v1819
  %v1845 = vmul.f32 %v1770, %v1820
  %v1846 = vmul.f32 %v1771, %v1821
  %v1847 = vmul.f32 %v1772, %v1822
  %v1848 = vmul.f32 %v1773, %v1823
  %v1849 = vmul.f32 %v1774, %v1824
  %v1850 = vmul.f32 %v1775, %v1825
  %v1851 = vmul.f32 %v1776, %v1826
  %v1852 = vmul.f32 %v1777, %v1827
  %v1853 = vmul.f32 %v1778, %v1828
  %v1854 = vmul.f32 %v1779, %v1829
  %v1855 = vmul.f32 %v1780, %v1830
  %v1856 = vmul.f32 %v1781, %v1831
  %v1857 = vmul.f32 %v1782, %v1832
  %v1859 = vlaneseq
  %v1860 = vshrl.u32 %v1859, 7
  %v1861 = vsub.s32 0, %v1860
  %v1862 = vrot.slane %v1506, %v1861
  %v1864 = vmul.f32 %v1833, %v1862
  %v1865 = vmul.f32 %v1834, %v1862
  %v1866 = vmul.f32 %v1835, %v1862
  %v1867 = vmul.f32 %v1836, %v1862
  %v1868 = vmul.f32 %v1837, %v1862
  %v1869 = vmul.f32 %v1838, %v1862
  %v1870 = vmul.f32 %v1839, %v1862
  %v1871 = vmul.f32 %v1840, %v1862
  %v1872 = vmul.f32 %v1841, %v1862
  %v1873 = vmul.f32 %v1842, %v1862
  %v1874 = vmul.f32 %v1843, %v1862
  %v1875 = vmul.f32 %v1844, %v1862
  %v1876 = vmul.f32 %v1845, %v1862
  %v1877 = vmul.f32 %v1846, %v1862
  %v1878 = vmul.f32 %v1847, %v1862
  %v1879 = vmul.f32 %v1848, %v1862
  %v1880 = vmul.f32 %v1849, %v1862
  %v1881 = vmul.f32 %v1850, %v1862
  %v1882 = vmul.f32 %v1851, %v1862
  %v1883 = vmul.f32 %v1852, %v1862
  %v1884 = vmul.f32 %v1853, %v1862
  %v1885 = vmul.f32 %v1854, %v1862
  %v1886 = vmul.f32 %v1855, %v1862
  %v1887 = vmul.f32 %v1856, %v1862
  %v1888 = vmul.f32 %v1857, %v1862
  %v1890 = vlaneseq
  %v1891 = vshrl.u32 %v1890, 7
  %v1892 = vsub.s32 0, %v1891
  %v1893 = vrot.slane %v1507, %v1892
  %v1895 = vadd.f32 %v1864, %v1893
  %v1896 = vadd.f32 %v1865, %v1893
  %v1897 = vadd.f32 %v1866, %v1893
  %v1898 = vadd.f32 %v1867, %v1893
  %v1899 = vadd.f32 %v1868, %v1893
  %v1900 = vadd.f32 %v1869, %v1893
  %v1901 = vadd.f32 %v1870, %v1893
  %v1902 = vadd.f32 %v1871, %v1893
  %v1903 = vadd.f32 %v1872, %v1893
  %v1904 = vadd.f32 %v1873, %v1893
  %v1905 = vadd.f32 %v1874, %v1893
  %v1906 = vadd.f32 %v1875, %v1893
  %v1907 = vadd.f32 %v1876, %v1893
  %v1908 = vadd.f32 %v1877, %v1893
  %v1909 = vadd.f32 %v1878, %v1893
  %v1910 = vadd.f32 %v1879, %v1893
  %v1911 = vadd.f32 %v1880, %v1893
  %v1912 = vadd.f32 %v1881, %v1893
  %v1913 = vadd.f32 %v1882, %v1893
  %v1914 = vadd.f32 %v1883, %v1893
  %v1915 = vadd.f32 %v1884, %v1893
  %v1916 = vadd.f32 %v1885, %v1893
  %v1917 = vadd.f32 %v1886, %v1893
  %v1918 = vadd.f32 %v1887, %v1893
  %v1919 = vadd.f32 %v1888, %v1893
  %v1920 = vmax.f32 %v1895, 0.0
  %v1921 = vmax.f32 %v1896, 0.0
  %v1922 = vmax.f32 %v1897, 0.0
  %v1923 = vmax.f32 %v1898, 0.0
  %v1924 = vmax.f32 %v1899, 0.0
  %v1925 = vmax.f32 %v1900, 0.0
  %v1926 = vmax.f32 %v1901, 0.0
  %v1927 = vmax.f32 %v1902, 0.0
  %v1928 = vmax.f32 %v1903, 0.0
  %v1929 = vmax.f32 %v1904, 0.0
  %v1930 = vmax.f32 %v1905, 0.0
  %v1931 = vmax.f32 %v1906, 0.0
  %v1932 = vmax.f32 %v1907, 0.0
  %v1933 = vmax.f32 %v1908, 0.0
  %v1934 = vmax.f32 %v1909, 0.0
  %v1935 = vmax.f32 %v1910, 0.0
  %v1936 = vmax.f32 %v1911, 0.0
  %v1937 = vmax.f32 %v1912, 0.0
  %v1938 = vmax.f32 %v1913, 0.0
  %v1939 = vmax.f32 %v1914, 0.0
  %v1940 = vmax.f32 %v1915, 0.0
  %v1941 = vmax.f32 %v1916, 0.0
  %v1942 = vmax.f32 %v1917, 0.0
  %v1943 = vmax.f32 %v1918, 0.0
  %v1944 = vmax.f32 %v1919, 0.0
  %v1945 = vpack.c.bf16 %v1921, %v1920
  %v1946 = vpack.c.bf16 %v1923, %v1922
  %v1947 = vpack.c.bf16 %v1925, %v1924
  %v1948 = vpack.c.bf16 %v1927, %v1926
  %v1949 = vpack.c.bf16 %v1929, %v1928
  %v1950 = vpack.c.bf16 %v1931, %v1930
  %v1951 = vpack.c.bf16 %v1933, %v1932
  %v1952 = vpack.c.bf16 %v1935, %v1934
  %v1953 = vpack.c.bf16 %v1937, %v1936
  %v1954 = vpack.c.bf16 %v1939, %v1938
  %v1955 = vpack.c.bf16 %v1941, %v1940
  %v1956 = vpack.c.bf16 %v1943, %v1942
  %v1957 = vpack.c.bf16 %v1944, %v1944
  %v1958 = vld [vmem:[%s11] sm:$0xf]
  %v1959 = vld [vmem:[%s11 + $0x4] sm:$0xf]
  %v1960 = vld [vmem:[%s11 + $0x8] sm:$0xf]
  %v1961 = vld [vmem:[%s11 + $0xc] sm:$0xf]
  %v1962 = vld [vmem:[%s11 + $0x10] sm:$0xf]
  %v1963 = vld [vmem:[%s11 + $0x14] sm:$0xf]
  %v1964 = vld [vmem:[%s11 + $0x18] sm:$0xf]
  %v1965 = vld [vmem:[%s11 + $0x1c] sm:$0xf]
  %v1966 = vld [vmem:[%s11 + $0x20] sm:$0xf]
  %v1967 = vld [vmem:[%s11 + $0x24] sm:$0xf]
  %v1968 = vld [vmem:[%s11 + $0x28] sm:$0xf]
  %v1969 = vld [vmem:[%s11 + $0x2c] sm:$0xf]
  %v1970 = vld [vmem:[%s11 + $0x30] sm:$0xf]
  %v1971 = vld [vmem:[%s11 + $0x34] sm:$0xf]
  %v1972 = vld [vmem:[%s11 + $0x38] sm:$0xf]
  %v1973 = vld [vmem:[%s11 + $0x3c] sm:$0xf]
  %v1974 = vld [vmem:[%s12] sm:$0x1]
  %v1976 = vlaneseq
  %v1977 = vshrl.u32 %v1976, 7
  %v1978 = vsub.s32 0, %v1977
  %v1979 = vrot.slane %v1974, %v1978
  %v1997 = vunpack.c.l.b16 %v1958
  %v1998 = vunpack.c.l.b16 %v1959
  %v1999 = vunpack.c.l.b16 %v1960
  %v2000 = vunpack.c.l.b16 %v1961
  %v2001 = vunpack.c.l.b16 %v1962
  %v2002 = vunpack.c.l.b16 %v1963
  %v2003 = vunpack.c.l.b16 %v1964
  %v2004 = vunpack.c.l.b16 %v1965
  %v2005 = vunpack.c.l.b16 %v1966
  %v2006 = vunpack.c.l.b16 %v1967
  %v2007 = vunpack.c.l.b16 %v1968
  %v2008 = vunpack.c.l.b16 %v1969
  %v2009 = vunpack.c.l.b16 %v1970
  %v2010 = vunpack.c.l.b16 %v1971
  %v2011 = vunpack.c.l.b16 %v1972
  %v2012 = vunpack.c.l.b16 %v1973
  %v2013 = vpack.c.b16 %v1998, %v1997
  %v2014 = vpack.c.b16 %v2000, %v1999
  %v2015 = vpack.c.b16 %v2002, %v2001
  %v2016 = vpack.c.b16 %v2004, %v2003
  %v2017 = vpack.c.b16 %v2006, %v2005
  %v2018 = vpack.c.b16 %v2008, %v2007
  %v2019 = vpack.c.b16 %v2010, %v2009
  %v2020 = vpack.c.b16 %v2012, %v2011
  %2029 = vmatprep.subr.bf16.mxu0 0
  %2030 = vmatpush1.bf16.msra.mxu0 %v2020
  %2031 = vmatprep.subr.bf16.mxu0 0
  %2032 = vmatpush1.bf16.msra.mxu0 %v2019
  %2033 = vmatprep.subr.bf16.mxu0 0
  %2034 = vmatpush1.bf16.msra.mxu0 %v2018
  %2035 = vmatprep.subr.bf16.mxu0 0
  %2036 = vmatpush1.bf16.msra.mxu0 %v2017
  %2037 = vmatprep.subr.bf16.mxu0 0
  %2038 = vmatpush1.bf16.msra.mxu0 %v2016
  %2039 = vmatprep.subr.bf16.mxu0 0
  %2040 = vmatpush1.bf16.msra.mxu0 %v2015
  %2041 = vmatprep.subr.bf16.mxu0 0
  %2042 = vmatpush1.bf16.msra.mxu0 %v2014
  %2043 = vmatprep.subr.bf16.mxu0 0
  %2044 = vmatpush1.bf16.msra.mxu0 %v2013
  %2045 = vmatprep.subr.bf16.mxu0 0
  %2046 = vmatpush2.bf16.msra.mxu0 0
  %2047 = vmatprep.subr.bf16.mxu0 0
  %2048 = vmatpush2.bf16.msra.mxu0 0
  %2049 = vmatprep.subr.bf16.mxu0 0
  %2050 = vmatpush2.bf16.msra.mxu0 0
  %2051 = vmatprep.subr.bf16.mxu0 0
  %2052 = vmatpush2.bf16.msra.mxu0 0
  %2053 = vmatprep.subr.bf16.mxu0 0
  %2054 = vmatpush2.bf16.msra.mxu0 0
  %2055 = vmatprep.subr.bf16.mxu0 0
  %2056 = vmatpush2.bf16.msra.mxu0 0
  %2057 = vmatprep.subr.bf16.mxu0 0
  %2058 = vmatpush2.bf16.msra.mxu0 0
  %2059 = vmatprep.subr.bf16.mxu0 0
  %2060 = vmatpush2.bf16.msra.mxu0 0
  %2061 = vmatprep.mubr.bf16.mxu0 0
  %2062 = vmatmul.mubr.bf16.gmra.mxu0 %v1945
  %v2063 = vpop.f32.mrf.mxu0
  %v2064 = vadd.f32 %v1979, %v2063
  %v2065 = vpop.f32.mrf.mxu0
  %v2066 = vpop.f32.mrf.mxu0
  %v2067 = vadd.f32 %v1979, %v2066
  %v2068 = vpop.f32.mrf.mxu0
  %2069 = vmatprep.mubr.bf16.mxu0 0
  %2070 = vmatmul.mubr.bf16.gmra.mxu0 %v1946
  %v2071 = vpop.f32.mrf.mxu0
  %v2072 = vadd.f32 %v1979, %v2071
  %v2073 = vpop.f32.mrf.mxu0
  %v2074 = vpop.f32.mrf.mxu0
  %v2075 = vadd.f32 %v1979, %v2074
  %v2076 = vpop.f32.mrf.mxu0
  %2077 = vmatprep.mubr.bf16.mxu0 0
  %2078 = vmatmul.mubr.bf16.gmra.mxu0 %v1947
  %v2079 = vpop.f32.mrf.mxu0
  %v2080 = vadd.f32 %v1979, %v2079
  %v2081 = vpop.f32.mrf.mxu0
  %v2082 = vpop.f32.mrf.mxu0
  %v2083 = vadd.f32 %v1979, %v2082
  %v2084 = vpop.f32.mrf.mxu0
  %2085 = vmatprep.mubr.bf16.mxu0 0
  %2086 = vmatmul.mubr.bf16.gmra.mxu0 %v1948
  %v2087 = vpop.f32.mrf.mxu0
  %v2088 = vadd.f32 %v1979, %v2087
  %v2089 = vpop.f32.mrf.mxu0
  %v2090 = vpop.f32.mrf.mxu0
  %v2091 = vadd.f32 %v1979, %v2090
  %v2092 = vpop.f32.mrf.mxu0
  %2093 = vmatprep.mubr.bf16.mxu0 0
  %2094 = vmatmul.mubr.bf16.gmra.mxu0 %v1949
  %v2095 = vpop.f32.mrf.mxu0
  %v2096 = vadd.f32 %v1979, %v2095
  %v2097 = vpop.f32.mrf.mxu0
  %v2098 = vpop.f32.mrf.mxu0
  %v2099 = vadd.f32 %v1979, %v2098
  %v2100 = vpop.f32.mrf.mxu0
  %2101 = vmatprep.mubr.bf16.mxu0 0
  %2102 = vmatmul.mubr.bf16.gmra.mxu0 %v1950
  %v2103 = vpop.f32.mrf.mxu0
  %v2104 = vadd.f32 %v1979, %v2103
  %v2105 = vpop.f32.mrf.mxu0
  %v2106 = vpop.f32.mrf.mxu0
  %v2107 = vadd.f32 %v1979, %v2106
  %v2108 = vpop.f32.mrf.mxu0
  %2109 = vmatprep.mubr.bf16.mxu0 0
  %2110 = vmatmul.mubr.bf16.gmra.mxu0 %v1951
  %v2111 = vpop.f32.mrf.mxu0
  %v2112 = vadd.f32 %v1979, %v2111
  %v2113 = vpop.f32.mrf.mxu0
  %v2114 = vpop.f32.mrf.mxu0
  %v2115 = vadd.f32 %v1979, %v2114
  %v2116 = vpop.f32.mrf.mxu0
  %2117 = vmatprep.mubr.bf16.mxu0 0
  %2118 = vmatmul.mubr.bf16.gmra.mxu0 %v1952
  %v2119 = vpop.f32.mrf.mxu0
  %v2120 = vadd.f32 %v1979, %v2119
  %v2121 = vpop.f32.mrf.mxu0
  %v2122 = vpop.f32.mrf.mxu0
  %v2123 = vadd.f32 %v1979, %v2122
  %v2124 = vpop.f32.mrf.mxu0
  %2125 = vmatprep.mubr.bf16.mxu0 0
  %2126 = vmatmul.mubr.bf16.gmra.mxu0 %v1953
  %v2127 = vpop.f32.mrf.mxu0
  %v2128 = vadd.f32 %v1979, %v2127
  %v2129 = vpop.f32.mrf.mxu0
  %v2130 = vpop.f32.mrf.mxu0
  %v2131 = vadd.f32 %v1979, %v2130
  %v2132 = vpop.f32.mrf.mxu0
  %2133 = vmatprep.mubr.bf16.mxu0 0
  %2134 = vmatmul.mubr.bf16.gmra.mxu0 %v1954
  %v2135 = vpop.f32.mrf.mxu0
  %v2136 = vadd.f32 %v1979, %v2135
  %v2137 = vpop.f32.mrf.mxu0
  %v2138 = vpop.f32.mrf.mxu0
  %v2139 = vadd.f32 %v1979, %v2138
  %v2140 = vpop.f32.mrf.mxu0
  %2141 = vmatprep.mubr.bf16.mxu0 0
  %2142 = vmatmul.mubr.bf16.gmra.mxu0 %v1955
  %v2143 = vpop.f32.mrf.mxu0
  %v2144 = vadd.f32 %v1979, %v2143
  %v2145 = vpop.f32.mrf.mxu0
  %v2146 = vpop.f32.mrf.mxu0
  %v2147 = vadd.f32 %v1979, %v2146
  %v2148 = vpop.f32.mrf.mxu0
  %2149 = vmatprep.mubr.bf16.mxu0 0
  %2150 = vmatmul.mubr.bf16.gmra.mxu0 %v1956
  %v2151 = vpop.f32.mrf.mxu0
  %v2152 = vadd.f32 %v1979, %v2151
  %v2153 = vpop.f32.mrf.mxu0
  %v2154 = vpop.f32.mrf.mxu0
  %v2155 = vadd.f32 %v1979, %v2154
  %v2156 = vpop.f32.mrf.mxu0
  %2157 = vmatprep.mubr.bf16.mxu0 0
  %2158 = vmatmul.mubr.bf16.gmra.mxu0 %v1957
  %v2159 = vpop.f32.mrf.mxu0
  %v2160 = vadd.f32 %v1979, %v2159
  %v2161 = vpop.f32.mrf.mxu0
  %v2162 = vpop.f32.mrf.mxu0
  %v2163 = vpop.f32.mrf.mxu0
  %2164 = vdwg.mxu0
  %v2165 = vld [vmem:[%s13] sm:$0x1]
  %v2166 = vld [vmem:[%s14] sm:$0x1]
  %2167 = vadd.xlane.f32.xlu0 %v2064
  %v2168 = vpop.xlane.xlu0 %2167
  %2169 = vadd.xlane.f32.xlu0 %v2067
  %v2170 = vpop.xlane.xlu0 %2169
  %2171 = vadd.xlane.f32.xlu0 %v2072
  %v2172 = vpop.xlane.xlu0 %2171
  %2173 = vadd.xlane.f32.xlu0 %v2075
  %v2174 = vpop.xlane.xlu0 %2173
  %2175 = vadd.xlane.f32.xlu0 %v2080
  %v2176 = vpop.xlane.xlu0 %2175
  %2177 = vadd.xlane.f32.xlu0 %v2083
  %v2178 = vpop.xlane.xlu0 %2177
  %2179 = vadd.xlane.f32.xlu0 %v2088
  %v2180 = vpop.xlane.xlu0 %2179
  %2181 = vadd.xlane.f32.xlu0 %v2091
  %v2182 = vpop.xlane.xlu0 %2181
  %2183 = vadd.xlane.f32.xlu0 %v2096
  %v2184 = vpop.xlane.xlu0 %2183
  %2185 = vadd.xlane.f32.xlu0 %v2099
  %v2186 = vpop.xlane.xlu0 %2185
  %2187 = vadd.xlane.f32.xlu0 %v2104
  %v2188 = vpop.xlane.xlu0 %2187
  %2189 = vadd.xlane.f32.xlu0 %v2107
  %v2190 = vpop.xlane.xlu0 %2189
  %2191 = vadd.xlane.f32.xlu0 %v2112
  %v2192 = vpop.xlane.xlu0 %2191
  %2193 = vadd.xlane.f32.xlu0 %v2115
  %v2194 = vpop.xlane.xlu0 %2193
  %2195 = vadd.xlane.f32.xlu0 %v2120
  %v2196 = vpop.xlane.xlu0 %2195
  %2197 = vadd.xlane.f32.xlu0 %v2123
  %v2198 = vpop.xlane.xlu0 %2197
  %2199 = vadd.xlane.f32.xlu0 %v2128
  %v2200 = vpop.xlane.xlu0 %2199
  %2201 = vadd.xlane.f32.xlu0 %v2131
  %v2202 = vpop.xlane.xlu0 %2201
  %2203 = vadd.xlane.f32.xlu0 %v2136
  %v2204 = vpop.xlane.xlu0 %2203
  %2205 = vadd.xlane.f32.xlu0 %v2139
  %v2206 = vpop.xlane.xlu0 %2205
  %2207 = vadd.xlane.f32.xlu0 %v2144
  %v2208 = vpop.xlane.xlu0 %2207
  %2209 = vadd.xlane.f32.xlu0 %v2147
  %v2210 = vpop.xlane.xlu0 %2209
  %2211 = vadd.xlane.f32.xlu0 %v2152
  %v2212 = vpop.xlane.xlu0 %2211
  %2213 = vadd.xlane.f32.xlu0 %v2155
  %v2214 = vpop.xlane.xlu0 %2213
  %2215 = vadd.xlane.f32.xlu0 %v2160
  %v2216 = vpop.xlane.xlu0 %2215
  %v2217 = vmul.f32 %v2168, 0.03125
  %v2218 = vmul.f32 %v2170, 0.03125
  %v2219 = vmul.f32 %v2172, 0.03125
  %v2220 = vmul.f32 %v2174, 0.03125
  %v2221 = vmul.f32 %v2176, 0.03125
  %v2222 = vmul.f32 %v2178, 0.03125
  %v2223 = vmul.f32 %v2180, 0.03125
  %v2224 = vmul.f32 %v2182, 0.03125
  %v2225 = vmul.f32 %v2184, 0.03125
  %v2226 = vmul.f32 %v2186, 0.03125
  %v2227 = vmul.f32 %v2188, 0.03125
  %v2228 = vmul.f32 %v2190, 0.03125
  %v2229 = vmul.f32 %v2192, 0.03125
  %v2230 = vmul.f32 %v2194, 0.03125
  %v2231 = vmul.f32 %v2196, 0.03125
  %v2232 = vmul.f32 %v2198, 0.03125
  %v2233 = vmul.f32 %v2200, 0.03125
  %v2234 = vmul.f32 %v2202, 0.03125
  %v2235 = vmul.f32 %v2204, 0.03125
  %v2236 = vmul.f32 %v2206, 0.03125
  %v2237 = vmul.f32 %v2208, 0.03125
  %v2238 = vmul.f32 %v2210, 0.03125
  %v2239 = vmul.f32 %v2212, 0.03125
  %v2240 = vmul.f32 %v2214, 0.03125
  %v2241 = vmul.f32 %v2216, 0.03125
  %v2242 = vmul.f32 %v2064, %v2064
  %v2243 = vmul.f32 %v2067, %v2067
  %v2244 = vmul.f32 %v2072, %v2072
  %v2245 = vmul.f32 %v2075, %v2075
  %v2246 = vmul.f32 %v2080, %v2080
  %v2247 = vmul.f32 %v2083, %v2083
  %v2248 = vmul.f32 %v2088, %v2088
  %v2249 = vmul.f32 %v2091, %v2091
  %v2250 = vmul.f32 %v2096, %v2096
  %v2251 = vmul.f32 %v2099, %v2099
  %v2252 = vmul.f32 %v2104, %v2104
  %v2253 = vmul.f32 %v2107, %v2107
  %v2254 = vmul.f32 %v2112, %v2112
  %v2255 = vmul.f32 %v2115, %v2115
  %v2256 = vmul.f32 %v2120, %v2120
  %v2257 = vmul.f32 %v2123, %v2123
  %v2258 = vmul.f32 %v2128, %v2128
  %v2259 = vmul.f32 %v2131, %v2131
  %v2260 = vmul.f32 %v2136, %v2136
  %v2261 = vmul.f32 %v2139, %v2139
  %v2262 = vmul.f32 %v2144, %v2144
  %v2263 = vmul.f32 %v2147, %v2147
  %v2264 = vmul.f32 %v2152, %v2152
  %v2265 = vmul.f32 %v2155, %v2155
  %v2266 = vmul.f32 %v2160, %v2160
  %2267 = vadd.xlane.f32.xlu0 %v2242
  %v2268 = vpop.xlane.xlu0 %2267
  %2269 = vadd.xlane.f32.xlu0 %v2243
  %v2270 = vpop.xlane.xlu0 %2269
  %2271 = vadd.xlane.f32.xlu0 %v2244
  %v2272 = vpop.xlane.xlu0 %2271
  %2273 = vadd.xlane.f32.xlu0 %v2245
  %v2274 = vpop.xlane.xlu0 %2273
  %2275 = vadd.xlane.f32.xlu0 %v2246
  %v2276 = vpop.xlane.xlu0 %2275
  %2277 = vadd.xlane.f32.xlu0 %v2247
  %v2278 = vpop.xlane.xlu0 %2277
  %2279 = vadd.xlane.f32.xlu0 %v2248
  %v2280 = vpop.xlane.xlu0 %2279
  %2281 = vadd.xlane.f32.xlu0 %v2249
  %v2282 = vpop.xlane.xlu0 %2281
  %2283 = vadd.xlane.f32.xlu0 %v2250
  %v2284 = vpop.xlane.xlu0 %2283
  %2285 = vadd.xlane.f32.xlu0 %v2251
  %v2286 = vpop.xlane.xlu0 %2285
  %2287 = vadd.xlane.f32.xlu0 %v2252
  %v2288 = vpop.xlane.xlu0 %2287
  %2289 = vadd.xlane.f32.xlu0 %v2253
  %v2290 = vpop.xlane.xlu0 %2289
  %2291 = vadd.xlane.f32.xlu0 %v2254
  %v2292 = vpop.xlane.xlu0 %2291
  %2293 = vadd.xlane.f32.xlu0 %v2255
  %v2294 = vpop.xlane.xlu0 %2293
  %2295 = vadd.xlane.f32.xlu0 %v2256
  %v2296 = vpop.xlane.xlu0 %2295
  %2297 = vadd.xlane.f32.xlu0 %v2257
  %v2298 = vpop.xlane.xlu0 %2297
  %2299 = vadd.xlane.f32.xlu0 %v2258
  %v2300 = vpop.xlane.xlu0 %2299
  %2301 = vadd.xlane.f32.xlu0 %v2259
  %v2302 = vpop.xlane.xlu0 %2301
  %2303 = vadd.xlane.f32.xlu0 %v2260
  %v2304 = vpop.xlane.xlu0 %2303
  %2305 = vadd.xlane.f32.xlu0 %v2261
  %v2306 = vpop.xlane.xlu0 %2305
  %2307 = vadd.xlane.f32.xlu0 %v2262
  %v2308 = vpop.xlane.xlu0 %2307
  %2309 = vadd.xlane.f32.xlu0 %v2263
  %v2310 = vpop.xlane.xlu0 %2309
  %2311 = vadd.xlane.f32.xlu0 %v2264
  %v2312 = vpop.xlane.xlu0 %2311
  %2313 = vadd.xlane.f32.xlu0 %v2265
  %v2314 = vpop.xlane.xlu0 %2313
  %2315 = vadd.xlane.f32.xlu0 %v2266
  %v2316 = vpop.xlane.xlu0 %2315
  %v2317 = vmul.f32 %v2268, 0.03125
  %v2318 = vmul.f32 %v2270, 0.03125
  %v2319 = vmul.f32 %v2272, 0.03125
  %v2320 = vmul.f32 %v2274, 0.03125
  %v2321 = vmul.f32 %v2276, 0.03125
  %v2322 = vmul.f32 %v2278, 0.03125
  %v2323 = vmul.f32 %v2280, 0.03125
  %v2324 = vmul.f32 %v2282, 0.03125
  %v2325 = vmul.f32 %v2284, 0.03125
  %v2326 = vmul.f32 %v2286, 0.03125
  %v2327 = vmul.f32 %v2288, 0.03125
  %v2328 = vmul.f32 %v2290, 0.03125
  %v2329 = vmul.f32 %v2292, 0.03125
  %v2330 = vmul.f32 %v2294, 0.03125
  %v2331 = vmul.f32 %v2296, 0.03125
  %v2332 = vmul.f32 %v2298, 0.03125
  %v2333 = vmul.f32 %v2300, 0.03125
  %v2334 = vmul.f32 %v2302, 0.03125
  %v2335 = vmul.f32 %v2304, 0.03125
  %v2336 = vmul.f32 %v2306, 0.03125
  %v2337 = vmul.f32 %v2308, 0.03125
  %v2338 = vmul.f32 %v2310, 0.03125
  %v2339 = vmul.f32 %v2312, 0.03125
  %v2340 = vmul.f32 %v2314, 0.03125
  %v2341 = vmul.f32 %v2316, 0.03125
  %v2342 = vmul.f32 %v2217, %v2217
  %v2343 = vmul.f32 %v2218, %v2218
  %v2344 = vmul.f32 %v2219, %v2219
  %v2345 = vmul.f32 %v2220, %v2220
  %v2346 = vmul.f32 %v2221, %v2221
  %v2347 = vmul.f32 %v2222, %v2222
  %v2348 = vmul.f32 %v2223, %v2223
  %v2349 = vmul.f32 %v2224, %v2224
  %v2350 = vmul.f32 %v2225, %v2225
  %v2351 = vmul.f32 %v2226, %v2226
  %v2352 = vmul.f32 %v2227, %v2227
  %v2353 = vmul.f32 %v2228, %v2228
  %v2354 = vmul.f32 %v2229, %v2229
  %v2355 = vmul.f32 %v2230, %v2230
  %v2356 = vmul.f32 %v2231, %v2231
  %v2357 = vmul.f32 %v2232, %v2232
  %v2358 = vmul.f32 %v2233, %v2233
  %v2359 = vmul.f32 %v2234, %v2234
  %v2360 = vmul.f32 %v2235, %v2235
  %v2361 = vmul.f32 %v2236, %v2236
  %v2362 = vmul.f32 %v2237, %v2237
  %v2363 = vmul.f32 %v2238, %v2238
  %v2364 = vmul.f32 %v2239, %v2239
  %v2365 = vmul.f32 %v2240, %v2240
  %v2366 = vmul.f32 %v2241, %v2241
  %v2367 = vsub.f32 %v2317, %v2342
  %v2368 = vsub.f32 %v2318, %v2343
  %v2369 = vsub.f32 %v2319, %v2344
  %v2370 = vsub.f32 %v2320, %v2345
  %v2371 = vsub.f32 %v2321, %v2346
  %v2372 = vsub.f32 %v2322, %v2347
  %v2373 = vsub.f32 %v2323, %v2348
  %v2374 = vsub.f32 %v2324, %v2349
  %v2375 = vsub.f32 %v2325, %v2350
  %v2376 = vsub.f32 %v2326, %v2351
  %v2377 = vsub.f32 %v2327, %v2352
  %v2378 = vsub.f32 %v2328, %v2353
  %v2379 = vsub.f32 %v2329, %v2354
  %v2380 = vsub.f32 %v2330, %v2355
  %v2381 = vsub.f32 %v2331, %v2356
  %v2382 = vsub.f32 %v2332, %v2357
  %v2383 = vsub.f32 %v2333, %v2358
  %v2384 = vsub.f32 %v2334, %v2359
  %v2385 = vsub.f32 %v2335, %v2360
  %v2386 = vsub.f32 %v2336, %v2361
  %v2387 = vsub.f32 %v2337, %v2362
  %v2388 = vsub.f32 %v2338, %v2363
  %v2389 = vsub.f32 %v2339, %v2364
  %v2390 = vsub.f32 %v2340, %v2365
  %v2391 = vsub.f32 %v2341, %v2366
  %v2392 = vmax.f32 %v2367, 0.0
  %v2393 = vmax.f32 %v2368, 0.0
  %v2394 = vmax.f32 %v2369, 0.0
  %v2395 = vmax.f32 %v2370, 0.0
  %v2396 = vmax.f32 %v2371, 0.0
  %v2397 = vmax.f32 %v2372, 0.0
  %v2398 = vmax.f32 %v2373, 0.0
  %v2399 = vmax.f32 %v2374, 0.0
  %v2400 = vmax.f32 %v2375, 0.0
  %v2401 = vmax.f32 %v2376, 0.0
  %v2402 = vmax.f32 %v2377, 0.0
  %v2403 = vmax.f32 %v2378, 0.0
  %v2404 = vmax.f32 %v2379, 0.0
  %v2405 = vmax.f32 %v2380, 0.0
  %v2406 = vmax.f32 %v2381, 0.0
  %v2407 = vmax.f32 %v2382, 0.0
  %v2408 = vmax.f32 %v2383, 0.0
  %v2409 = vmax.f32 %v2384, 0.0
  %v2410 = vmax.f32 %v2385, 0.0
  %v2411 = vmax.f32 %v2386, 0.0
  %v2412 = vmax.f32 %v2387, 0.0
  %v2413 = vmax.f32 %v2388, 0.0
  %v2414 = vmax.f32 %v2389, 0.0
  %v2415 = vmax.f32 %v2390, 0.0
  %v2416 = vmax.f32 %v2391, 0.0
  %v2417 = vsub.f32 %v2064, %v2217
  %v2418 = vsub.f32 %v2067, %v2218
  %v2419 = vsub.f32 %v2072, %v2219
  %v2420 = vsub.f32 %v2075, %v2220
  %v2421 = vsub.f32 %v2080, %v2221
  %v2422 = vsub.f32 %v2083, %v2222
  %v2423 = vsub.f32 %v2088, %v2223
  %v2424 = vsub.f32 %v2091, %v2224
  %v2425 = vsub.f32 %v2096, %v2225
  %v2426 = vsub.f32 %v2099, %v2226
  %v2427 = vsub.f32 %v2104, %v2227
  %v2428 = vsub.f32 %v2107, %v2228
  %v2429 = vsub.f32 %v2112, %v2229
  %v2430 = vsub.f32 %v2115, %v2230
  %v2431 = vsub.f32 %v2120, %v2231
  %v2432 = vsub.f32 %v2123, %v2232
  %v2433 = vsub.f32 %v2128, %v2233
  %v2434 = vsub.f32 %v2131, %v2234
  %v2435 = vsub.f32 %v2136, %v2235
  %v2436 = vsub.f32 %v2139, %v2236
  %v2437 = vsub.f32 %v2144, %v2237
  %v2438 = vsub.f32 %v2147, %v2238
  %v2439 = vsub.f32 %v2152, %v2239
  %v2440 = vsub.f32 %v2155, %v2240
  %v2441 = vsub.f32 %v2160, %v2241
  %v2442 = vadd.f32 %v2392, 1e-05
  %v2443 = vadd.f32 %v2393, 1e-05
  %v2444 = vadd.f32 %v2394, 1e-05
  %v2445 = vadd.f32 %v2395, 1e-05
  %v2446 = vadd.f32 %v2396, 1e-05
  %v2447 = vadd.f32 %v2397, 1e-05
  %v2448 = vadd.f32 %v2398, 1e-05
  %v2449 = vadd.f32 %v2399, 1e-05
  %v2450 = vadd.f32 %v2400, 1e-05
  %v2451 = vadd.f32 %v2401, 1e-05
  %v2452 = vadd.f32 %v2402, 1e-05
  %v2453 = vadd.f32 %v2403, 1e-05
  %v2454 = vadd.f32 %v2404, 1e-05
  %v2455 = vadd.f32 %v2405, 1e-05
  %v2456 = vadd.f32 %v2406, 1e-05
  %v2457 = vadd.f32 %v2407, 1e-05
  %v2458 = vadd.f32 %v2408, 1e-05
  %v2459 = vadd.f32 %v2409, 1e-05
  %v2460 = vadd.f32 %v2410, 1e-05
  %v2461 = vadd.f32 %v2411, 1e-05
  %v2462 = vadd.f32 %v2412, 1e-05
  %v2463 = vadd.f32 %v2413, 1e-05
  %v2464 = vadd.f32 %v2414, 1e-05
  %v2465 = vadd.f32 %v2415, 1e-05
  %v2466 = vadd.f32 %v2416, 1e-05
  %v2467 = vrsqrt.pop %v2442
  %v2468 = vrsqrt.pop %v2443
  %v2469 = vrsqrt.pop %v2444
  %v2470 = vrsqrt.pop %v2445
  %v2471 = vrsqrt.pop %v2446
  %v2472 = vrsqrt.pop %v2447
  %v2473 = vrsqrt.pop %v2448
  %v2474 = vrsqrt.pop %v2449
  %v2475 = vrsqrt.pop %v2450
  %v2476 = vrsqrt.pop %v2451
  %v2477 = vrsqrt.pop %v2452
  %v2478 = vrsqrt.pop %v2453
  %v2479 = vrsqrt.pop %v2454
  %v2480 = vrsqrt.pop %v2455
  %v2481 = vrsqrt.pop %v2456
  %v2482 = vrsqrt.pop %v2457
  %v2483 = vrsqrt.pop %v2458
  %v2484 = vrsqrt.pop %v2459
  %v2485 = vrsqrt.pop %v2460
  %v2486 = vrsqrt.pop %v2461
  %v2487 = vrsqrt.pop %v2462
  %v2488 = vrsqrt.pop %v2463
  %v2489 = vrsqrt.pop %v2464
  %v2490 = vrsqrt.pop %v2465
  %v2491 = vrsqrt.pop %v2466
  %v2492 = vmul.f32 %v2417, %v2467
  %v2493 = vmul.f32 %v2418, %v2468
  %v2494 = vmul.f32 %v2419, %v2469
  %v2495 = vmul.f32 %v2420, %v2470
  %v2496 = vmul.f32 %v2421, %v2471
  %v2497 = vmul.f32 %v2422, %v2472
  %v2498 = vmul.f32 %v2423, %v2473
  %v2499 = vmul.f32 %v2424, %v2474
  %v2500 = vmul.f32 %v2425, %v2475
  %v2501 = vmul.f32 %v2426, %v2476
  %v2502 = vmul.f32 %v2427, %v2477
  %v2503 = vmul.f32 %v2428, %v2478
  %v2504 = vmul.f32 %v2429, %v2479
  %v2505 = vmul.f32 %v2430, %v2480
  %v2506 = vmul.f32 %v2431, %v2481
  %v2507 = vmul.f32 %v2432, %v2482
  %v2508 = vmul.f32 %v2433, %v2483
  %v2509 = vmul.f32 %v2434, %v2484
  %v2510 = vmul.f32 %v2435, %v2485
  %v2511 = vmul.f32 %v2436, %v2486
  %v2512 = vmul.f32 %v2437, %v2487
  %v2513 = vmul.f32 %v2438, %v2488
  %v2514 = vmul.f32 %v2439, %v2489
  %v2515 = vmul.f32 %v2440, %v2490
  %v2516 = vmul.f32 %v2441, %v2491
  %v2518 = vlaneseq
  %v2519 = vshrl.u32 %v2518, 7
  %v2520 = vsub.s32 0, %v2519
  %v2521 = vrot.slane %v2165, %v2520
  %v2523 = vmul.f32 %v2492, %v2521
  %v2524 = vmul.f32 %v2493, %v2521
  %v2525 = vmul.f32 %v2494, %v2521
  %v2526 = vmul.f32 %v2495, %v2521
  %v2527 = vmul.f32 %v2496, %v2521
  %v2528 = vmul.f32 %v2497, %v2521
  %v2529 = vmul.f32 %v2498, %v2521
  %v2530 = vmul.f32 %v2499, %v2521
  %v2531 = vmul.f32 %v2500, %v2521
  %v2532 = vmul.f32 %v2501, %v2521
  %v2533 = vmul.f32 %v2502, %v2521
  %v2534 = vmul.f32 %v2503, %v2521
  %v2535 = vmul.f32 %v2504, %v2521
  %v2536 = vmul.f32 %v2505, %v2521
  %v2537 = vmul.f32 %v2506, %v2521
  %v2538 = vmul.f32 %v2507, %v2521
  %v2539 = vmul.f32 %v2508, %v2521
  %v2540 = vmul.f32 %v2509, %v2521
  %v2541 = vmul.f32 %v2510, %v2521
  %v2542 = vmul.f32 %v2511, %v2521
  %v2543 = vmul.f32 %v2512, %v2521
  %v2544 = vmul.f32 %v2513, %v2521
  %v2545 = vmul.f32 %v2514, %v2521
  %v2546 = vmul.f32 %v2515, %v2521
  %v2547 = vmul.f32 %v2516, %v2521
  %v2549 = vlaneseq
  %v2550 = vshrl.u32 %v2549, 7
  %v2551 = vsub.s32 0, %v2550
  %v2552 = vrot.slane %v2166, %v2551
  %v2554 = vadd.f32 %v2523, %v2552
  %v2555 = vadd.f32 %v2524, %v2552
  %v2556 = vadd.f32 %v2525, %v2552
  %v2557 = vadd.f32 %v2526, %v2552
  %v2558 = vadd.f32 %v2527, %v2552
  %v2559 = vadd.f32 %v2528, %v2552
  %v2560 = vadd.f32 %v2529, %v2552
  %v2561 = vadd.f32 %v2530, %v2552
  %v2562 = vadd.f32 %v2531, %v2552
  %v2563 = vadd.f32 %v2532, %v2552
  %v2564 = vadd.f32 %v2533, %v2552
  %v2565 = vadd.f32 %v2534, %v2552
  %v2566 = vadd.f32 %v2535, %v2552
  %v2567 = vadd.f32 %v2536, %v2552
  %v2568 = vadd.f32 %v2537, %v2552
  %v2569 = vadd.f32 %v2538, %v2552
  %v2570 = vadd.f32 %v2539, %v2552
  %v2571 = vadd.f32 %v2540, %v2552
  %v2572 = vadd.f32 %v2541, %v2552
  %v2573 = vadd.f32 %v2542, %v2552
  %v2574 = vadd.f32 %v2543, %v2552
  %v2575 = vadd.f32 %v2544, %v2552
  %v2576 = vadd.f32 %v2545, %v2552
  %v2577 = vadd.f32 %v2546, %v2552
  %v2578 = vadd.f32 %v2547, %v2552
  %v2579 = vmax.f32 %v2554, 0.0
  %v2580 = vmax.f32 %v2555, 0.0
  %v2581 = vmax.f32 %v2556, 0.0
  %v2582 = vmax.f32 %v2557, 0.0
  %v2583 = vmax.f32 %v2558, 0.0
  %v2584 = vmax.f32 %v2559, 0.0
  %v2585 = vmax.f32 %v2560, 0.0
  %v2586 = vmax.f32 %v2561, 0.0
  %v2587 = vmax.f32 %v2562, 0.0
  %v2588 = vmax.f32 %v2563, 0.0
  %v2589 = vmax.f32 %v2564, 0.0
  %v2590 = vmax.f32 %v2565, 0.0
  %v2591 = vmax.f32 %v2566, 0.0
  %v2592 = vmax.f32 %v2567, 0.0
  %v2593 = vmax.f32 %v2568, 0.0
  %v2594 = vmax.f32 %v2569, 0.0
  %v2595 = vmax.f32 %v2570, 0.0
  %v2596 = vmax.f32 %v2571, 0.0
  %v2597 = vmax.f32 %v2572, 0.0
  %v2598 = vmax.f32 %v2573, 0.0
  %v2599 = vmax.f32 %v2574, 0.0
  %v2600 = vmax.f32 %v2575, 0.0
  %v2601 = vmax.f32 %v2576, 0.0
  %v2602 = vmax.f32 %v2577, 0.0
  %v2603 = vmax.f32 %v2578, 0.0
  %v2604 = vpack.c.bf16 %v2580, %v2579
  %v2605 = vpack.c.bf16 %v2582, %v2581
  %v2606 = vpack.c.bf16 %v2584, %v2583
  %v2607 = vpack.c.bf16 %v2586, %v2585
  %v2608 = vpack.c.bf16 %v2588, %v2587
  %v2609 = vpack.c.bf16 %v2590, %v2589
  %v2610 = vpack.c.bf16 %v2592, %v2591
  %v2611 = vpack.c.bf16 %v2594, %v2593
  %v2612 = vpack.c.bf16 %v2596, %v2595
  %v2613 = vpack.c.bf16 %v2598, %v2597
  %v2614 = vpack.c.bf16 %v2600, %v2599
  %v2615 = vpack.c.bf16 %v2602, %v2601
  %v2616 = vpack.c.bf16 %v2603, %v2603
  %v2617 = vld [vmem:[%s15] sm:$0xf]
  %v2618 = vld [vmem:[%s15 + $0x4] sm:$0xf]
  %v2619 = vld [vmem:[%s15 + $0x8] sm:$0xf]
  %v2620 = vld [vmem:[%s15 + $0xc] sm:$0xf]
  %v2621 = vld [vmem:[%s15 + $0x10] sm:$0xf]
  %v2622 = vld [vmem:[%s15 + $0x14] sm:$0xf]
  %v2623 = vld [vmem:[%s15 + $0x18] sm:$0xf]
  %v2624 = vld [vmem:[%s15 + $0x1c] sm:$0xf]
  %v2625 = vld [vmem:[%s15 + $0x20] sm:$0xf]
  %v2626 = vld [vmem:[%s15 + $0x24] sm:$0xf]
  %v2627 = vld [vmem:[%s15 + $0x28] sm:$0xf]
  %v2628 = vld [vmem:[%s15 + $0x2c] sm:$0xf]
  %v2629 = vld [vmem:[%s15 + $0x30] sm:$0xf]
  %v2630 = vld [vmem:[%s15 + $0x34] sm:$0xf]
  %v2631 = vld [vmem:[%s15 + $0x38] sm:$0xf]
  %v2632 = vld [vmem:[%s15 + $0x3c] sm:$0xf]
  %v2633 = vld [vmem:[%s16] sm:$0x1]
  %v2635 = vlaneseq
  %v2636 = vshrl.u32 %v2635, 7
  %v2637 = vsub.s32 0, %v2636
  %v2638 = vrot.slane %v2633, %v2637
  %v2656 = vunpack.c.l.b16 %v2617
  %v2657 = vunpack.c.l.b16 %v2618
  %v2658 = vunpack.c.l.b16 %v2619
  %v2659 = vunpack.c.l.b16 %v2620
  %v2660 = vunpack.c.l.b16 %v2621
  %v2661 = vunpack.c.l.b16 %v2622
  %v2662 = vunpack.c.l.b16 %v2623
  %v2663 = vunpack.c.l.b16 %v2624
  %v2664 = vunpack.c.l.b16 %v2625
  %v2665 = vunpack.c.l.b16 %v2626
  %v2666 = vunpack.c.l.b16 %v2627
  %v2667 = vunpack.c.l.b16 %v2628
  %v2668 = vunpack.c.l.b16 %v2629
  %v2669 = vunpack.c.l.b16 %v2630
  %v2670 = vunpack.c.l.b16 %v2631
  %v2671 = vunpack.c.l.b16 %v2632
  %v2672 = vpack.c.b16 %v2657, %v2656
  %v2673 = vpack.c.b16 %v2659, %v2658
  %v2674 = vpack.c.b16 %v2661, %v2660
  %v2675 = vpack.c.b16 %v2663, %v2662
  %v2676 = vpack.c.b16 %v2665, %v2664
  %v2677 = vpack.c.b16 %v2667, %v2666
  %v2678 = vpack.c.b16 %v2669, %v2668
  %v2679 = vpack.c.b16 %v2671, %v2670
  %2688 = vmatprep.subr.bf16.mxu0 0
  %2689 = vmatpush1.bf16.msra.mxu0 %v2679
  %2690 = vmatprep.subr.bf16.mxu0 0
  %2691 = vmatpush1.bf16.msra.mxu0 %v2678
  %2692 = vmatprep.subr.bf16.mxu0 0
  %2693 = vmatpush1.bf16.msra.mxu0 %v2677
  %2694 = vmatprep.subr.bf16.mxu0 0
  %2695 = vmatpush1.bf16.msra.mxu0 %v2676
  %2696 = vmatprep.subr.bf16.mxu0 0
  %2697 = vmatpush1.bf16.msra.mxu0 %v2675
  %2698 = vmatprep.subr.bf16.mxu0 0
  %2699 = vmatpush1.bf16.msra.mxu0 %v2674
  %2700 = vmatprep.subr.bf16.mxu0 0
  %2701 = vmatpush1.bf16.msra.mxu0 %v2673
  %2702 = vmatprep.subr.bf16.mxu0 0
  %2703 = vmatpush1.bf16.msra.mxu0 %v2672
  %2704 = vmatprep.subr.bf16.mxu0 0
  %2705 = vmatpush2.bf16.msra.mxu0 0
  %2706 = vmatprep.subr.bf16.mxu0 0
  %2707 = vmatpush2.bf16.msra.mxu0 0
  %2708 = vmatprep.subr.bf16.mxu0 0
  %2709 = vmatpush2.bf16.msra.mxu0 0
  %2710 = vmatprep.subr.bf16.mxu0 0
  %2711 = vmatpush2.bf16.msra.mxu0 0
  %2712 = vmatprep.subr.bf16.mxu0 0
  %2713 = vmatpush2.bf16.msra.mxu0 0
  %2714 = vmatprep.subr.bf16.mxu0 0
  %2715 = vmatpush2.bf16.msra.mxu0 0
  %2716 = vmatprep.subr.bf16.mxu0 0
  %2717 = vmatpush2.bf16.msra.mxu0 0
  %2718 = vmatprep.subr.bf16.mxu0 0
  %2719 = vmatpush2.bf16.msra.mxu0 0
  %2720 = vmatprep.mubr.bf16.mxu0 0
  %2721 = vmatmul.mubr.bf16.gmra.mxu0 %v2604
  %v2722 = vpop.f32.mrf.mxu0
  %v2723 = vadd.f32 %v2638, %v2722
  %v2724 = vpop.f32.mrf.mxu0
  %v2725 = vpop.f32.mrf.mxu0
  %v2726 = vadd.f32 %v2638, %v2725
  %v2727 = vpop.f32.mrf.mxu0
  %2728 = vmatprep.mubr.bf16.mxu0 0
  %2729 = vmatmul.mubr.bf16.gmra.mxu0 %v2605
  %v2730 = vpop.f32.mrf.mxu0
  %v2731 = vadd.f32 %v2638, %v2730
  %v2732 = vpop.f32.mrf.mxu0
  %v2733 = vpop.f32.mrf.mxu0
  %v2734 = vadd.f32 %v2638, %v2733
  %v2735 = vpop.f32.mrf.mxu0
  %2736 = vmatprep.mubr.bf16.mxu0 0
  %2737 = vmatmul.mubr.bf16.gmra.mxu0 %v2606
  %v2738 = vpop.f32.mrf.mxu0
  %v2739 = vadd.f32 %v2638, %v2738
  %v2740 = vpop.f32.mrf.mxu0
  %v2741 = vpop.f32.mrf.mxu0
  %v2742 = vadd.f32 %v2638, %v2741
  %v2743 = vpop.f32.mrf.mxu0
  %2744 = vmatprep.mubr.bf16.mxu0 0
  %2745 = vmatmul.mubr.bf16.gmra.mxu0 %v2607
  %v2746 = vpop.f32.mrf.mxu0
  %v2747 = vadd.f32 %v2638, %v2746
  %v2748 = vpop.f32.mrf.mxu0
  %v2749 = vpop.f32.mrf.mxu0
  %v2750 = vadd.f32 %v2638, %v2749
  %v2751 = vpop.f32.mrf.mxu0
  %2752 = vmatprep.mubr.bf16.mxu0 0
  %2753 = vmatmul.mubr.bf16.gmra.mxu0 %v2608
  %v2754 = vpop.f32.mrf.mxu0
  %v2755 = vadd.f32 %v2638, %v2754
  %v2756 = vpop.f32.mrf.mxu0
  %v2757 = vpop.f32.mrf.mxu0
  %v2758 = vadd.f32 %v2638, %v2757
  %v2759 = vpop.f32.mrf.mxu0
  %2760 = vmatprep.mubr.bf16.mxu0 0
  %2761 = vmatmul.mubr.bf16.gmra.mxu0 %v2609
  %v2762 = vpop.f32.mrf.mxu0
  %v2763 = vadd.f32 %v2638, %v2762
  %v2764 = vpop.f32.mrf.mxu0
  %v2765 = vpop.f32.mrf.mxu0
  %v2766 = vadd.f32 %v2638, %v2765
  %v2767 = vpop.f32.mrf.mxu0
  %2768 = vmatprep.mubr.bf16.mxu0 0
  %2769 = vmatmul.mubr.bf16.gmra.mxu0 %v2610
  %v2770 = vpop.f32.mrf.mxu0
  %v2771 = vadd.f32 %v2638, %v2770
  %v2772 = vpop.f32.mrf.mxu0
  %v2773 = vpop.f32.mrf.mxu0
  %v2774 = vadd.f32 %v2638, %v2773
  %v2775 = vpop.f32.mrf.mxu0
  %2776 = vmatprep.mubr.bf16.mxu0 0
  %2777 = vmatmul.mubr.bf16.gmra.mxu0 %v2611
  %v2778 = vpop.f32.mrf.mxu0
  %v2779 = vadd.f32 %v2638, %v2778
  %v2780 = vpop.f32.mrf.mxu0
  %v2781 = vpop.f32.mrf.mxu0
  %v2782 = vadd.f32 %v2638, %v2781
  %v2783 = vpop.f32.mrf.mxu0
  %2784 = vmatprep.mubr.bf16.mxu0 0
  %2785 = vmatmul.mubr.bf16.gmra.mxu0 %v2612
  %v2786 = vpop.f32.mrf.mxu0
  %v2787 = vadd.f32 %v2638, %v2786
  %v2788 = vpop.f32.mrf.mxu0
  %v2789 = vpop.f32.mrf.mxu0
  %v2790 = vadd.f32 %v2638, %v2789
  %v2791 = vpop.f32.mrf.mxu0
  %2792 = vmatprep.mubr.bf16.mxu0 0
  %2793 = vmatmul.mubr.bf16.gmra.mxu0 %v2613
  %v2794 = vpop.f32.mrf.mxu0
  %v2795 = vadd.f32 %v2638, %v2794
  %v2796 = vpop.f32.mrf.mxu0
  %v2797 = vpop.f32.mrf.mxu0
  %v2798 = vadd.f32 %v2638, %v2797
  %v2799 = vpop.f32.mrf.mxu0
  %2800 = vmatprep.mubr.bf16.mxu0 0
  %2801 = vmatmul.mubr.bf16.gmra.mxu0 %v2614
  %v2802 = vpop.f32.mrf.mxu0
  %v2803 = vadd.f32 %v2638, %v2802
  %v2804 = vpop.f32.mrf.mxu0
  %v2805 = vpop.f32.mrf.mxu0
  %v2806 = vadd.f32 %v2638, %v2805
  %v2807 = vpop.f32.mrf.mxu0
  %2808 = vmatprep.mubr.bf16.mxu0 0
  %2809 = vmatmul.mubr.bf16.gmra.mxu0 %v2615
  %v2810 = vpop.f32.mrf.mxu0
  %v2811 = vadd.f32 %v2638, %v2810
  %v2812 = vpop.f32.mrf.mxu0
  %v2813 = vpop.f32.mrf.mxu0
  %v2814 = vadd.f32 %v2638, %v2813
  %v2815 = vpop.f32.mrf.mxu0
  %2816 = vmatprep.mubr.bf16.mxu0 0
  %2817 = vmatmul.mubr.bf16.gmra.mxu0 %v2616
  %v2818 = vpop.f32.mrf.mxu0
  %v2819 = vadd.f32 %v2638, %v2818
  %v2820 = vpop.f32.mrf.mxu0
  %v2821 = vpop.f32.mrf.mxu0
  %v2822 = vpop.f32.mrf.mxu0
  %2823 = vdwg.mxu0
  %v2824 = vld [vmem:[%s17] sm:$0x1]
  %v2825 = vld [vmem:[%s18] sm:$0x1]
  %2826 = vadd.xlane.f32.xlu0 %v2723
  %v2827 = vpop.xlane.xlu0 %2826
  %2828 = vadd.xlane.f32.xlu0 %v2726
  %v2829 = vpop.xlane.xlu0 %2828
  %2830 = vadd.xlane.f32.xlu0 %v2731
  %v2831 = vpop.xlane.xlu0 %2830
  %2832 = vadd.xlane.f32.xlu0 %v2734
  %v2833 = vpop.xlane.xlu0 %2832
  %2834 = vadd.xlane.f32.xlu0 %v2739
  %v2835 = vpop.xlane.xlu0 %2834
  %2836 = vadd.xlane.f32.xlu0 %v2742
  %v2837 = vpop.xlane.xlu0 %2836
  %2838 = vadd.xlane.f32.xlu0 %v2747
  %v2839 = vpop.xlane.xlu0 %2838
  %2840 = vadd.xlane.f32.xlu0 %v2750
  %v2841 = vpop.xlane.xlu0 %2840
  %2842 = vadd.xlane.f32.xlu0 %v2755
  %v2843 = vpop.xlane.xlu0 %2842
  %2844 = vadd.xlane.f32.xlu0 %v2758
  %v2845 = vpop.xlane.xlu0 %2844
  %2846 = vadd.xlane.f32.xlu0 %v2763
  %v2847 = vpop.xlane.xlu0 %2846
  %2848 = vadd.xlane.f32.xlu0 %v2766
  %v2849 = vpop.xlane.xlu0 %2848
  %2850 = vadd.xlane.f32.xlu0 %v2771
  %v2851 = vpop.xlane.xlu0 %2850
  %2852 = vadd.xlane.f32.xlu0 %v2774
  %v2853 = vpop.xlane.xlu0 %2852
  %2854 = vadd.xlane.f32.xlu0 %v2779
  %v2855 = vpop.xlane.xlu0 %2854
  %2856 = vadd.xlane.f32.xlu0 %v2782
  %v2857 = vpop.xlane.xlu0 %2856
  %2858 = vadd.xlane.f32.xlu0 %v2787
  %v2859 = vpop.xlane.xlu0 %2858
  %2860 = vadd.xlane.f32.xlu0 %v2790
  %v2861 = vpop.xlane.xlu0 %2860
  %2862 = vadd.xlane.f32.xlu0 %v2795
  %v2863 = vpop.xlane.xlu0 %2862
  %2864 = vadd.xlane.f32.xlu0 %v2798
  %v2865 = vpop.xlane.xlu0 %2864
  %2866 = vadd.xlane.f32.xlu0 %v2803
  %v2867 = vpop.xlane.xlu0 %2866
  %2868 = vadd.xlane.f32.xlu0 %v2806
  %v2869 = vpop.xlane.xlu0 %2868
  %2870 = vadd.xlane.f32.xlu0 %v2811
  %v2871 = vpop.xlane.xlu0 %2870
  %2872 = vadd.xlane.f32.xlu0 %v2814
  %v2873 = vpop.xlane.xlu0 %2872
  %2874 = vadd.xlane.f32.xlu0 %v2819
  %v2875 = vpop.xlane.xlu0 %2874
  %v2876 = vmul.f32 %v2827, 0.03125
  %v2877 = vmul.f32 %v2829, 0.03125
  %v2878 = vmul.f32 %v2831, 0.03125
  %v2879 = vmul.f32 %v2833, 0.03125
  %v2880 = vmul.f32 %v2835, 0.03125
  %v2881 = vmul.f32 %v2837, 0.03125
  %v2882 = vmul.f32 %v2839, 0.03125
  %v2883 = vmul.f32 %v2841, 0.03125
  %v2884 = vmul.f32 %v2843, 0.03125
  %v2885 = vmul.f32 %v2845, 0.03125
  %v2886 = vmul.f32 %v2847, 0.03125
  %v2887 = vmul.f32 %v2849, 0.03125
  %v2888 = vmul.f32 %v2851, 0.03125
  %v2889 = vmul.f32 %v2853, 0.03125
  %v2890 = vmul.f32 %v2855, 0.03125
  %v2891 = vmul.f32 %v2857, 0.03125
  %v2892 = vmul.f32 %v2859, 0.03125
  %v2893 = vmul.f32 %v2861, 0.03125
  %v2894 = vmul.f32 %v2863, 0.03125
  %v2895 = vmul.f32 %v2865, 0.03125
  %v2896 = vmul.f32 %v2867, 0.03125
  %v2897 = vmul.f32 %v2869, 0.03125
  %v2898 = vmul.f32 %v2871, 0.03125
  %v2899 = vmul.f32 %v2873, 0.03125
  %v2900 = vmul.f32 %v2875, 0.03125
  %v2901 = vmul.f32 %v2723, %v2723
  %v2902 = vmul.f32 %v2726, %v2726
  %v2903 = vmul.f32 %v2731, %v2731
  %v2904 = vmul.f32 %v2734, %v2734
  %v2905 = vmul.f32 %v2739, %v2739
  %v2906 = vmul.f32 %v2742, %v2742
  %v2907 = vmul.f32 %v2747, %v2747
  %v2908 = vmul.f32 %v2750, %v2750
  %v2909 = vmul.f32 %v2755, %v2755
  %v2910 = vmul.f32 %v2758, %v2758
  %v2911 = vmul.f32 %v2763, %v2763
  %v2912 = vmul.f32 %v2766, %v2766
  %v2913 = vmul.f32 %v2771, %v2771
  %v2914 = vmul.f32 %v2774, %v2774
  %v2915 = vmul.f32 %v2779, %v2779
  %v2916 = vmul.f32 %v2782, %v2782
  %v2917 = vmul.f32 %v2787, %v2787
  %v2918 = vmul.f32 %v2790, %v2790
  %v2919 = vmul.f32 %v2795, %v2795
  %v2920 = vmul.f32 %v2798, %v2798
  %v2921 = vmul.f32 %v2803, %v2803
  %v2922 = vmul.f32 %v2806, %v2806
  %v2923 = vmul.f32 %v2811, %v2811
  %v2924 = vmul.f32 %v2814, %v2814
  %v2925 = vmul.f32 %v2819, %v2819
  %2926 = vadd.xlane.f32.xlu0 %v2901
  %v2927 = vpop.xlane.xlu0 %2926
  %2928 = vadd.xlane.f32.xlu0 %v2902
  %v2929 = vpop.xlane.xlu0 %2928
  %2930 = vadd.xlane.f32.xlu0 %v2903
  %v2931 = vpop.xlane.xlu0 %2930
  %2932 = vadd.xlane.f32.xlu0 %v2904
  %v2933 = vpop.xlane.xlu0 %2932
  %2934 = vadd.xlane.f32.xlu0 %v2905
  %v2935 = vpop.xlane.xlu0 %2934
  %2936 = vadd.xlane.f32.xlu0 %v2906
  %v2937 = vpop.xlane.xlu0 %2936
  %2938 = vadd.xlane.f32.xlu0 %v2907
  %v2939 = vpop.xlane.xlu0 %2938
  %2940 = vadd.xlane.f32.xlu0 %v2908
  %v2941 = vpop.xlane.xlu0 %2940
  %2942 = vadd.xlane.f32.xlu0 %v2909
  %v2943 = vpop.xlane.xlu0 %2942
  %2944 = vadd.xlane.f32.xlu0 %v2910
  %v2945 = vpop.xlane.xlu0 %2944
  %2946 = vadd.xlane.f32.xlu0 %v2911
  %v2947 = vpop.xlane.xlu0 %2946
  %2948 = vadd.xlane.f32.xlu0 %v2912
  %v2949 = vpop.xlane.xlu0 %2948
  %2950 = vadd.xlane.f32.xlu0 %v2913
  %v2951 = vpop.xlane.xlu0 %2950
  %2952 = vadd.xlane.f32.xlu0 %v2914
  %v2953 = vpop.xlane.xlu0 %2952
  %2954 = vadd.xlane.f32.xlu0 %v2915
  %v2955 = vpop.xlane.xlu0 %2954
  %2956 = vadd.xlane.f32.xlu0 %v2916
  %v2957 = vpop.xlane.xlu0 %2956
  %2958 = vadd.xlane.f32.xlu0 %v2917
  %v2959 = vpop.xlane.xlu0 %2958
  %2960 = vadd.xlane.f32.xlu0 %v2918
  %v2961 = vpop.xlane.xlu0 %2960
  %2962 = vadd.xlane.f32.xlu0 %v2919
  %v2963 = vpop.xlane.xlu0 %2962
  %2964 = vadd.xlane.f32.xlu0 %v2920
  %v2965 = vpop.xlane.xlu0 %2964
  %2966 = vadd.xlane.f32.xlu0 %v2921
  %v2967 = vpop.xlane.xlu0 %2966
  %2968 = vadd.xlane.f32.xlu0 %v2922
  %v2969 = vpop.xlane.xlu0 %2968
  %2970 = vadd.xlane.f32.xlu0 %v2923
  %v2971 = vpop.xlane.xlu0 %2970
  %2972 = vadd.xlane.f32.xlu0 %v2924
  %v2973 = vpop.xlane.xlu0 %2972
  %2974 = vadd.xlane.f32.xlu0 %v2925
  %v2975 = vpop.xlane.xlu0 %2974
  %v2976 = vmul.f32 %v2927, 0.03125
  %v2977 = vmul.f32 %v2929, 0.03125
  %v2978 = vmul.f32 %v2931, 0.03125
  %v2979 = vmul.f32 %v2933, 0.03125
  %v2980 = vmul.f32 %v2935, 0.03125
  %v2981 = vmul.f32 %v2937, 0.03125
  %v2982 = vmul.f32 %v2939, 0.03125
  %v2983 = vmul.f32 %v2941, 0.03125
  %v2984 = vmul.f32 %v2943, 0.03125
  %v2985 = vmul.f32 %v2945, 0.03125
  %v2986 = vmul.f32 %v2947, 0.03125
  %v2987 = vmul.f32 %v2949, 0.03125
  %v2988 = vmul.f32 %v2951, 0.03125
  %v2989 = vmul.f32 %v2953, 0.03125
  %v2990 = vmul.f32 %v2955, 0.03125
  %v2991 = vmul.f32 %v2957, 0.03125
  %v2992 = vmul.f32 %v2959, 0.03125
  %v2993 = vmul.f32 %v2961, 0.03125
  %v2994 = vmul.f32 %v2963, 0.03125
  %v2995 = vmul.f32 %v2965, 0.03125
  %v2996 = vmul.f32 %v2967, 0.03125
  %v2997 = vmul.f32 %v2969, 0.03125
  %v2998 = vmul.f32 %v2971, 0.03125
  %v2999 = vmul.f32 %v2973, 0.03125
  %v3000 = vmul.f32 %v2975, 0.03125
  %v3001 = vmul.f32 %v2876, %v2876
  %v3002 = vmul.f32 %v2877, %v2877
  %v3003 = vmul.f32 %v2878, %v2878
  %v3004 = vmul.f32 %v2879, %v2879
  %v3005 = vmul.f32 %v2880, %v2880
  %v3006 = vmul.f32 %v2881, %v2881
  %v3007 = vmul.f32 %v2882, %v2882
  %v3008 = vmul.f32 %v2883, %v2883
  %v3009 = vmul.f32 %v2884, %v2884
  %v3010 = vmul.f32 %v2885, %v2885
  %v3011 = vmul.f32 %v2886, %v2886
  %v3012 = vmul.f32 %v2887, %v2887
  %v3013 = vmul.f32 %v2888, %v2888
  %v3014 = vmul.f32 %v2889, %v2889
  %v3015 = vmul.f32 %v2890, %v2890
  %v3016 = vmul.f32 %v2891, %v2891
  %v3017 = vmul.f32 %v2892, %v2892
  %v3018 = vmul.f32 %v2893, %v2893
  %v3019 = vmul.f32 %v2894, %v2894
  %v3020 = vmul.f32 %v2895, %v2895
  %v3021 = vmul.f32 %v2896, %v2896
  %v3022 = vmul.f32 %v2897, %v2897
  %v3023 = vmul.f32 %v2898, %v2898
  %v3024 = vmul.f32 %v2899, %v2899
  %v3025 = vmul.f32 %v2900, %v2900
  %v3026 = vsub.f32 %v2976, %v3001
  %v3027 = vsub.f32 %v2977, %v3002
  %v3028 = vsub.f32 %v2978, %v3003
  %v3029 = vsub.f32 %v2979, %v3004
  %v3030 = vsub.f32 %v2980, %v3005
  %v3031 = vsub.f32 %v2981, %v3006
  %v3032 = vsub.f32 %v2982, %v3007
  %v3033 = vsub.f32 %v2983, %v3008
  %v3034 = vsub.f32 %v2984, %v3009
  %v3035 = vsub.f32 %v2985, %v3010
  %v3036 = vsub.f32 %v2986, %v3011
  %v3037 = vsub.f32 %v2987, %v3012
  %v3038 = vsub.f32 %v2988, %v3013
  %v3039 = vsub.f32 %v2989, %v3014
  %v3040 = vsub.f32 %v2990, %v3015
  %v3041 = vsub.f32 %v2991, %v3016
  %v3042 = vsub.f32 %v2992, %v3017
  %v3043 = vsub.f32 %v2993, %v3018
  %v3044 = vsub.f32 %v2994, %v3019
  %v3045 = vsub.f32 %v2995, %v3020
  %v3046 = vsub.f32 %v2996, %v3021
  %v3047 = vsub.f32 %v2997, %v3022
  %v3048 = vsub.f32 %v2998, %v3023
  %v3049 = vsub.f32 %v2999, %v3024
  %v3050 = vsub.f32 %v3000, %v3025
  %v3051 = vmax.f32 %v3026, 0.0
  %v3052 = vmax.f32 %v3027, 0.0
  %v3053 = vmax.f32 %v3028, 0.0
  %v3054 = vmax.f32 %v3029, 0.0
  %v3055 = vmax.f32 %v3030, 0.0
  %v3056 = vmax.f32 %v3031, 0.0
  %v3057 = vmax.f32 %v3032, 0.0
  %v3058 = vmax.f32 %v3033, 0.0
  %v3059 = vmax.f32 %v3034, 0.0
  %v3060 = vmax.f32 %v3035, 0.0
  %v3061 = vmax.f32 %v3036, 0.0
  %v3062 = vmax.f32 %v3037, 0.0
  %v3063 = vmax.f32 %v3038, 0.0
  %v3064 = vmax.f32 %v3039, 0.0
  %v3065 = vmax.f32 %v3040, 0.0
  %v3066 = vmax.f32 %v3041, 0.0
  %v3067 = vmax.f32 %v3042, 0.0
  %v3068 = vmax.f32 %v3043, 0.0
  %v3069 = vmax.f32 %v3044, 0.0
  %v3070 = vmax.f32 %v3045, 0.0
  %v3071 = vmax.f32 %v3046, 0.0
  %v3072 = vmax.f32 %v3047, 0.0
  %v3073 = vmax.f32 %v3048, 0.0
  %v3074 = vmax.f32 %v3049, 0.0
  %v3075 = vmax.f32 %v3050, 0.0
  %v3076 = vsub.f32 %v2723, %v2876
  %v3077 = vsub.f32 %v2726, %v2877
  %v3078 = vsub.f32 %v2731, %v2878
  %v3079 = vsub.f32 %v2734, %v2879
  %v3080 = vsub.f32 %v2739, %v2880
  %v3081 = vsub.f32 %v2742, %v2881
  %v3082 = vsub.f32 %v2747, %v2882
  %v3083 = vsub.f32 %v2750, %v2883
  %v3084 = vsub.f32 %v2755, %v2884
  %v3085 = vsub.f32 %v2758, %v2885
  %v3086 = vsub.f32 %v2763, %v2886
  %v3087 = vsub.f32 %v2766, %v2887
  %v3088 = vsub.f32 %v2771, %v2888
  %v3089 = vsub.f32 %v2774, %v2889
  %v3090 = vsub.f32 %v2779, %v2890
  %v3091 = vsub.f32 %v2782, %v2891
  %v3092 = vsub.f32 %v2787, %v2892
  %v3093 = vsub.f32 %v2790, %v2893
  %v3094 = vsub.f32 %v2795, %v2894
  %v3095 = vsub.f32 %v2798, %v2895
  %v3096 = vsub.f32 %v2803, %v2896
  %v3097 = vsub.f32 %v2806, %v2897
  %v3098 = vsub.f32 %v2811, %v2898
  %v3099 = vsub.f32 %v2814, %v2899
  %v3100 = vsub.f32 %v2819, %v2900
  %v3101 = vadd.f32 %v3051, 1e-05
  %v3102 = vadd.f32 %v3052, 1e-05
  %v3103 = vadd.f32 %v3053, 1e-05
  %v3104 = vadd.f32 %v3054, 1e-05
  %v3105 = vadd.f32 %v3055, 1e-05
  %v3106 = vadd.f32 %v3056, 1e-05
  %v3107 = vadd.f32 %v3057, 1e-05
  %v3108 = vadd.f32 %v3058, 1e-05
  %v3109 = vadd.f32 %v3059, 1e-05
  %v3110 = vadd.f32 %v3060, 1e-05
  %v3111 = vadd.f32 %v3061, 1e-05
  %v3112 = vadd.f32 %v3062, 1e-05
  %v3113 = vadd.f32 %v3063, 1e-05
  %v3114 = vadd.f32 %v3064, 1e-05
  %v3115 = vadd.f32 %v3065, 1e-05
  %v3116 = vadd.f32 %v3066, 1e-05
  %v3117 = vadd.f32 %v3067, 1e-05
  %v3118 = vadd.f32 %v3068, 1e-05
  %v3119 = vadd.f32 %v3069, 1e-05
  %v3120 = vadd.f32 %v3070, 1e-05
  %v3121 = vadd.f32 %v3071, 1e-05
  %v3122 = vadd.f32 %v3072, 1e-05
  %v3123 = vadd.f32 %v3073, 1e-05
  %v3124 = vadd.f32 %v3074, 1e-05
  %v3125 = vadd.f32 %v3075, 1e-05
  %v3126 = vrsqrt.pop %v3101
  %v3127 = vrsqrt.pop %v3102
  %v3128 = vrsqrt.pop %v3103
  %v3129 = vrsqrt.pop %v3104
  %v3130 = vrsqrt.pop %v3105
  %v3131 = vrsqrt.pop %v3106
  %v3132 = vrsqrt.pop %v3107
  %v3133 = vrsqrt.pop %v3108
  %v3134 = vrsqrt.pop %v3109
  %v3135 = vrsqrt.pop %v3110
  %v3136 = vrsqrt.pop %v3111
  %v3137 = vrsqrt.pop %v3112
  %v3138 = vrsqrt.pop %v3113
  %v3139 = vrsqrt.pop %v3114
  %v3140 = vrsqrt.pop %v3115
  %v3141 = vrsqrt.pop %v3116
  %v3142 = vrsqrt.pop %v3117
  %v3143 = vrsqrt.pop %v3118
  %v3144 = vrsqrt.pop %v3119
  %v3145 = vrsqrt.pop %v3120
  %v3146 = vrsqrt.pop %v3121
  %v3147 = vrsqrt.pop %v3122
  %v3148 = vrsqrt.pop %v3123
  %v3149 = vrsqrt.pop %v3124
  %v3150 = vrsqrt.pop %v3125
  %v3151 = vmul.f32 %v3076, %v3126
  %v3152 = vmul.f32 %v3077, %v3127
  %v3153 = vmul.f32 %v3078, %v3128
  %v3154 = vmul.f32 %v3079, %v3129
  %v3155 = vmul.f32 %v3080, %v3130
  %v3156 = vmul.f32 %v3081, %v3131
  %v3157 = vmul.f32 %v3082, %v3132
  %v3158 = vmul.f32 %v3083, %v3133
  %v3159 = vmul.f32 %v3084, %v3134
  %v3160 = vmul.f32 %v3085, %v3135
  %v3161 = vmul.f32 %v3086, %v3136
  %v3162 = vmul.f32 %v3087, %v3137
  %v3163 = vmul.f32 %v3088, %v3138
  %v3164 = vmul.f32 %v3089, %v3139
  %v3165 = vmul.f32 %v3090, %v3140
  %v3166 = vmul.f32 %v3091, %v3141
  %v3167 = vmul.f32 %v3092, %v3142
  %v3168 = vmul.f32 %v3093, %v3143
  %v3169 = vmul.f32 %v3094, %v3144
  %v3170 = vmul.f32 %v3095, %v3145
  %v3171 = vmul.f32 %v3096, %v3146
  %v3172 = vmul.f32 %v3097, %v3147
  %v3173 = vmul.f32 %v3098, %v3148
  %v3174 = vmul.f32 %v3099, %v3149
  %v3175 = vmul.f32 %v3100, %v3150
  %v3177 = vlaneseq
  %v3178 = vshrl.u32 %v3177, 7
  %v3179 = vsub.s32 0, %v3178
  %v3180 = vrot.slane %v2824, %v3179
  %v3182 = vmul.f32 %v3151, %v3180
  %v3183 = vmul.f32 %v3152, %v3180
  %v3184 = vmul.f32 %v3153, %v3180
  %v3185 = vmul.f32 %v3154, %v3180
  %v3186 = vmul.f32 %v3155, %v3180
  %v3187 = vmul.f32 %v3156, %v3180
  %v3188 = vmul.f32 %v3157, %v3180
  %v3189 = vmul.f32 %v3158, %v3180
  %v3190 = vmul.f32 %v3159, %v3180
  %v3191 = vmul.f32 %v3160, %v3180
  %v3192 = vmul.f32 %v3161, %v3180
  %v3193 = vmul.f32 %v3162, %v3180
  %v3194 = vmul.f32 %v3163, %v3180
  %v3195 = vmul.f32 %v3164, %v3180
  %v3196 = vmul.f32 %v3165, %v3180
  %v3197 = vmul.f32 %v3166, %v3180
  %v3198 = vmul.f32 %v3167, %v3180
  %v3199 = vmul.f32 %v3168, %v3180
  %v3200 = vmul.f32 %v3169, %v3180
  %v3201 = vmul.f32 %v3170, %v3180
  %v3202 = vmul.f32 %v3171, %v3180
  %v3203 = vmul.f32 %v3172, %v3180
  %v3204 = vmul.f32 %v3173, %v3180
  %v3205 = vmul.f32 %v3174, %v3180
  %v3206 = vmul.f32 %v3175, %v3180
  %v3208 = vlaneseq
  %v3209 = vshrl.u32 %v3208, 7
  %v3210 = vsub.s32 0, %v3209
  %v3211 = vrot.slane %v2825, %v3210
  %v3213 = vadd.f32 %v3182, %v3211
  %v3214 = vadd.f32 %v3183, %v3211
  %v3215 = vadd.f32 %v3184, %v3211
  %v3216 = vadd.f32 %v3185, %v3211
  %v3217 = vadd.f32 %v3186, %v3211
  %v3218 = vadd.f32 %v3187, %v3211
  %v3219 = vadd.f32 %v3188, %v3211
  %v3220 = vadd.f32 %v3189, %v3211
  %v3221 = vadd.f32 %v3190, %v3211
  %v3222 = vadd.f32 %v3191, %v3211
  %v3223 = vadd.f32 %v3192, %v3211
  %v3224 = vadd.f32 %v3193, %v3211
  %v3225 = vadd.f32 %v3194, %v3211
  %v3226 = vadd.f32 %v3195, %v3211
  %v3227 = vadd.f32 %v3196, %v3211
  %v3228 = vadd.f32 %v3197, %v3211
  %v3229 = vadd.f32 %v3198, %v3211
  %v3230 = vadd.f32 %v3199, %v3211
  %v3231 = vadd.f32 %v3200, %v3211
  %v3232 = vadd.f32 %v3201, %v3211
  %v3233 = vadd.f32 %v3202, %v3211
  %v3234 = vadd.f32 %v3203, %v3211
  %v3235 = vadd.f32 %v3204, %v3211
  %v3236 = vadd.f32 %v3205, %v3211
  %v3237 = vadd.f32 %v3206, %v3211
  %v3238 = vmax.f32 %v3213, 0.0
  %v3239 = vmax.f32 %v3214, 0.0
  %v3240 = vmax.f32 %v3215, 0.0
  %v3241 = vmax.f32 %v3216, 0.0
  %v3242 = vmax.f32 %v3217, 0.0
  %v3243 = vmax.f32 %v3218, 0.0
  %v3244 = vmax.f32 %v3219, 0.0
  %v3245 = vmax.f32 %v3220, 0.0
  %v3246 = vmax.f32 %v3221, 0.0
  %v3247 = vmax.f32 %v3222, 0.0
  %v3248 = vmax.f32 %v3223, 0.0
  %v3249 = vmax.f32 %v3224, 0.0
  %v3250 = vmax.f32 %v3225, 0.0
  %v3251 = vmax.f32 %v3226, 0.0
  %v3252 = vmax.f32 %v3227, 0.0
  %v3253 = vmax.f32 %v3228, 0.0
  %v3254 = vmax.f32 %v3229, 0.0
  %v3255 = vmax.f32 %v3230, 0.0
  %v3256 = vmax.f32 %v3231, 0.0
  %v3257 = vmax.f32 %v3232, 0.0
  %v3258 = vmax.f32 %v3233, 0.0
  %v3259 = vmax.f32 %v3234, 0.0
  %v3260 = vmax.f32 %v3235, 0.0
  %v3261 = vmax.f32 %v3236, 0.0
  %v3262 = vmax.f32 %v3237, 0.0
  %v3263 = vpack.c.bf16 %v3239, %v3238
  %v3264 = vpack.c.bf16 %v3241, %v3240
  %v3265 = vpack.c.bf16 %v3243, %v3242
  %v3266 = vpack.c.bf16 %v3245, %v3244
  %v3267 = vpack.c.bf16 %v3247, %v3246
  %v3268 = vpack.c.bf16 %v3249, %v3248
  %v3269 = vpack.c.bf16 %v3251, %v3250
  %v3270 = vpack.c.bf16 %v3253, %v3252
  %v3271 = vpack.c.bf16 %v3255, %v3254
  %v3272 = vpack.c.bf16 %v3257, %v3256
  %v3273 = vpack.c.bf16 %v3259, %v3258
  %v3274 = vpack.c.bf16 %v3261, %v3260
  %v3275 = vpack.c.bf16 %v3262, %v3262
  %3276 = vadd.xlane.f32.xlu0 %v1457
  %v3277 = vpop.xlane.xlu0 %3276
  %3278 = vadd.xlane.f32.xlu0 %v1459
  %v3279 = vpop.xlane.xlu0 %3278
  %3280 = vadd.xlane.f32.xlu0 %v1461
  %v3281 = vpop.xlane.xlu0 %3280
  %3282 = vadd.xlane.f32.xlu0 %v1463
  %v3283 = vpop.xlane.xlu0 %3282
  %3284 = vadd.xlane.f32.xlu0 %v1465
  %v3285 = vpop.xlane.xlu0 %3284
  %3286 = vadd.xlane.f32.xlu0 %v1467
  %v3287 = vpop.xlane.xlu0 %3286
  %3288 = vadd.xlane.f32.xlu0 %v1469
  %v3289 = vpop.xlane.xlu0 %3288
  %3290 = vadd.xlane.f32.xlu0 %v1471
  %v3291 = vpop.xlane.xlu0 %3290
  %3292 = vadd.xlane.f32.xlu0 %v1473
  %v3293 = vpop.xlane.xlu0 %3292
  %3294 = vadd.xlane.f32.xlu0 %v1475
  %v3295 = vpop.xlane.xlu0 %3294
  %3296 = vadd.xlane.f32.xlu0 %v1477
  %v3297 = vpop.xlane.xlu0 %3296
  %3298 = vadd.xlane.f32.xlu0 %v1479
  %v3299 = vpop.xlane.xlu0 %3298
  %3300 = vadd.xlane.f32.xlu0 %v1481
  %v3301 = vpop.xlane.xlu0 %3300
  %3302 = vadd.xlane.f32.xlu0 %v1483
  %v3303 = vpop.xlane.xlu0 %3302
  %3304 = vadd.xlane.f32.xlu0 %v1485
  %v3305 = vpop.xlane.xlu0 %3304
  %3306 = vadd.xlane.f32.xlu0 %v1487
  %v3307 = vpop.xlane.xlu0 %3306
  %3308 = vadd.xlane.f32.xlu0 %v1489
  %v3309 = vpop.xlane.xlu0 %3308
  %3310 = vadd.xlane.f32.xlu0 %v1491
  %v3311 = vpop.xlane.xlu0 %3310
  %3312 = vadd.xlane.f32.xlu0 %v1493
  %v3313 = vpop.xlane.xlu0 %3312
  %3314 = vadd.xlane.f32.xlu0 %v1495
  %v3315 = vpop.xlane.xlu0 %3314
  %3316 = vadd.xlane.f32.xlu0 %v1497
  %v3317 = vpop.xlane.xlu0 %3316
  %3318 = vadd.xlane.f32.xlu0 %v1499
  %v3319 = vpop.xlane.xlu0 %3318
  %3320 = vadd.xlane.f32.xlu0 %v1501
  %v3321 = vpop.xlane.xlu0 %3320
  %3322 = vadd.xlane.f32.xlu0 %v1503
  %v3323 = vpop.xlane.xlu0 %3322
  %3324 = vadd.xlane.f32.xlu0 %v1505
  %v3325 = vpop.xlane.xlu0 %3324
  %v3326 = vmul.f32 %v3277, 0.03125
  %v3327 = vmul.f32 %v3279, 0.03125
  %v3328 = vmul.f32 %v3281, 0.03125
  %v3329 = vmul.f32 %v3283, 0.03125
  %v3330 = vmul.f32 %v3285, 0.03125
  %v3331 = vmul.f32 %v3287, 0.03125
  %v3332 = vmul.f32 %v3289, 0.03125
  %v3333 = vmul.f32 %v3291, 0.03125
  %v3334 = vmul.f32 %v3293, 0.03125
  %v3335 = vmul.f32 %v3295, 0.03125
  %v3336 = vmul.f32 %v3297, 0.03125
  %v3337 = vmul.f32 %v3299, 0.03125
  %v3338 = vmul.f32 %v3301, 0.03125
  %v3339 = vmul.f32 %v3303, 0.03125
  %v3340 = vmul.f32 %v3305, 0.03125
  %v3341 = vmul.f32 %v3307, 0.03125
  %v3342 = vmul.f32 %v3309, 0.03125
  %v3343 = vmul.f32 %v3311, 0.03125
  %v3344 = vmul.f32 %v3313, 0.03125
  %v3345 = vmul.f32 %v3315, 0.03125
  %v3346 = vmul.f32 %v3317, 0.03125
  %v3347 = vmul.f32 %v3319, 0.03125
  %v3348 = vmul.f32 %v3321, 0.03125
  %v3349 = vmul.f32 %v3323, 0.03125
  %v3350 = vmul.f32 %v3325, 0.03125
  %v3351 = vmul.f32 %v1457, %v1457
  %v3352 = vmul.f32 %v1459, %v1459
  %v3353 = vmul.f32 %v1461, %v1461
  %v3354 = vmul.f32 %v1463, %v1463
  %v3355 = vmul.f32 %v1465, %v1465
  %v3356 = vmul.f32 %v1467, %v1467
  %v3357 = vmul.f32 %v1469, %v1469
  %v3358 = vmul.f32 %v1471, %v1471
  %v3359 = vmul.f32 %v1473, %v1473
  %v3360 = vmul.f32 %v1475, %v1475
  %v3361 = vmul.f32 %v1477, %v1477
  %v3362 = vmul.f32 %v1479, %v1479
  %v3363 = vmul.f32 %v1481, %v1481
  %v3364 = vmul.f32 %v1483, %v1483
  %v3365 = vmul.f32 %v1485, %v1485
  %v3366 = vmul.f32 %v1487, %v1487
  %v3367 = vmul.f32 %v1489, %v1489
  %v3368 = vmul.f32 %v1491, %v1491
  %v3369 = vmul.f32 %v1493, %v1493
  %v3370 = vmul.f32 %v1495, %v1495
  %v3371 = vmul.f32 %v1497, %v1497
  %v3372 = vmul.f32 %v1499, %v1499
  %v3373 = vmul.f32 %v1501, %v1501
  %v3374 = vmul.f32 %v1503, %v1503
  %v3375 = vmul.f32 %v1505, %v1505
  %3376 = vadd.xlane.f32.xlu0 %v3351
  %v3377 = vpop.xlane.xlu0 %3376
  %3378 = vadd.xlane.f32.xlu0 %v3352
  %v3379 = vpop.xlane.xlu0 %3378
  %3380 = vadd.xlane.f32.xlu0 %v3353
  %v3381 = vpop.xlane.xlu0 %3380
  %3382 = vadd.xlane.f32.xlu0 %v3354
  %v3383 = vpop.xlane.xlu0 %3382
  %3384 = vadd.xlane.f32.xlu0 %v3355
  %v3385 = vpop.xlane.xlu0 %3384
  %3386 = vadd.xlane.f32.xlu0 %v3356
  %v3387 = vpop.xlane.xlu0 %3386
  %3388 = vadd.xlane.f32.xlu0 %v3357
  %v3389 = vpop.xlane.xlu0 %3388
  %3390 = vadd.xlane.f32.xlu0 %v3358
  %v3391 = vpop.xlane.xlu0 %3390
  %3392 = vadd.xlane.f32.xlu0 %v3359
  %v3393 = vpop.xlane.xlu0 %3392
  %3394 = vadd.xlane.f32.xlu0 %v3360
  %v3395 = vpop.xlane.xlu0 %3394
  %3396 = vadd.xlane.f32.xlu0 %v3361
  %v3397 = vpop.xlane.xlu0 %3396
  %3398 = vadd.xlane.f32.xlu0 %v3362
  %v3399 = vpop.xlane.xlu0 %3398
  %3400 = vadd.xlane.f32.xlu0 %v3363
  %v3401 = vpop.xlane.xlu0 %3400
  %3402 = vadd.xlane.f32.xlu0 %v3364
  %v3403 = vpop.xlane.xlu0 %3402
  %3404 = vadd.xlane.f32.xlu0 %v3365
  %v3405 = vpop.xlane.xlu0 %3404
  %3406 = vadd.xlane.f32.xlu0 %v3366
  %v3407 = vpop.xlane.xlu0 %3406
  %3408 = vadd.xlane.f32.xlu0 %v3367
  %v3409 = vpop.xlane.xlu0 %3408
  %3410 = vadd.xlane.f32.xlu0 %v3368
  %v3411 = vpop.xlane.xlu0 %3410
  %3412 = vadd.xlane.f32.xlu0 %v3369
  %v3413 = vpop.xlane.xlu0 %3412
  %3414 = vadd.xlane.f32.xlu0 %v3370
  %v3415 = vpop.xlane.xlu0 %3414
  %3416 = vadd.xlane.f32.xlu0 %v3371
  %v3417 = vpop.xlane.xlu0 %3416
  %3418 = vadd.xlane.f32.xlu0 %v3372
  %v3419 = vpop.xlane.xlu0 %3418
  %3420 = vadd.xlane.f32.xlu0 %v3373
  %v3421 = vpop.xlane.xlu0 %3420
  %3422 = vadd.xlane.f32.xlu0 %v3374
  %v3423 = vpop.xlane.xlu0 %3422
  %3424 = vadd.xlane.f32.xlu0 %v3375
  %v3425 = vpop.xlane.xlu0 %3424
  %v3426 = vmul.f32 %v3377, 0.03125
  %v3427 = vmul.f32 %v3379, 0.03125
  %v3428 = vmul.f32 %v3381, 0.03125
  %v3429 = vmul.f32 %v3383, 0.03125
  %v3430 = vmul.f32 %v3385, 0.03125
  %v3431 = vmul.f32 %v3387, 0.03125
  %v3432 = vmul.f32 %v3389, 0.03125
  %v3433 = vmul.f32 %v3391, 0.03125
  %v3434 = vmul.f32 %v3393, 0.03125
  %v3435 = vmul.f32 %v3395, 0.03125
  %v3436 = vmul.f32 %v3397, 0.03125
  %v3437 = vmul.f32 %v3399, 0.03125
  %v3438 = vmul.f32 %v3401, 0.03125
  %v3439 = vmul.f32 %v3403, 0.03125
  %v3440 = vmul.f32 %v3405, 0.03125
  %v3441 = vmul.f32 %v3407, 0.03125
  %v3442 = vmul.f32 %v3409, 0.03125
  %v3443 = vmul.f32 %v3411, 0.03125
  %v3444 = vmul.f32 %v3413, 0.03125
  %v3445 = vmul.f32 %v3415, 0.03125
  %v3446 = vmul.f32 %v3417, 0.03125
  %v3447 = vmul.f32 %v3419, 0.03125
  %v3448 = vmul.f32 %v3421, 0.03125
  %v3449 = vmul.f32 %v3423, 0.03125
  %v3450 = vmul.f32 %v3425, 0.03125
  %v3451 = vmul.f32 %v3326, %v3326
  %v3452 = vmul.f32 %v3327, %v3327
  %v3453 = vmul.f32 %v3328, %v3328
  %v3454 = vmul.f32 %v3329, %v3329
  %v3455 = vmul.f32 %v3330, %v3330
  %v3456 = vmul.f32 %v3331, %v3331
  %v3457 = vmul.f32 %v3332, %v3332
  %v3458 = vmul.f32 %v3333, %v3333
  %v3459 = vmul.f32 %v3334, %v3334
  %v3460 = vmul.f32 %v3335, %v3335
  %v3461 = vmul.f32 %v3336, %v3336
  %v3462 = vmul.f32 %v3337, %v3337
  %v3463 = vmul.f32 %v3338, %v3338
  %v3464 = vmul.f32 %v3339, %v3339
  %v3465 = vmul.f32 %v3340, %v3340
  %v3466 = vmul.f32 %v3341, %v3341
  %v3467 = vmul.f32 %v3342, %v3342
  %v3468 = vmul.f32 %v3343, %v3343
  %v3469 = vmul.f32 %v3344, %v3344
  %v3470 = vmul.f32 %v3345, %v3345
  %v3471 = vmul.f32 %v3346, %v3346
  %v3472 = vmul.f32 %v3347, %v3347
  %v3473 = vmul.f32 %v3348, %v3348
  %v3474 = vmul.f32 %v3349, %v3349
  %v3475 = vmul.f32 %v3350, %v3350
  %v3476 = vsub.f32 %v3426, %v3451
  %v3477 = vsub.f32 %v3427, %v3452
  %v3478 = vsub.f32 %v3428, %v3453
  %v3479 = vsub.f32 %v3429, %v3454
  %v3480 = vsub.f32 %v3430, %v3455
  %v3481 = vsub.f32 %v3431, %v3456
  %v3482 = vsub.f32 %v3432, %v3457
  %v3483 = vsub.f32 %v3433, %v3458
  %v3484 = vsub.f32 %v3434, %v3459
  %v3485 = vsub.f32 %v3435, %v3460
  %v3486 = vsub.f32 %v3436, %v3461
  %v3487 = vsub.f32 %v3437, %v3462
  %v3488 = vsub.f32 %v3438, %v3463
  %v3489 = vsub.f32 %v3439, %v3464
  %v3490 = vsub.f32 %v3440, %v3465
  %v3491 = vsub.f32 %v3441, %v3466
  %v3492 = vsub.f32 %v3442, %v3467
  %v3493 = vsub.f32 %v3443, %v3468
  %v3494 = vsub.f32 %v3444, %v3469
  %v3495 = vsub.f32 %v3445, %v3470
  %v3496 = vsub.f32 %v3446, %v3471
  %v3497 = vsub.f32 %v3447, %v3472
  %v3498 = vsub.f32 %v3448, %v3473
  %v3499 = vsub.f32 %v3449, %v3474
  %v3500 = vsub.f32 %v3450, %v3475
  %v3501 = vmax.f32 %v3476, 0.0
  %v3502 = vmax.f32 %v3477, 0.0
  %v3503 = vmax.f32 %v3478, 0.0
  %v3504 = vmax.f32 %v3479, 0.0
  %v3505 = vmax.f32 %v3480, 0.0
  %v3506 = vmax.f32 %v3481, 0.0
  %v3507 = vmax.f32 %v3482, 0.0
  %v3508 = vmax.f32 %v3483, 0.0
  %v3509 = vmax.f32 %v3484, 0.0
  %v3510 = vmax.f32 %v3485, 0.0
  %v3511 = vmax.f32 %v3486, 0.0
  %v3512 = vmax.f32 %v3487, 0.0
  %v3513 = vmax.f32 %v3488, 0.0
  %v3514 = vmax.f32 %v3489, 0.0
  %v3515 = vmax.f32 %v3490, 0.0
  %v3516 = vmax.f32 %v3491, 0.0
  %v3517 = vmax.f32 %v3492, 0.0
  %v3518 = vmax.f32 %v3493, 0.0
  %v3519 = vmax.f32 %v3494, 0.0
  %v3520 = vmax.f32 %v3495, 0.0
  %v3521 = vmax.f32 %v3496, 0.0
  %v3522 = vmax.f32 %v3497, 0.0
  %v3523 = vmax.f32 %v3498, 0.0
  %v3524 = vmax.f32 %v3499, 0.0
  %v3525 = vmax.f32 %v3500, 0.0
  %v3526 = vsub.f32 %v1457, %v3326
  %v3527 = vsub.f32 %v1459, %v3327
  %v3528 = vsub.f32 %v1461, %v3328
  %v3529 = vsub.f32 %v1463, %v3329
  %v3530 = vsub.f32 %v1465, %v3330
  %v3531 = vsub.f32 %v1467, %v3331
  %v3532 = vsub.f32 %v1469, %v3332
  %v3533 = vsub.f32 %v1471, %v3333
  %v3534 = vsub.f32 %v1473, %v3334
  %v3535 = vsub.f32 %v1475, %v3335
  %v3536 = vsub.f32 %v1477, %v3336
  %v3537 = vsub.f32 %v1479, %v3337
  %v3538 = vsub.f32 %v1481, %v3338
  %v3539 = vsub.f32 %v1483, %v3339
  %v3540 = vsub.f32 %v1485, %v3340
  %v3541 = vsub.f32 %v1487, %v3341
  %v3542 = vsub.f32 %v1489, %v3342
  %v3543 = vsub.f32 %v1491, %v3343
  %v3544 = vsub.f32 %v1493, %v3344
  %v3545 = vsub.f32 %v1495, %v3345
  %v3546 = vsub.f32 %v1497, %v3346
  %v3547 = vsub.f32 %v1499, %v3347
  %v3548 = vsub.f32 %v1501, %v3348
  %v3549 = vsub.f32 %v1503, %v3349
  %v3550 = vsub.f32 %v1505, %v3350
  %v3551 = vadd.f32 %v3501, 1e-05
  %v3552 = vadd.f32 %v3502, 1e-05
  %v3553 = vadd.f32 %v3503, 1e-05
  %v3554 = vadd.f32 %v3504, 1e-05
  %v3555 = vadd.f32 %v3505, 1e-05
  %v3556 = vadd.f32 %v3506, 1e-05
  %v3557 = vadd.f32 %v3507, 1e-05
  %v3558 = vadd.f32 %v3508, 1e-05
  %v3559 = vadd.f32 %v3509, 1e-05
  %v3560 = vadd.f32 %v3510, 1e-05
  %v3561 = vadd.f32 %v3511, 1e-05
  %v3562 = vadd.f32 %v3512, 1e-05
  %v3563 = vadd.f32 %v3513, 1e-05
  %v3564 = vadd.f32 %v3514, 1e-05
  %v3565 = vadd.f32 %v3515, 1e-05
  %v3566 = vadd.f32 %v3516, 1e-05
  %v3567 = vadd.f32 %v3517, 1e-05
  %v3568 = vadd.f32 %v3518, 1e-05
  %v3569 = vadd.f32 %v3519, 1e-05
  %v3570 = vadd.f32 %v3520, 1e-05
  %v3571 = vadd.f32 %v3521, 1e-05
  %v3572 = vadd.f32 %v3522, 1e-05
  %v3573 = vadd.f32 %v3523, 1e-05
  %v3574 = vadd.f32 %v3524, 1e-05
  %v3575 = vadd.f32 %v3525, 1e-05
  %v3576 = vrsqrt.pop %v3551
  %v3577 = vrsqrt.pop %v3552
  %v3578 = vrsqrt.pop %v3553
  %v3579 = vrsqrt.pop %v3554
  %v3580 = vrsqrt.pop %v3555
  %v3581 = vrsqrt.pop %v3556
  %v3582 = vrsqrt.pop %v3557
  %v3583 = vrsqrt.pop %v3558
  %v3584 = vrsqrt.pop %v3559
  %v3585 = vrsqrt.pop %v3560
  %v3586 = vrsqrt.pop %v3561
  %v3587 = vrsqrt.pop %v3562
  %v3588 = vrsqrt.pop %v3563
  %v3589 = vrsqrt.pop %v3564
  %v3590 = vrsqrt.pop %v3565
  %v3591 = vrsqrt.pop %v3566
  %v3592 = vrsqrt.pop %v3567
  %v3593 = vrsqrt.pop %v3568
  %v3594 = vrsqrt.pop %v3569
  %v3595 = vrsqrt.pop %v3570
  %v3596 = vrsqrt.pop %v3571
  %v3597 = vrsqrt.pop %v3572
  %v3598 = vrsqrt.pop %v3573
  %v3599 = vrsqrt.pop %v3574
  %v3600 = vrsqrt.pop %v3575
  %v3601 = vmul.f32 %v3526, %v3576
  %v3602 = vmul.f32 %v3527, %v3577
  %v3603 = vmul.f32 %v3528, %v3578
  %v3604 = vmul.f32 %v3529, %v3579
  %v3605 = vmul.f32 %v3530, %v3580
  %v3606 = vmul.f32 %v3531, %v3581
  %v3607 = vmul.f32 %v3532, %v3582
  %v3608 = vmul.f32 %v3533, %v3583
  %v3609 = vmul.f32 %v3534, %v3584
  %v3610 = vmul.f32 %v3535, %v3585
  %v3611 = vmul.f32 %v3536, %v3586
  %v3612 = vmul.f32 %v3537, %v3587
  %v3613 = vmul.f32 %v3538, %v3588
  %v3614 = vmul.f32 %v3539, %v3589
  %v3615 = vmul.f32 %v3540, %v3590
  %v3616 = vmul.f32 %v3541, %v3591
  %v3617 = vmul.f32 %v3542, %v3592
  %v3618 = vmul.f32 %v3543, %v3593
  %v3619 = vmul.f32 %v3544, %v3594
  %v3620 = vmul.f32 %v3545, %v3595
  %v3621 = vmul.f32 %v3546, %v3596
  %v3622 = vmul.f32 %v3547, %v3597
  %v3623 = vmul.f32 %v3548, %v3598
  %v3624 = vmul.f32 %v3549, %v3599
  %v3625 = vmul.f32 %v3550, %v3600
  %v3626 = vmul.f32 %v3601, %v1862
  %v3627 = vmul.f32 %v3602, %v1862
  %v3628 = vmul.f32 %v3603, %v1862
  %v3629 = vmul.f32 %v3604, %v1862
  %v3630 = vmul.f32 %v3605, %v1862
  %v3631 = vmul.f32 %v3606, %v1862
  %v3632 = vmul.f32 %v3607, %v1862
  %v3633 = vmul.f32 %v3608, %v1862
  %v3634 = vmul.f32 %v3609, %v1862
  %v3635 = vmul.f32 %v3610, %v1862
  %v3636 = vmul.f32 %v3611, %v1862
  %v3637 = vmul.f32 %v3612, %v1862
  %v3638 = vmul.f32 %v3613, %v1862
  %v3639 = vmul.f32 %v3614, %v1862
  %v3640 = vmul.f32 %v3615, %v1862
  %v3641 = vmul.f32 %v3616, %v1862
  %v3642 = vmul.f32 %v3617, %v1862
  %v3643 = vmul.f32 %v3618, %v1862
  %v3644 = vmul.f32 %v3619, %v1862
  %v3645 = vmul.f32 %v3620, %v1862
  %v3646 = vmul.f32 %v3621, %v1862
  %v3647 = vmul.f32 %v3622, %v1862
  %v3648 = vmul.f32 %v3623, %v1862
  %v3649 = vmul.f32 %v3624, %v1862
  %v3650 = vmul.f32 %v3625, %v1862
  %v3651 = vadd.f32 %v3626, %v1893
  %v3652 = vadd.f32 %v3627, %v1893
  %v3653 = vadd.f32 %v3628, %v1893
  %v3654 = vadd.f32 %v3629, %v1893
  %v3655 = vadd.f32 %v3630, %v1893
  %v3656 = vadd.f32 %v3631, %v1893
  %v3657 = vadd.f32 %v3632, %v1893
  %v3658 = vadd.f32 %v3633, %v1893
  %v3659 = vadd.f32 %v3634, %v1893
  %v3660 = vadd.f32 %v3635, %v1893
  %v3661 = vadd.f32 %v3636, %v1893
  %v3662 = vadd.f32 %v3637, %v1893
  %v3663 = vadd.f32 %v3638, %v1893
  %v3664 = vadd.f32 %v3639, %v1893
  %v3665 = vadd.f32 %v3640, %v1893
  %v3666 = vadd.f32 %v3641, %v1893
  %v3667 = vadd.f32 %v3642, %v1893
  %v3668 = vadd.f32 %v3643, %v1893
  %v3669 = vadd.f32 %v3644, %v1893
  %v3670 = vadd.f32 %v3645, %v1893
  %v3671 = vadd.f32 %v3646, %v1893
  %v3672 = vadd.f32 %v3647, %v1893
  %v3673 = vadd.f32 %v3648, %v1893
  %v3674 = vadd.f32 %v3649, %v1893
  %v3675 = vadd.f32 %v3650, %v1893
  %v3676 = vmax.f32 %v3651, 0.0
  %v3677 = vmax.f32 %v3652, 0.0
  %v3678 = vmax.f32 %v3653, 0.0
  %v3679 = vmax.f32 %v3654, 0.0
  %v3680 = vmax.f32 %v3655, 0.0
  %v3681 = vmax.f32 %v3656, 0.0
  %v3682 = vmax.f32 %v3657, 0.0
  %v3683 = vmax.f32 %v3658, 0.0
  %v3684 = vmax.f32 %v3659, 0.0
  %v3685 = vmax.f32 %v3660, 0.0
  %v3686 = vmax.f32 %v3661, 0.0
  %v3687 = vmax.f32 %v3662, 0.0
  %v3688 = vmax.f32 %v3663, 0.0
  %v3689 = vmax.f32 %v3664, 0.0
  %v3690 = vmax.f32 %v3665, 0.0
  %v3691 = vmax.f32 %v3666, 0.0
  %v3692 = vmax.f32 %v3667, 0.0
  %v3693 = vmax.f32 %v3668, 0.0
  %v3694 = vmax.f32 %v3669, 0.0
  %v3695 = vmax.f32 %v3670, 0.0
  %v3696 = vmax.f32 %v3671, 0.0
  %v3697 = vmax.f32 %v3672, 0.0
  %v3698 = vmax.f32 %v3673, 0.0
  %v3699 = vmax.f32 %v3674, 0.0
  %v3700 = vmax.f32 %v3675, 0.0
  %v3701 = vpack.c.bf16 %v3677, %v3676
  %v3702 = vpack.c.bf16 %v3679, %v3678
  %v3703 = vpack.c.bf16 %v3681, %v3680
  %v3704 = vpack.c.bf16 %v3683, %v3682
  %v3705 = vpack.c.bf16 %v3685, %v3684
  %v3706 = vpack.c.bf16 %v3687, %v3686
  %v3707 = vpack.c.bf16 %v3689, %v3688
  %v3708 = vpack.c.bf16 %v3691, %v3690
  %v3709 = vpack.c.bf16 %v3693, %v3692
  %v3710 = vpack.c.bf16 %v3695, %v3694
  %v3711 = vpack.c.bf16 %v3697, %v3696
  %v3712 = vpack.c.bf16 %v3699, %v3698
  %v3713 = vpack.c.bf16 %v3700, %v3700
  %s3714 = scalar_lea.vmem %s11, 64
  %v3715 = vld [vmem:[%s3714] sm:$0xf]
  %v3716 = vld [vmem:[%s3714 + $0x4] sm:$0xf]
  %v3717 = vld [vmem:[%s3714 + $0x8] sm:$0xf]
  %v3718 = vld [vmem:[%s3714 + $0xc] sm:$0xf]
  %v3719 = vld [vmem:[%s3714 + $0x10] sm:$0xf]
  %v3720 = vld [vmem:[%s3714 + $0x14] sm:$0xf]
  %v3721 = vld [vmem:[%s3714 + $0x18] sm:$0xf]
  %v3722 = vld [vmem:[%s3714 + $0x1c] sm:$0xf]
  %v3723 = vld [vmem:[%s3714 + $0x20] sm:$0xf]
  %v3724 = vld [vmem:[%s3714 + $0x24] sm:$0xf]
  %v3725 = vld [vmem:[%s3714 + $0x28] sm:$0xf]
  %v3726 = vld [vmem:[%s3714 + $0x2c] sm:$0xf]
  %v3727 = vld [vmem:[%s3714 + $0x30] sm:$0xf]
  %v3728 = vld [vmem:[%s3714 + $0x34] sm:$0xf]
  %v3729 = vld [vmem:[%s3714 + $0x38] sm:$0xf]
  %v3730 = vld [vmem:[%s3714 + $0x3c] sm:$0xf]
  %s3731 = scalar_lea.vmem %s12, 1
  %v3732 = vld [vmem:[%s3731] sm:$0x1]
  %v3734 = vlaneseq
  %v3735 = vshrl.u32 %v3734, 7
  %v3736 = vsub.s32 0, %v3735
  %v3737 = vrot.slane %v3732, %v3736
  %v3755 = vunpack.c.l.b16 %v3715
  %v3756 = vunpack.c.l.b16 %v3716
  %v3757 = vunpack.c.l.b16 %v3717
  %v3758 = vunpack.c.l.b16 %v3718
  %v3759 = vunpack.c.l.b16 %v3719
  %v3760 = vunpack.c.l.b16 %v3720
  %v3761 = vunpack.c.l.b16 %v3721
  %v3762 = vunpack.c.l.b16 %v3722
  %v3763 = vunpack.c.l.b16 %v3723
  %v3764 = vunpack.c.l.b16 %v3724
  %v3765 = vunpack.c.l.b16 %v3725
  %v3766 = vunpack.c.l.b16 %v3726
  %v3767 = vunpack.c.l.b16 %v3727
  %v3768 = vunpack.c.l.b16 %v3728
  %v3769 = vunpack.c.l.b16 %v3729
  %v3770 = vunpack.c.l.b16 %v3730
  %v3771 = vpack.c.b16 %v3756, %v3755
  %v3772 = vpack.c.b16 %v3758, %v3757
  %v3773 = vpack.c.b16 %v3760, %v3759
  %v3774 = vpack.c.b16 %v3762, %v3761
  %v3775 = vpack.c.b16 %v3764, %v3763
  %v3776 = vpack.c.b16 %v3766, %v3765
  %v3777 = vpack.c.b16 %v3768, %v3767
  %v3778 = vpack.c.b16 %v3770, %v3769
  %3787 = vmatprep.subr.bf16.mxu0 0
  %3788 = vmatpush1.bf16.msra.mxu0 %v3778
  %3789 = vmatprep.subr.bf16.mxu0 0
  %3790 = vmatpush1.bf16.msra.mxu0 %v3777
  %3791 = vmatprep.subr.bf16.mxu0 0
  %3792 = vmatpush1.bf16.msra.mxu0 %v3776
  %3793 = vmatprep.subr.bf16.mxu0 0
  %3794 = vmatpush1.bf16.msra.mxu0 %v3775
  %3795 = vmatprep.subr.bf16.mxu0 0
  %3796 = vmatpush1.bf16.msra.mxu0 %v3774
  %3797 = vmatprep.subr.bf16.mxu0 0
  %3798 = vmatpush1.bf16.msra.mxu0 %v3773
  %3799 = vmatprep.subr.bf16.mxu0 0
  %3800 = vmatpush1.bf16.msra.mxu0 %v3772
  %3801 = vmatprep.subr.bf16.mxu0 0
  %3802 = vmatpush1.bf16.msra.mxu0 %v3771
  %3803 = vmatprep.subr.bf16.mxu0 0
  %3804 = vmatpush2.bf16.msra.mxu0 0
  %3805 = vmatprep.subr.bf16.mxu0 0
  %3806 = vmatpush2.bf16.msra.mxu0 0
  %3807 = vmatprep.subr.bf16.mxu0 0
  %3808 = vmatpush2.bf16.msra.mxu0 0
  %3809 = vmatprep.subr.bf16.mxu0 0
  %3810 = vmatpush2.bf16.msra.mxu0 0
  %3811 = vmatprep.subr.bf16.mxu0 0
  %3812 = vmatpush2.bf16.msra.mxu0 0
  %3813 = vmatprep.subr.bf16.mxu0 0
  %3814 = vmatpush2.bf16.msra.mxu0 0
  %3815 = vmatprep.subr.bf16.mxu0 0
  %3816 = vmatpush2.bf16.msra.mxu0 0
  %3817 = vmatprep.subr.bf16.mxu0 0
  %3818 = vmatpush2.bf16.msra.mxu0 0
  %3819 = vmatprep.mubr.bf16.mxu0 0
  %3820 = vmatmul.mubr.bf16.gmra.mxu0 %v3701
  %v3821 = vpop.f32.mrf.mxu0
  %v3822 = vadd.f32 %v3737, %v3821
  %v3823 = vpop.f32.mrf.mxu0
  %v3824 = vpop.f32.mrf.mxu0
  %v3825 = vadd.f32 %v3737, %v3824
  %v3826 = vpop.f32.mrf.mxu0
  %3827 = vmatprep.mubr.bf16.mxu0 0
  %3828 = vmatmul.mubr.bf16.gmra.mxu0 %v3702
  %v3829 = vpop.f32.mrf.mxu0
  %v3830 = vadd.f32 %v3737, %v3829
  %v3831 = vpop.f32.mrf.mxu0
  %v3832 = vpop.f32.mrf.mxu0
  %v3833 = vadd.f32 %v3737, %v3832
  %v3834 = vpop.f32.mrf.mxu0
  %3835 = vmatprep.mubr.bf16.mxu0 0
  %3836 = vmatmul.mubr.bf16.gmra.mxu0 %v3703
  %v3837 = vpop.f32.mrf.mxu0
  %v3838 = vadd.f32 %v3737, %v3837
  %v3839 = vpop.f32.mrf.mxu0
  %v3840 = vpop.f32.mrf.mxu0
  %v3841 = vadd.f32 %v3737, %v3840
  %v3842 = vpop.f32.mrf.mxu0
  %3843 = vmatprep.mubr.bf16.mxu0 0
  %3844 = vmatmul.mubr.bf16.gmra.mxu0 %v3704
  %v3845 = vpop.f32.mrf.mxu0
  %v3846 = vadd.f32 %v3737, %v3845
  %v3847 = vpop.f32.mrf.mxu0
  %v3848 = vpop.f32.mrf.mxu0
  %v3849 = vadd.f32 %v3737, %v3848
  %v3850 = vpop.f32.mrf.mxu0
  %3851 = vmatprep.mubr.bf16.mxu0 0
  %3852 = vmatmul.mubr.bf16.gmra.mxu0 %v3705
  %v3853 = vpop.f32.mrf.mxu0
  %v3854 = vadd.f32 %v3737, %v3853
  %v3855 = vpop.f32.mrf.mxu0
  %v3856 = vpop.f32.mrf.mxu0
  %v3857 = vadd.f32 %v3737, %v3856
  %v3858 = vpop.f32.mrf.mxu0
  %3859 = vmatprep.mubr.bf16.mxu0 0
  %3860 = vmatmul.mubr.bf16.gmra.mxu0 %v3706
  %v3861 = vpop.f32.mrf.mxu0
  %v3862 = vadd.f32 %v3737, %v3861
  %v3863 = vpop.f32.mrf.mxu0
  %v3864 = vpop.f32.mrf.mxu0
  %v3865 = vadd.f32 %v3737, %v3864
  %v3866 = vpop.f32.mrf.mxu0
  %3867 = vmatprep.mubr.bf16.mxu0 0
  %3868 = vmatmul.mubr.bf16.gmra.mxu0 %v3707
  %v3869 = vpop.f32.mrf.mxu0
  %v3870 = vadd.f32 %v3737, %v3869
  %v3871 = vpop.f32.mrf.mxu0
  %v3872 = vpop.f32.mrf.mxu0
  %v3873 = vadd.f32 %v3737, %v3872
  %v3874 = vpop.f32.mrf.mxu0
  %3875 = vmatprep.mubr.bf16.mxu0 0
  %3876 = vmatmul.mubr.bf16.gmra.mxu0 %v3708
  %v3877 = vpop.f32.mrf.mxu0
  %v3878 = vadd.f32 %v3737, %v3877
  %v3879 = vpop.f32.mrf.mxu0
  %v3880 = vpop.f32.mrf.mxu0
  %v3881 = vadd.f32 %v3737, %v3880
  %v3882 = vpop.f32.mrf.mxu0
  %3883 = vmatprep.mubr.bf16.mxu0 0
  %3884 = vmatmul.mubr.bf16.gmra.mxu0 %v3709
  %v3885 = vpop.f32.mrf.mxu0
  %v3886 = vadd.f32 %v3737, %v3885
  %v3887 = vpop.f32.mrf.mxu0
  %v3888 = vpop.f32.mrf.mxu0
  %v3889 = vadd.f32 %v3737, %v3888
  %v3890 = vpop.f32.mrf.mxu0
  %3891 = vmatprep.mubr.bf16.mxu0 0
  %3892 = vmatmul.mubr.bf16.gmra.mxu0 %v3710
  %v3893 = vpop.f32.mrf.mxu0
  %v3894 = vadd.f32 %v3737, %v3893
  %v3895 = vpop.f32.mrf.mxu0
  %v3896 = vpop.f32.mrf.mxu0
  %v3897 = vadd.f32 %v3737, %v3896
  %v3898 = vpop.f32.mrf.mxu0
  %3899 = vmatprep.mubr.bf16.mxu0 0
  %3900 = vmatmul.mubr.bf16.gmra.mxu0 %v3711
  %v3901 = vpop.f32.mrf.mxu0
  %v3902 = vadd.f32 %v3737, %v3901
  %v3903 = vpop.f32.mrf.mxu0
  %v3904 = vpop.f32.mrf.mxu0
  %v3905 = vadd.f32 %v3737, %v3904
  %v3906 = vpop.f32.mrf.mxu0
  %3907 = vmatprep.mubr.bf16.mxu0 0
  %3908 = vmatmul.mubr.bf16.gmra.mxu0 %v3712
  %v3909 = vpop.f32.mrf.mxu0
  %v3910 = vadd.f32 %v3737, %v3909
  %v3911 = vpop.f32.mrf.mxu0
  %v3912 = vpop.f32.mrf.mxu0
  %v3913 = vadd.f32 %v3737, %v3912
  %v3914 = vpop.f32.mrf.mxu0
  %3915 = vmatprep.mubr.bf16.mxu0 0
  %3916 = vmatmul.mubr.bf16.gmra.mxu0 %v3713
  %v3917 = vpop.f32.mrf.mxu0
  %v3918 = vadd.f32 %v3737, %v3917
  %v3919 = vpop.f32.mrf.mxu0
  %v3920 = vpop.f32.mrf.mxu0
  %v3921 = vpop.f32.mrf.mxu0
  %3922 = vdwg.mxu0
  %3923 = vadd.xlane.f32.xlu0 %v3822
  %v3924 = vpop.xlane.xlu0 %3923
  %3925 = vadd.xlane.f32.xlu0 %v3825
  %v3926 = vpop.xlane.xlu0 %3925
  %3927 = vadd.xlane.f32.xlu0 %v3830
  %v3928 = vpop.xlane.xlu0 %3927
  %3929 = vadd.xlane.f32.xlu0 %v3833
  %v3930 = vpop.xlane.xlu0 %3929
  %3931 = vadd.xlane.f32.xlu0 %v3838
  %v3932 = vpop.xlane.xlu0 %3931
  %3933 = vadd.xlane.f32.xlu0 %v3841
  %v3934 = vpop.xlane.xlu0 %3933
  %3935 = vadd.xlane.f32.xlu0 %v3846
  %v3936 = vpop.xlane.xlu0 %3935
  %3937 = vadd.xlane.f32.xlu0 %v3849
  %v3938 = vpop.xlane.xlu0 %3937
  %3939 = vadd.xlane.f32.xlu0 %v3854
  %v3940 = vpop.xlane.xlu0 %3939
  %3941 = vadd.xlane.f32.xlu0 %v3857
  %v3942 = vpop.xlane.xlu0 %3941
  %3943 = vadd.xlane.f32.xlu0 %v3862
  %v3944 = vpop.xlane.xlu0 %3943
  %3945 = vadd.xlane.f32.xlu0 %v3865
  %v3946 = vpop.xlane.xlu0 %3945
  %3947 = vadd.xlane.f32.xlu0 %v3870
  %v3948 = vpop.xlane.xlu0 %3947
  %3949 = vadd.xlane.f32.xlu0 %v3873
  %v3950 = vpop.xlane.xlu0 %3949
  %3951 = vadd.xlane.f32.xlu0 %v3878
  %v3952 = vpop.xlane.xlu0 %3951
  %3953 = vadd.xlane.f32.xlu0 %v3881
  %v3954 = vpop.xlane.xlu0 %3953
  %3955 = vadd.xlane.f32.xlu0 %v3886
  %v3956 = vpop.xlane.xlu0 %3955
  %3957 = vadd.xlane.f32.xlu0 %v3889
  %v3958 = vpop.xlane.xlu0 %3957
  %3959 = vadd.xlane.f32.xlu0 %v3894
  %v3960 = vpop.xlane.xlu0 %3959
  %3961 = vadd.xlane.f32.xlu0 %v3897
  %v3962 = vpop.xlane.xlu0 %3961
  %3963 = vadd.xlane.f32.xlu0 %v3902
  %v3964 = vpop.xlane.xlu0 %3963
  %3965 = vadd.xlane.f32.xlu0 %v3905
  %v3966 = vpop.xlane.xlu0 %3965
  %3967 = vadd.xlane.f32.xlu0 %v3910
  %v3968 = vpop.xlane.xlu0 %3967
  %3969 = vadd.xlane.f32.xlu0 %v3913
  %v3970 = vpop.xlane.xlu0 %3969
  %3971 = vadd.xlane.f32.xlu0 %v3918
  %v3972 = vpop.xlane.xlu0 %3971
  %v3973 = vmul.f32 %v3924, 0.03125
  %v3974 = vmul.f32 %v3926, 0.03125
  %v3975 = vmul.f32 %v3928, 0.03125
  %v3976 = vmul.f32 %v3930, 0.03125
  %v3977 = vmul.f32 %v3932, 0.03125
  %v3978 = vmul.f32 %v3934, 0.03125
  %v3979 = vmul.f32 %v3936, 0.03125
  %v3980 = vmul.f32 %v3938, 0.03125
  %v3981 = vmul.f32 %v3940, 0.03125
  %v3982 = vmul.f32 %v3942, 0.03125
  %v3983 = vmul.f32 %v3944, 0.03125
  %v3984 = vmul.f32 %v3946, 0.03125
  %v3985 = vmul.f32 %v3948, 0.03125
  %v3986 = vmul.f32 %v3950, 0.03125
  %v3987 = vmul.f32 %v3952, 0.03125
  %v3988 = vmul.f32 %v3954, 0.03125
  %v3989 = vmul.f32 %v3956, 0.03125
  %v3990 = vmul.f32 %v3958, 0.03125
  %v3991 = vmul.f32 %v3960, 0.03125
  %v3992 = vmul.f32 %v3962, 0.03125
  %v3993 = vmul.f32 %v3964, 0.03125
  %v3994 = vmul.f32 %v3966, 0.03125
  %v3995 = vmul.f32 %v3968, 0.03125
  %v3996 = vmul.f32 %v3970, 0.03125
  %v3997 = vmul.f32 %v3972, 0.03125
  %v3998 = vmul.f32 %v3822, %v3822
  %v3999 = vmul.f32 %v3825, %v3825
  %v4000 = vmul.f32 %v3830, %v3830
  %v4001 = vmul.f32 %v3833, %v3833
  %v4002 = vmul.f32 %v3838, %v3838
  %v4003 = vmul.f32 %v3841, %v3841
  %v4004 = vmul.f32 %v3846, %v3846
  %v4005 = vmul.f32 %v3849, %v3849
  %v4006 = vmul.f32 %v3854, %v3854
  %v4007 = vmul.f32 %v3857, %v3857
  %v4008 = vmul.f32 %v3862, %v3862
  %v4009 = vmul.f32 %v3865, %v3865
  %v4010 = vmul.f32 %v3870, %v3870
  %v4011 = vmul.f32 %v3873, %v3873
  %v4012 = vmul.f32 %v3878, %v3878
  %v4013 = vmul.f32 %v3881, %v3881
  %v4014 = vmul.f32 %v3886, %v3886
  %v4015 = vmul.f32 %v3889, %v3889
  %v4016 = vmul.f32 %v3894, %v3894
  %v4017 = vmul.f32 %v3897, %v3897
  %v4018 = vmul.f32 %v3902, %v3902
  %v4019 = vmul.f32 %v3905, %v3905
  %v4020 = vmul.f32 %v3910, %v3910
  %v4021 = vmul.f32 %v3913, %v3913
  %v4022 = vmul.f32 %v3918, %v3918
  %4023 = vadd.xlane.f32.xlu0 %v3998
  %v4024 = vpop.xlane.xlu0 %4023
  %4025 = vadd.xlane.f32.xlu0 %v3999
  %v4026 = vpop.xlane.xlu0 %4025
  %4027 = vadd.xlane.f32.xlu0 %v4000
  %v4028 = vpop.xlane.xlu0 %4027
  %4029 = vadd.xlane.f32.xlu0 %v4001
  %v4030 = vpop.xlane.xlu0 %4029
  %4031 = vadd.xlane.f32.xlu0 %v4002
  %v4032 = vpop.xlane.xlu0 %4031
  %4033 = vadd.xlane.f32.xlu0 %v4003
  %v4034 = vpop.xlane.xlu0 %4033
  %4035 = vadd.xlane.f32.xlu0 %v4004
  %v4036 = vpop.xlane.xlu0 %4035
  %4037 = vadd.xlane.f32.xlu0 %v4005
  %v4038 = vpop.xlane.xlu0 %4037
  %4039 = vadd.xlane.f32.xlu0 %v4006
  %v4040 = vpop.xlane.xlu0 %4039
  %4041 = vadd.xlane.f32.xlu0 %v4007
  %v4042 = vpop.xlane.xlu0 %4041
  %4043 = vadd.xlane.f32.xlu0 %v4008
  %v4044 = vpop.xlane.xlu0 %4043
  %4045 = vadd.xlane.f32.xlu0 %v4009
  %v4046 = vpop.xlane.xlu0 %4045
  %4047 = vadd.xlane.f32.xlu0 %v4010
  %v4048 = vpop.xlane.xlu0 %4047
  %4049 = vadd.xlane.f32.xlu0 %v4011
  %v4050 = vpop.xlane.xlu0 %4049
  %4051 = vadd.xlane.f32.xlu0 %v4012
  %v4052 = vpop.xlane.xlu0 %4051
  %4053 = vadd.xlane.f32.xlu0 %v4013
  %v4054 = vpop.xlane.xlu0 %4053
  %4055 = vadd.xlane.f32.xlu0 %v4014
  %v4056 = vpop.xlane.xlu0 %4055
  %4057 = vadd.xlane.f32.xlu0 %v4015
  %v4058 = vpop.xlane.xlu0 %4057
  %4059 = vadd.xlane.f32.xlu0 %v4016
  %v4060 = vpop.xlane.xlu0 %4059
  %4061 = vadd.xlane.f32.xlu0 %v4017
  %v4062 = vpop.xlane.xlu0 %4061
  %4063 = vadd.xlane.f32.xlu0 %v4018
  %v4064 = vpop.xlane.xlu0 %4063
  %4065 = vadd.xlane.f32.xlu0 %v4019
  %v4066 = vpop.xlane.xlu0 %4065
  %4067 = vadd.xlane.f32.xlu0 %v4020
  %v4068 = vpop.xlane.xlu0 %4067
  %4069 = vadd.xlane.f32.xlu0 %v4021
  %v4070 = vpop.xlane.xlu0 %4069
  %4071 = vadd.xlane.f32.xlu0 %v4022
  %v4072 = vpop.xlane.xlu0 %4071
  %v4073 = vmul.f32 %v4024, 0.03125
  %v4074 = vmul.f32 %v4026, 0.03125
  %v4075 = vmul.f32 %v4028, 0.03125
  %v4076 = vmul.f32 %v4030, 0.03125
  %v4077 = vmul.f32 %v4032, 0.03125
  %v4078 = vmul.f32 %v4034, 0.03125
  %v4079 = vmul.f32 %v4036, 0.03125
  %v4080 = vmul.f32 %v4038, 0.03125
  %v4081 = vmul.f32 %v4040, 0.03125
  %v4082 = vmul.f32 %v4042, 0.03125
  %v4083 = vmul.f32 %v4044, 0.03125
  %v4084 = vmul.f32 %v4046, 0.03125
  %v4085 = vmul.f32 %v4048, 0.03125
  %v4086 = vmul.f32 %v4050, 0.03125
  %v4087 = vmul.f32 %v4052, 0.03125
  %v4088 = vmul.f32 %v4054, 0.03125
  %v4089 = vmul.f32 %v4056, 0.03125
  %v4090 = vmul.f32 %v4058, 0.03125
  %v4091 = vmul.f32 %v4060, 0.03125
  %v4092 = vmul.f32 %v4062, 0.03125
  %v4093 = vmul.f32 %v4064, 0.03125
  %v4094 = vmul.f32 %v4066, 0.03125
  %v4095 = vmul.f32 %v4068, 0.03125
  %v4096 = vmul.f32 %v4070, 0.03125
  %v4097 = vmul.f32 %v4072, 0.03125
  %v4098 = vmul.f32 %v3973, %v3973
  %v4099 = vmul.f32 %v3974, %v3974
  %v4100 = vmul.f32 %v3975, %v3975
  %v4101 = vmul.f32 %v3976, %v3976
  %v4102 = vmul.f32 %v3977, %v3977
  %v4103 = vmul.f32 %v3978, %v3978
  %v4104 = vmul.f32 %v3979, %v3979
  %v4105 = vmul.f32 %v3980, %v3980
  %v4106 = vmul.f32 %v3981, %v3981
  %v4107 = vmul.f32 %v3982, %v3982
  %v4108 = vmul.f32 %v3983, %v3983
  %v4109 = vmul.f32 %v3984, %v3984
  %v4110 = vmul.f32 %v3985, %v3985
  %v4111 = vmul.f32 %v3986, %v3986
  %v4112 = vmul.f32 %v3987, %v3987
  %v4113 = vmul.f32 %v3988, %v3988
  %v4114 = vmul.f32 %v3989, %v3989
  %v4115 = vmul.f32 %v3990, %v3990
  %v4116 = vmul.f32 %v3991, %v3991
  %v4117 = vmul.f32 %v3992, %v3992
  %v4118 = vmul.f32 %v3993, %v3993
  %v4119 = vmul.f32 %v3994, %v3994
  %v4120 = vmul.f32 %v3995, %v3995
  %v4121 = vmul.f32 %v3996, %v3996
  %v4122 = vmul.f32 %v3997, %v3997
  %v4123 = vsub.f32 %v4073, %v4098
  %v4124 = vsub.f32 %v4074, %v4099
  %v4125 = vsub.f32 %v4075, %v4100
  %v4126 = vsub.f32 %v4076, %v4101
  %v4127 = vsub.f32 %v4077, %v4102
  %v4128 = vsub.f32 %v4078, %v4103
  %v4129 = vsub.f32 %v4079, %v4104
  %v4130 = vsub.f32 %v4080, %v4105
  %v4131 = vsub.f32 %v4081, %v4106
  %v4132 = vsub.f32 %v4082, %v4107
  %v4133 = vsub.f32 %v4083, %v4108
  %v4134 = vsub.f32 %v4084, %v4109
  %v4135 = vsub.f32 %v4085, %v4110
  %v4136 = vsub.f32 %v4086, %v4111
  %v4137 = vsub.f32 %v4087, %v4112
  %v4138 = vsub.f32 %v4088, %v4113
  %v4139 = vsub.f32 %v4089, %v4114
  %v4140 = vsub.f32 %v4090, %v4115
  %v4141 = vsub.f32 %v4091, %v4116
  %v4142 = vsub.f32 %v4092, %v4117
  %v4143 = vsub.f32 %v4093, %v4118
  %v4144 = vsub.f32 %v4094, %v4119
  %v4145 = vsub.f32 %v4095, %v4120
  %v4146 = vsub.f32 %v4096, %v4121
  %v4147 = vsub.f32 %v4097, %v4122
  %v4148 = vmax.f32 %v4123, 0.0
  %v4149 = vmax.f32 %v4124, 0.0
  %v4150 = vmax.f32 %v4125, 0.0
  %v4151 = vmax.f32 %v4126, 0.0
  %v4152 = vmax.f32 %v4127, 0.0
  %v4153 = vmax.f32 %v4128, 0.0
  %v4154 = vmax.f32 %v4129, 0.0
  %v4155 = vmax.f32 %v4130, 0.0
  %v4156 = vmax.f32 %v4131, 0.0
  %v4157 = vmax.f32 %v4132, 0.0
  %v4158 = vmax.f32 %v4133, 0.0
  %v4159 = vmax.f32 %v4134, 0.0
  %v4160 = vmax.f32 %v4135, 0.0
  %v4161 = vmax.f32 %v4136, 0.0
  %v4162 = vmax.f32 %v4137, 0.0
  %v4163 = vmax.f32 %v4138, 0.0
  %v4164 = vmax.f32 %v4139, 0.0
  %v4165 = vmax.f32 %v4140, 0.0
  %v4166 = vmax.f32 %v4141, 0.0
  %v4167 = vmax.f32 %v4142, 0.0
  %v4168 = vmax.f32 %v4143, 0.0
  %v4169 = vmax.f32 %v4144, 0.0
  %v4170 = vmax.f32 %v4145, 0.0
  %v4171 = vmax.f32 %v4146, 0.0
  %v4172 = vmax.f32 %v4147, 0.0
  %v4173 = vsub.f32 %v3822, %v3973
  %v4174 = vsub.f32 %v3825, %v3974
  %v4175 = vsub.f32 %v3830, %v3975
  %v4176 = vsub.f32 %v3833, %v3976
  %v4177 = vsub.f32 %v3838, %v3977
  %v4178 = vsub.f32 %v3841, %v3978
  %v4179 = vsub.f32 %v3846, %v3979
  %v4180 = vsub.f32 %v3849, %v3980
  %v4181 = vsub.f32 %v3854, %v3981
  %v4182 = vsub.f32 %v3857, %v3982
  %v4183 = vsub.f32 %v3862, %v3983
  %v4184 = vsub.f32 %v3865, %v3984
  %v4185 = vsub.f32 %v3870, %v3985
  %v4186 = vsub.f32 %v3873, %v3986
  %v4187 = vsub.f32 %v3878, %v3987
  %v4188 = vsub.f32 %v3881, %v3988
  %v4189 = vsub.f32 %v3886, %v3989
  %v4190 = vsub.f32 %v3889, %v3990
  %v4191 = vsub.f32 %v3894, %v3991
  %v4192 = vsub.f32 %v3897, %v3992
  %v4193 = vsub.f32 %v3902, %v3993
  %v4194 = vsub.f32 %v3905, %v3994
  %v4195 = vsub.f32 %v3910, %v3995
  %v4196 = vsub.f32 %v3913, %v3996
  %v4197 = vsub.f32 %v3918, %v3997
  %v4198 = vadd.f32 %v4148, 1e-05
  %v4199 = vadd.f32 %v4149, 1e-05
  %v4200 = vadd.f32 %v4150, 1e-05
  %v4201 = vadd.f32 %v4151, 1e-05
  %v4202 = vadd.f32 %v4152, 1e-05
  %v4203 = vadd.f32 %v4153, 1e-05
  %v4204 = vadd.f32 %v4154, 1e-05
  %v4205 = vadd.f32 %v4155, 1e-05
  %v4206 = vadd.f32 %v4156, 1e-05
  %v4207 = vadd.f32 %v4157, 1e-05
  %v4208 = vadd.f32 %v4158, 1e-05
  %v4209 = vadd.f32 %v4159, 1e-05
  %v4210 = vadd.f32 %v4160, 1e-05
  %v4211 = vadd.f32 %v4161, 1e-05
  %v4212 = vadd.f32 %v4162, 1e-05
  %v4213 = vadd.f32 %v4163, 1e-05
  %v4214 = vadd.f32 %v4164, 1e-05
  %v4215 = vadd.f32 %v4165, 1e-05
  %v4216 = vadd.f32 %v4166, 1e-05
  %v4217 = vadd.f32 %v4167, 1e-05
  %v4218 = vadd.f32 %v4168, 1e-05
  %v4219 = vadd.f32 %v4169, 1e-05
  %v4220 = vadd.f32 %v4170, 1e-05
  %v4221 = vadd.f32 %v4171, 1e-05
  %v4222 = vadd.f32 %v4172, 1e-05
  %v4223 = vrsqrt.pop %v4198
  %v4224 = vrsqrt.pop %v4199
  %v4225 = vrsqrt.pop %v4200
  %v4226 = vrsqrt.pop %v4201
  %v4227 = vrsqrt.pop %v4202
  %v4228 = vrsqrt.pop %v4203
  %v4229 = vrsqrt.pop %v4204
  %v4230 = vrsqrt.pop %v4205
  %v4231 = vrsqrt.pop %v4206
  %v4232 = vrsqrt.pop %v4207
  %v4233 = vrsqrt.pop %v4208
  %v4234 = vrsqrt.pop %v4209
  %v4235 = vrsqrt.pop %v4210
  %v4236 = vrsqrt.pop %v4211
  %v4237 = vrsqrt.pop %v4212
  %v4238 = vrsqrt.pop %v4213
  %v4239 = vrsqrt.pop %v4214
  %v4240 = vrsqrt.pop %v4215
  %v4241 = vrsqrt.pop %v4216
  %v4242 = vrsqrt.pop %v4217
  %v4243 = vrsqrt.pop %v4218
  %v4244 = vrsqrt.pop %v4219
  %v4245 = vrsqrt.pop %v4220
  %v4246 = vrsqrt.pop %v4221
  %v4247 = vrsqrt.pop %v4222
  %v4248 = vmul.f32 %v4173, %v4223
  %v4249 = vmul.f32 %v4174, %v4224
  %v4250 = vmul.f32 %v4175, %v4225
  %v4251 = vmul.f32 %v4176, %v4226
  %v4252 = vmul.f32 %v4177, %v4227
  %v4253 = vmul.f32 %v4178, %v4228
  %v4254 = vmul.f32 %v4179, %v4229
  %v4255 = vmul.f32 %v4180, %v4230
  %v4256 = vmul.f32 %v4181, %v4231
  %v4257 = vmul.f32 %v4182, %v4232
  %v4258 = vmul.f32 %v4183, %v4233
  %v4259 = vmul.f32 %v4184, %v4234
  %v4260 = vmul.f32 %v4185, %v4235
  %v4261 = vmul.f32 %v4186, %v4236
  %v4262 = vmul.f32 %v4187, %v4237
  %v4263 = vmul.f32 %v4188, %v4238
  %v4264 = vmul.f32 %v4189, %v4239
  %v4265 = vmul.f32 %v4190, %v4240
  %v4266 = vmul.f32 %v4191, %v4241
  %v4267 = vmul.f32 %v4192, %v4242
  %v4268 = vmul.f32 %v4193, %v4243
  %v4269 = vmul.f32 %v4194, %v4244
  %v4270 = vmul.f32 %v4195, %v4245
  %v4271 = vmul.f32 %v4196, %v4246
  %v4272 = vmul.f32 %v4197, %v4247
  %v4273 = vmul.f32 %v4248, %v2521
  %v4274 = vmul.f32 %v4249, %v2521
  %v4275 = vmul.f32 %v4250, %v2521
  %v4276 = vmul.f32 %v4251, %v2521
  %v4277 = vmul.f32 %v4252, %v2521
  %v4278 = vmul.f32 %v4253, %v2521
  %v4279 = vmul.f32 %v4254, %v2521
  %v4280 = vmul.f32 %v4255, %v2521
  %v4281 = vmul.f32 %v4256, %v2521
  %v4282 = vmul.f32 %v4257, %v2521
  %v4283 = vmul.f32 %v4258, %v2521
  %v4284 = vmul.f32 %v4259, %v2521
  %v4285 = vmul.f32 %v4260, %v2521
  %v4286 = vmul.f32 %v4261, %v2521
  %v4287 = vmul.f32 %v4262, %v2521
  %v4288 = vmul.f32 %v4263, %v2521
  %v4289 = vmul.f32 %v4264, %v2521
  %v4290 = vmul.f32 %v4265, %v2521
  %v4291 = vmul.f32 %v4266, %v2521
  %v4292 = vmul.f32 %v4267, %v2521
  %v4293 = vmul.f32 %v4268, %v2521
  %v4294 = vmul.f32 %v4269, %v2521
  %v4295 = vmul.f32 %v4270, %v2521
  %v4296 = vmul.f32 %v4271, %v2521
  %v4297 = vmul.f32 %v4272, %v2521
  %v4298 = vadd.f32 %v4273, %v2552
  %v4299 = vadd.f32 %v4274, %v2552
  %v4300 = vadd.f32 %v4275, %v2552
  %v4301 = vadd.f32 %v4276, %v2552
  %v4302 = vadd.f32 %v4277, %v2552
  %v4303 = vadd.f32 %v4278, %v2552
  %v4304 = vadd.f32 %v4279, %v2552
  %v4305 = vadd.f32 %v4280, %v2552
  %v4306 = vadd.f32 %v4281, %v2552
  %v4307 = vadd.f32 %v4282, %v2552
  %v4308 = vadd.f32 %v4283, %v2552
  %v4309 = vadd.f32 %v4284, %v2552
  %v4310 = vadd.f32 %v4285, %v2552
  %v4311 = vadd.f32 %v4286, %v2552
  %v4312 = vadd.f32 %v4287, %v2552
  %v4313 = vadd.f32 %v4288, %v2552
  %v4314 = vadd.f32 %v4289, %v2552
  %v4315 = vadd.f32 %v4290, %v2552
  %v4316 = vadd.f32 %v4291, %v2552
  %v4317 = vadd.f32 %v4292, %v2552
  %v4318 = vadd.f32 %v4293, %v2552
  %v4319 = vadd.f32 %v4294, %v2552
  %v4320 = vadd.f32 %v4295, %v2552
  %v4321 = vadd.f32 %v4296, %v2552
  %v4322 = vadd.f32 %v4297, %v2552
  %v4323 = vmax.f32 %v4298, 0.0
  %v4324 = vmax.f32 %v4299, 0.0
  %v4325 = vmax.f32 %v4300, 0.0
  %v4326 = vmax.f32 %v4301, 0.0
  %v4327 = vmax.f32 %v4302, 0.0
  %v4328 = vmax.f32 %v4303, 0.0
  %v4329 = vmax.f32 %v4304, 0.0
  %v4330 = vmax.f32 %v4305, 0.0
  %v4331 = vmax.f32 %v4306, 0.0
  %v4332 = vmax.f32 %v4307, 0.0
  %v4333 = vmax.f32 %v4308, 0.0
  %v4334 = vmax.f32 %v4309, 0.0
  %v4335 = vmax.f32 %v4310, 0.0
  %v4336 = vmax.f32 %v4311, 0.0
  %v4337 = vmax.f32 %v4312, 0.0
  %v4338 = vmax.f32 %v4313, 0.0
  %v4339 = vmax.f32 %v4314, 0.0
  %v4340 = vmax.f32 %v4315, 0.0
  %v4341 = vmax.f32 %v4316, 0.0
  %v4342 = vmax.f32 %v4317, 0.0
  %v4343 = vmax.f32 %v4318, 0.0
  %v4344 = vmax.f32 %v4319, 0.0
  %v4345 = vmax.f32 %v4320, 0.0
  %v4346 = vmax.f32 %v4321, 0.0
  %v4347 = vmax.f32 %v4322, 0.0
  %v4348 = vpack.c.bf16 %v4324, %v4323
  %v4349 = vpack.c.bf16 %v4326, %v4325
  %v4350 = vpack.c.bf16 %v4328, %v4327
  %v4351 = vpack.c.bf16 %v4330, %v4329
  %v4352 = vpack.c.bf16 %v4332, %v4331
  %v4353 = vpack.c.bf16 %v4334, %v4333
  %v4354 = vpack.c.bf16 %v4336, %v4335
  %v4355 = vpack.c.bf16 %v4338, %v4337
  %v4356 = vpack.c.bf16 %v4340, %v4339
  %v4357 = vpack.c.bf16 %v4342, %v4341
  %v4358 = vpack.c.bf16 %v4344, %v4343
  %v4359 = vpack.c.bf16 %v4346, %v4345
  %v4360 = vpack.c.bf16 %v4347, %v4347
  %s4361 = scalar_lea.vmem %s15, 64
  %v4362 = vld [vmem:[%s4361] sm:$0xf]
  %v4363 = vld [vmem:[%s4361 + $0x4] sm:$0xf]
  %v4364 = vld [vmem:[%s4361 + $0x8] sm:$0xf]
  %v4365 = vld [vmem:[%s4361 + $0xc] sm:$0xf]
  %v4366 = vld [vmem:[%s4361 + $0x10] sm:$0xf]
  %v4367 = vld [vmem:[%s4361 + $0x14] sm:$0xf]
  %v4368 = vld [vmem:[%s4361 + $0x18] sm:$0xf]
  %v4369 = vld [vmem:[%s4361 + $0x1c] sm:$0xf]
  %v4370 = vld [vmem:[%s4361 + $0x20] sm:$0xf]
  %v4371 = vld [vmem:[%s4361 + $0x24] sm:$0xf]
  %v4372 = vld [vmem:[%s4361 + $0x28] sm:$0xf]
  %v4373 = vld [vmem:[%s4361 + $0x2c] sm:$0xf]
  %v4374 = vld [vmem:[%s4361 + $0x30] sm:$0xf]
  %v4375 = vld [vmem:[%s4361 + $0x34] sm:$0xf]
  %v4376 = vld [vmem:[%s4361 + $0x38] sm:$0xf]
  %v4377 = vld [vmem:[%s4361 + $0x3c] sm:$0xf]
  %s4378 = scalar_lea.vmem %s16, 1
  %v4379 = vld [vmem:[%s4378] sm:$0x1]
  %v4381 = vlaneseq
  %v4382 = vshrl.u32 %v4381, 7
  %v4383 = vsub.s32 0, %v4382
  %v4384 = vrot.slane %v4379, %v4383
  %v4402 = vunpack.c.l.b16 %v4362
  %v4403 = vunpack.c.l.b16 %v4363
  %v4404 = vunpack.c.l.b16 %v4364
  %v4405 = vunpack.c.l.b16 %v4365
  %v4406 = vunpack.c.l.b16 %v4366
  %v4407 = vunpack.c.l.b16 %v4367
  %v4408 = vunpack.c.l.b16 %v4368
  %v4409 = vunpack.c.l.b16 %v4369
  %v4410 = vunpack.c.l.b16 %v4370
  %v4411 = vunpack.c.l.b16 %v4371
  %v4412 = vunpack.c.l.b16 %v4372
  %v4413 = vunpack.c.l.b16 %v4373
  %v4414 = vunpack.c.l.b16 %v4374
  %v4415 = vunpack.c.l.b16 %v4375
  %v4416 = vunpack.c.l.b16 %v4376
  %v4417 = vunpack.c.l.b16 %v4377
  %v4418 = vpack.c.b16 %v4403, %v4402
  %v4419 = vpack.c.b16 %v4405, %v4404
  %v4420 = vpack.c.b16 %v4407, %v4406
  %v4421 = vpack.c.b16 %v4409, %v4408
  %v4422 = vpack.c.b16 %v4411, %v4410
  %v4423 = vpack.c.b16 %v4413, %v4412
  %v4424 = vpack.c.b16 %v4415, %v4414
  %v4425 = vpack.c.b16 %v4417, %v4416
  %4434 = vmatprep.subr.bf16.mxu0 0
  %4435 = vmatpush1.bf16.msra.mxu0 %v4425
  %4436 = vmatprep.subr.bf16.mxu0 0
  %4437 = vmatpush1.bf16.msra.mxu0 %v4424
  %4438 = vmatprep.subr.bf16.mxu0 0
  %4439 = vmatpush1.bf16.msra.mxu0 %v4423
  %4440 = vmatprep.subr.bf16.mxu0 0
  %4441 = vmatpush1.bf16.msra.mxu0 %v4422
  %4442 = vmatprep.subr.bf16.mxu0 0
  %4443 = vmatpush1.bf16.msra.mxu0 %v4421
  %4444 = vmatprep.subr.bf16.mxu0 0
  %4445 = vmatpush1.bf16.msra.mxu0 %v4420
  %4446 = vmatprep.subr.bf16.mxu0 0
  %4447 = vmatpush1.bf16.msra.mxu0 %v4419
  %4448 = vmatprep.subr.bf16.mxu0 0
  %4449 = vmatpush1.bf16.msra.mxu0 %v4418
  %4450 = vmatprep.subr.bf16.mxu0 0
  %4451 = vmatpush2.bf16.msra.mxu0 0
  %4452 = vmatprep.subr.bf16.mxu0 0
  %4453 = vmatpush2.bf16.msra.mxu0 0
  %4454 = vmatprep.subr.bf16.mxu0 0
  %4455 = vmatpush2.bf16.msra.mxu0 0
  %4456 = vmatprep.subr.bf16.mxu0 0
  %4457 = vmatpush2.bf16.msra.mxu0 0
  %4458 = vmatprep.subr.bf16.mxu0 0
  %4459 = vmatpush2.bf16.msra.mxu0 0
  %4460 = vmatprep.subr.bf16.mxu0 0
  %4461 = vmatpush2.bf16.msra.mxu0 0
  %4462 = vmatprep.subr.bf16.mxu0 0
  %4463 = vmatpush2.bf16.msra.mxu0 0
  %4464 = vmatprep.subr.bf16.mxu0 0
  %4465 = vmatpush2.bf16.msra.mxu0 0
  %4466 = vmatprep.mubr.bf16.mxu0 0
  %4467 = vmatmul.mubr.bf16.gmra.mxu0 %v4348
  %v4468 = vpop.f32.mrf.mxu0
  %v4469 = vadd.f32 %v4384, %v4468
  %v4470 = vpop.f32.mrf.mxu0
  %v4471 = vpop.f32.mrf.mxu0
  %v4472 = vadd.f32 %v4384, %v4471
  %v4473 = vpop.f32.mrf.mxu0
  %4474 = vmatprep.mubr.bf16.mxu0 0
  %4475 = vmatmul.mubr.bf16.gmra.mxu0 %v4349
  %v4476 = vpop.f32.mrf.mxu0
  %v4477 = vadd.f32 %v4384, %v4476
  %v4478 = vpop.f32.mrf.mxu0
  %v4479 = vpop.f32.mrf.mxu0
  %v4480 = vadd.f32 %v4384, %v4479
  %v4481 = vpop.f32.mrf.mxu0
  %4482 = vmatprep.mubr.bf16.mxu0 0
  %4483 = vmatmul.mubr.bf16.gmra.mxu0 %v4350
  %v4484 = vpop.f32.mrf.mxu0
  %v4485 = vadd.f32 %v4384, %v4484
  %v4486 = vpop.f32.mrf.mxu0
  %v4487 = vpop.f32.mrf.mxu0
  %v4488 = vadd.f32 %v4384, %v4487
  %v4489 = vpop.f32.mrf.mxu0
  %4490 = vmatprep.mubr.bf16.mxu0 0
  %4491 = vmatmul.mubr.bf16.gmra.mxu0 %v4351
  %v4492 = vpop.f32.mrf.mxu0
  %v4493 = vadd.f32 %v4384, %v4492
  %v4494 = vpop.f32.mrf.mxu0
  %v4495 = vpop.f32.mrf.mxu0
  %v4496 = vadd.f32 %v4384, %v4495
  %v4497 = vpop.f32.mrf.mxu0
  %4498 = vmatprep.mubr.bf16.mxu0 0
  %4499 = vmatmul.mubr.bf16.gmra.mxu0 %v4352
  %v4500 = vpop.f32.mrf.mxu0
  %v4501 = vadd.f32 %v4384, %v4500
  %v4502 = vpop.f32.mrf.mxu0
  %v4503 = vpop.f32.mrf.mxu0
  %v4504 = vadd.f32 %v4384, %v4503
  %v4505 = vpop.f32.mrf.mxu0
  %4506 = vmatprep.mubr.bf16.mxu0 0
  %4507 = vmatmul.mubr.bf16.gmra.mxu0 %v4353
  %v4508 = vpop.f32.mrf.mxu0
  %v4509 = vadd.f32 %v4384, %v4508
  %v4510 = vpop.f32.mrf.mxu0
  %v4511 = vpop.f32.mrf.mxu0
  %v4512 = vadd.f32 %v4384, %v4511
  %v4513 = vpop.f32.mrf.mxu0
  %4514 = vmatprep.mubr.bf16.mxu0 0
  %4515 = vmatmul.mubr.bf16.gmra.mxu0 %v4354
  %v4516 = vpop.f32.mrf.mxu0
  %v4517 = vadd.f32 %v4384, %v4516
  %v4518 = vpop.f32.mrf.mxu0
  %v4519 = vpop.f32.mrf.mxu0
  %v4520 = vadd.f32 %v4384, %v4519
  %v4521 = vpop.f32.mrf.mxu0
  %4522 = vmatprep.mubr.bf16.mxu0 0
  %4523 = vmatmul.mubr.bf16.gmra.mxu0 %v4355
  %v4524 = vpop.f32.mrf.mxu0
  %v4525 = vadd.f32 %v4384, %v4524
  %v4526 = vpop.f32.mrf.mxu0
  %v4527 = vpop.f32.mrf.mxu0
  %v4528 = vadd.f32 %v4384, %v4527
  %v4529 = vpop.f32.mrf.mxu0
  %4530 = vmatprep.mubr.bf16.mxu0 0
  %4531 = vmatmul.mubr.bf16.gmra.mxu0 %v4356
  %v4532 = vpop.f32.mrf.mxu0
  %v4533 = vadd.f32 %v4384, %v4532
  %v4534 = vpop.f32.mrf.mxu0
  %v4535 = vpop.f32.mrf.mxu0
  %v4536 = vadd.f32 %v4384, %v4535
  %v4537 = vpop.f32.mrf.mxu0
  %4538 = vmatprep.mubr.bf16.mxu0 0
  %4539 = vmatmul.mubr.bf16.gmra.mxu0 %v4357
  %v4540 = vpop.f32.mrf.mxu0
  %v4541 = vadd.f32 %v4384, %v4540
  %v4542 = vpop.f32.mrf.mxu0
  %v4543 = vpop.f32.mrf.mxu0
  %v4544 = vadd.f32 %v4384, %v4543
  %v4545 = vpop.f32.mrf.mxu0
  %4546 = vmatprep.mubr.bf16.mxu0 0
  %4547 = vmatmul.mubr.bf16.gmra.mxu0 %v4358
  %v4548 = vpop.f32.mrf.mxu0
  %v4549 = vadd.f32 %v4384, %v4548
  %v4550 = vpop.f32.mrf.mxu0
  %v4551 = vpop.f32.mrf.mxu0
  %v4552 = vadd.f32 %v4384, %v4551
  %v4553 = vpop.f32.mrf.mxu0
  %4554 = vmatprep.mubr.bf16.mxu0 0
  %4555 = vmatmul.mubr.bf16.gmra.mxu0 %v4359
  %v4556 = vpop.f32.mrf.mxu0
  %v4557 = vadd.f32 %v4384, %v4556
  %v4558 = vpop.f32.mrf.mxu0
  %v4559 = vpop.f32.mrf.mxu0
  %v4560 = vadd.f32 %v4384, %v4559
  %v4561 = vpop.f32.mrf.mxu0
  %4562 = vmatprep.mubr.bf16.mxu0 0
  %4563 = vmatmul.mubr.bf16.gmra.mxu0 %v4360
  %v4564 = vpop.f32.mrf.mxu0
  %v4565 = vadd.f32 %v4384, %v4564
  %v4566 = vpop.f32.mrf.mxu0
  %v4567 = vpop.f32.mrf.mxu0
  %v4568 = vpop.f32.mrf.mxu0
  %4569 = vdwg.mxu0
  %4570 = vadd.xlane.f32.xlu0 %v4469
  %v4571 = vpop.xlane.xlu0 %4570
  %4572 = vadd.xlane.f32.xlu0 %v4472
  %v4573 = vpop.xlane.xlu0 %4572
  %4574 = vadd.xlane.f32.xlu0 %v4477
  %v4575 = vpop.xlane.xlu0 %4574
  %4576 = vadd.xlane.f32.xlu0 %v4480
  %v4577 = vpop.xlane.xlu0 %4576
  %4578 = vadd.xlane.f32.xlu0 %v4485
  %v4579 = vpop.xlane.xlu0 %4578
  %4580 = vadd.xlane.f32.xlu0 %v4488
  %v4581 = vpop.xlane.xlu0 %4580
  %4582 = vadd.xlane.f32.xlu0 %v4493
  %v4583 = vpop.xlane.xlu0 %4582
  %4584 = vadd.xlane.f32.xlu0 %v4496
  %v4585 = vpop.xlane.xlu0 %4584
  %4586 = vadd.xlane.f32.xlu0 %v4501
  %v4587 = vpop.xlane.xlu0 %4586
  %4588 = vadd.xlane.f32.xlu0 %v4504
  %v4589 = vpop.xlane.xlu0 %4588
  %4590 = vadd.xlane.f32.xlu0 %v4509
  %v4591 = vpop.xlane.xlu0 %4590
  %4592 = vadd.xlane.f32.xlu0 %v4512
  %v4593 = vpop.xlane.xlu0 %4592
  %4594 = vadd.xlane.f32.xlu0 %v4517
  %v4595 = vpop.xlane.xlu0 %4594
  %4596 = vadd.xlane.f32.xlu0 %v4520
  %v4597 = vpop.xlane.xlu0 %4596
  %4598 = vadd.xlane.f32.xlu0 %v4525
  %v4599 = vpop.xlane.xlu0 %4598
  %4600 = vadd.xlane.f32.xlu0 %v4528
  %v4601 = vpop.xlane.xlu0 %4600
  %4602 = vadd.xlane.f32.xlu0 %v4533
  %v4603 = vpop.xlane.xlu0 %4602
  %4604 = vadd.xlane.f32.xlu0 %v4536
  %v4605 = vpop.xlane.xlu0 %4604
  %4606 = vadd.xlane.f32.xlu0 %v4541
  %v4607 = vpop.xlane.xlu0 %4606
  %4608 = vadd.xlane.f32.xlu0 %v4544
  %v4609 = vpop.xlane.xlu0 %4608
  %4610 = vadd.xlane.f32.xlu0 %v4549
  %v4611 = vpop.xlane.xlu0 %4610
  %4612 = vadd.xlane.f32.xlu0 %v4552
  %v4613 = vpop.xlane.xlu0 %4612
  %4614 = vadd.xlane.f32.xlu0 %v4557
  %v4615 = vpop.xlane.xlu0 %4614
  %4616 = vadd.xlane.f32.xlu0 %v4560
  %v4617 = vpop.xlane.xlu0 %4616
  %4618 = vadd.xlane.f32.xlu0 %v4565
  %v4619 = vpop.xlane.xlu0 %4618
  %v4620 = vmul.f32 %v4571, 0.03125
  %v4621 = vmul.f32 %v4573, 0.03125
  %v4622 = vmul.f32 %v4575, 0.03125
  %v4623 = vmul.f32 %v4577, 0.03125
  %v4624 = vmul.f32 %v4579, 0.03125
  %v4625 = vmul.f32 %v4581, 0.03125
  %v4626 = vmul.f32 %v4583, 0.03125
  %v4627 = vmul.f32 %v4585, 0.03125
  %v4628 = vmul.f32 %v4587, 0.03125
  %v4629 = vmul.f32 %v4589, 0.03125
  %v4630 = vmul.f32 %v4591, 0.03125
  %v4631 = vmul.f32 %v4593, 0.03125
  %v4632 = vmul.f32 %v4595, 0.03125
  %v4633 = vmul.f32 %v4597, 0.03125
  %v4634 = vmul.f32 %v4599, 0.03125
  %v4635 = vmul.f32 %v4601, 0.03125
  %v4636 = vmul.f32 %v4603, 0.03125
  %v4637 = vmul.f32 %v4605, 0.03125
  %v4638 = vmul.f32 %v4607, 0.03125
  %v4639 = vmul.f32 %v4609, 0.03125
  %v4640 = vmul.f32 %v4611, 0.03125
  %v4641 = vmul.f32 %v4613, 0.03125
  %v4642 = vmul.f32 %v4615, 0.03125
  %v4643 = vmul.f32 %v4617, 0.03125
  %v4644 = vmul.f32 %v4619, 0.03125
  %v4645 = vmul.f32 %v4469, %v4469
  %v4646 = vmul.f32 %v4472, %v4472
  %v4647 = vmul.f32 %v4477, %v4477
  %v4648 = vmul.f32 %v4480, %v4480
  %v4649 = vmul.f32 %v4485, %v4485
  %v4650 = vmul.f32 %v4488, %v4488
  %v4651 = vmul.f32 %v4493, %v4493
  %v4652 = vmul.f32 %v4496, %v4496
  %v4653 = vmul.f32 %v4501, %v4501
  %v4654 = vmul.f32 %v4504, %v4504
  %v4655 = vmul.f32 %v4509, %v4509
  %v4656 = vmul.f32 %v4512, %v4512
  %v4657 = vmul.f32 %v4517, %v4517
  %v4658 = vmul.f32 %v4520, %v4520
  %v4659 = vmul.f32 %v4525, %v4525
  %v4660 = vmul.f32 %v4528, %v4528
  %v4661 = vmul.f32 %v4533, %v4533
  %v4662 = vmul.f32 %v4536, %v4536
  %v4663 = vmul.f32 %v4541, %v4541
  %v4664 = vmul.f32 %v4544, %v4544
  %v4665 = vmul.f32 %v4549, %v4549
  %v4666 = vmul.f32 %v4552, %v4552
  %v4667 = vmul.f32 %v4557, %v4557
  %v4668 = vmul.f32 %v4560, %v4560
  %v4669 = vmul.f32 %v4565, %v4565
  %4670 = vadd.xlane.f32.xlu0 %v4645
  %v4671 = vpop.xlane.xlu0 %4670
  %4672 = vadd.xlane.f32.xlu0 %v4646
  %v4673 = vpop.xlane.xlu0 %4672
  %4674 = vadd.xlane.f32.xlu0 %v4647
  %v4675 = vpop.xlane.xlu0 %4674
  %4676 = vadd.xlane.f32.xlu0 %v4648
  %v4677 = vpop.xlane.xlu0 %4676
  %4678 = vadd.xlane.f32.xlu0 %v4649
  %v4679 = vpop.xlane.xlu0 %4678
  %4680 = vadd.xlane.f32.xlu0 %v4650
  %v4681 = vpop.xlane.xlu0 %4680
  %4682 = vadd.xlane.f32.xlu0 %v4651
  %v4683 = vpop.xlane.xlu0 %4682
  %4684 = vadd.xlane.f32.xlu0 %v4652
  %v4685 = vpop.xlane.xlu0 %4684
  %4686 = vadd.xlane.f32.xlu0 %v4653
  %v4687 = vpop.xlane.xlu0 %4686
  %4688 = vadd.xlane.f32.xlu0 %v4654
  %v4689 = vpop.xlane.xlu0 %4688
  %4690 = vadd.xlane.f32.xlu0 %v4655
  %v4691 = vpop.xlane.xlu0 %4690
  %4692 = vadd.xlane.f32.xlu0 %v4656
  %v4693 = vpop.xlane.xlu0 %4692
  %4694 = vadd.xlane.f32.xlu0 %v4657
  %v4695 = vpop.xlane.xlu0 %4694
  %4696 = vadd.xlane.f32.xlu0 %v4658
  %v4697 = vpop.xlane.xlu0 %4696
  %4698 = vadd.xlane.f32.xlu0 %v4659
  %v4699 = vpop.xlane.xlu0 %4698
  %4700 = vadd.xlane.f32.xlu0 %v4660
  %v4701 = vpop.xlane.xlu0 %4700
  %4702 = vadd.xlane.f32.xlu0 %v4661
  %v4703 = vpop.xlane.xlu0 %4702
  %4704 = vadd.xlane.f32.xlu0 %v4662
  %v4705 = vpop.xlane.xlu0 %4704
  %4706 = vadd.xlane.f32.xlu0 %v4663
  %v4707 = vpop.xlane.xlu0 %4706
  %4708 = vadd.xlane.f32.xlu0 %v4664
  %v4709 = vpop.xlane.xlu0 %4708
  %4710 = vadd.xlane.f32.xlu0 %v4665
  %v4711 = vpop.xlane.xlu0 %4710
  %4712 = vadd.xlane.f32.xlu0 %v4666
  %v4713 = vpop.xlane.xlu0 %4712
  %4714 = vadd.xlane.f32.xlu0 %v4667
  %v4715 = vpop.xlane.xlu0 %4714
  %4716 = vadd.xlane.f32.xlu0 %v4668
  %v4717 = vpop.xlane.xlu0 %4716
  %4718 = vadd.xlane.f32.xlu0 %v4669
  %v4719 = vpop.xlane.xlu0 %4718
  %v4720 = vmul.f32 %v4671, 0.03125
  %v4721 = vmul.f32 %v4673, 0.03125
  %v4722 = vmul.f32 %v4675, 0.03125
  %v4723 = vmul.f32 %v4677, 0.03125
  %v4724 = vmul.f32 %v4679, 0.03125
  %v4725 = vmul.f32 %v4681, 0.03125
  %v4726 = vmul.f32 %v4683, 0.03125
  %v4727 = vmul.f32 %v4685, 0.03125
  %v4728 = vmul.f32 %v4687, 0.03125
  %v4729 = vmul.f32 %v4689, 0.03125
  %v4730 = vmul.f32 %v4691, 0.03125
  %v4731 = vmul.f32 %v4693, 0.03125
  %v4732 = vmul.f32 %v4695, 0.03125
  %v4733 = vmul.f32 %v4697, 0.03125
  %v4734 = vmul.f32 %v4699, 0.03125
  %v4735 = vmul.f32 %v4701, 0.03125
  %v4736 = vmul.f32 %v4703, 0.03125
  %v4737 = vmul.f32 %v4705, 0.03125
  %v4738 = vmul.f32 %v4707, 0.03125
  %v4739 = vmul.f32 %v4709, 0.03125
  %v4740 = vmul.f32 %v4711, 0.03125
  %v4741 = vmul.f32 %v4713, 0.03125
  %v4742 = vmul.f32 %v4715, 0.03125
  %v4743 = vmul.f32 %v4717, 0.03125
  %v4744 = vmul.f32 %v4719, 0.03125
  %v4745 = vmul.f32 %v4620, %v4620
  %v4746 = vmul.f32 %v4621, %v4621
  %v4747 = vmul.f32 %v4622, %v4622
  %v4748 = vmul.f32 %v4623, %v4623
  %v4749 = vmul.f32 %v4624, %v4624
  %v4750 = vmul.f32 %v4625, %v4625
  %v4751 = vmul.f32 %v4626, %v4626
  %v4752 = vmul.f32 %v4627, %v4627
  %v4753 = vmul.f32 %v4628, %v4628
  %v4754 = vmul.f32 %v4629, %v4629
  %v4755 = vmul.f32 %v4630, %v4630
  %v4756 = vmul.f32 %v4631, %v4631
  %v4757 = vmul.f32 %v4632, %v4632
  %v4758 = vmul.f32 %v4633, %v4633
  %v4759 = vmul.f32 %v4634, %v4634
  %v4760 = vmul.f32 %v4635, %v4635
  %v4761 = vmul.f32 %v4636, %v4636
  %v4762 = vmul.f32 %v4637, %v4637
  %v4763 = vmul.f32 %v4638, %v4638
  %v4764 = vmul.f32 %v4639, %v4639
  %v4765 = vmul.f32 %v4640, %v4640
  %v4766 = vmul.f32 %v4641, %v4641
  %v4767 = vmul.f32 %v4642, %v4642
  %v4768 = vmul.f32 %v4643, %v4643
  %v4769 = vmul.f32 %v4644, %v4644
  %v4770 = vsub.f32 %v4720, %v4745
  %v4771 = vsub.f32 %v4721, %v4746
  %v4772 = vsub.f32 %v4722, %v4747
  %v4773 = vsub.f32 %v4723, %v4748
  %v4774 = vsub.f32 %v4724, %v4749
  %v4775 = vsub.f32 %v4725, %v4750
  %v4776 = vsub.f32 %v4726, %v4751
  %v4777 = vsub.f32 %v4727, %v4752
  %v4778 = vsub.f32 %v4728, %v4753
  %v4779 = vsub.f32 %v4729, %v4754
  %v4780 = vsub.f32 %v4730, %v4755
  %v4781 = vsub.f32 %v4731, %v4756
  %v4782 = vsub.f32 %v4732, %v4757
  %v4783 = vsub.f32 %v4733, %v4758
  %v4784 = vsub.f32 %v4734, %v4759
  %v4785 = vsub.f32 %v4735, %v4760
  %v4786 = vsub.f32 %v4736, %v4761
  %v4787 = vsub.f32 %v4737, %v4762
  %v4788 = vsub.f32 %v4738, %v4763
  %v4789 = vsub.f32 %v4739, %v4764
  %v4790 = vsub.f32 %v4740, %v4765
  %v4791 = vsub.f32 %v4741, %v4766
  %v4792 = vsub.f32 %v4742, %v4767
  %v4793 = vsub.f32 %v4743, %v4768
  %v4794 = vsub.f32 %v4744, %v4769
  %v4795 = vmax.f32 %v4770, 0.0
  %v4796 = vmax.f32 %v4771, 0.0
  %v4797 = vmax.f32 %v4772, 0.0
  %v4798 = vmax.f32 %v4773, 0.0
  %v4799 = vmax.f32 %v4774, 0.0
  %v4800 = vmax.f32 %v4775, 0.0
  %v4801 = vmax.f32 %v4776, 0.0
  %v4802 = vmax.f32 %v4777, 0.0
  %v4803 = vmax.f32 %v4778, 0.0
  %v4804 = vmax.f32 %v4779, 0.0
  %v4805 = vmax.f32 %v4780, 0.0
  %v4806 = vmax.f32 %v4781, 0.0
  %v4807 = vmax.f32 %v4782, 0.0
  %v4808 = vmax.f32 %v4783, 0.0
  %v4809 = vmax.f32 %v4784, 0.0
  %v4810 = vmax.f32 %v4785, 0.0
  %v4811 = vmax.f32 %v4786, 0.0
  %v4812 = vmax.f32 %v4787, 0.0
  %v4813 = vmax.f32 %v4788, 0.0
  %v4814 = vmax.f32 %v4789, 0.0
  %v4815 = vmax.f32 %v4790, 0.0
  %v4816 = vmax.f32 %v4791, 0.0
  %v4817 = vmax.f32 %v4792, 0.0
  %v4818 = vmax.f32 %v4793, 0.0
  %v4819 = vmax.f32 %v4794, 0.0
  %v4820 = vsub.f32 %v4469, %v4620
  %v4821 = vsub.f32 %v4472, %v4621
  %v4822 = vsub.f32 %v4477, %v4622
  %v4823 = vsub.f32 %v4480, %v4623
  %v4824 = vsub.f32 %v4485, %v4624
  %v4825 = vsub.f32 %v4488, %v4625
  %v4826 = vsub.f32 %v4493, %v4626
  %v4827 = vsub.f32 %v4496, %v4627
  %v4828 = vsub.f32 %v4501, %v4628
  %v4829 = vsub.f32 %v4504, %v4629
  %v4830 = vsub.f32 %v4509, %v4630
  %v4831 = vsub.f32 %v4512, %v4631
  %v4832 = vsub.f32 %v4517, %v4632
  %v4833 = vsub.f32 %v4520, %v4633
  %v4834 = vsub.f32 %v4525, %v4634
  %v4835 = vsub.f32 %v4528, %v4635
  %v4836 = vsub.f32 %v4533, %v4636
  %v4837 = vsub.f32 %v4536, %v4637
  %v4838 = vsub.f32 %v4541, %v4638
  %v4839 = vsub.f32 %v4544, %v4639
  %v4840 = vsub.f32 %v4549, %v4640
  %v4841 = vsub.f32 %v4552, %v4641
  %v4842 = vsub.f32 %v4557, %v4642
  %v4843 = vsub.f32 %v4560, %v4643
  %v4844 = vsub.f32 %v4565, %v4644
  %v4845 = vadd.f32 %v4795, 1e-05
  %v4846 = vadd.f32 %v4796, 1e-05
  %v4847 = vadd.f32 %v4797, 1e-05
  %v4848 = vadd.f32 %v4798, 1e-05
  %v4849 = vadd.f32 %v4799, 1e-05
  %v4850 = vadd.f32 %v4800, 1e-05
  %v4851 = vadd.f32 %v4801, 1e-05
  %v4852 = vadd.f32 %v4802, 1e-05
  %v4853 = vadd.f32 %v4803, 1e-05
  %v4854 = vadd.f32 %v4804, 1e-05
  %v4855 = vadd.f32 %v4805, 1e-05
  %v4856 = vadd.f32 %v4806, 1e-05
  %v4857 = vadd.f32 %v4807, 1e-05
  %v4858 = vadd.f32 %v4808, 1e-05
  %v4859 = vadd.f32 %v4809, 1e-05
  %v4860 = vadd.f32 %v4810, 1e-05
  %v4861 = vadd.f32 %v4811, 1e-05
  %v4862 = vadd.f32 %v4812, 1e-05
  %v4863 = vadd.f32 %v4813, 1e-05
  %v4864 = vadd.f32 %v4814, 1e-05
  %v4865 = vadd.f32 %v4815, 1e-05
  %v4866 = vadd.f32 %v4816, 1e-05
  %v4867 = vadd.f32 %v4817, 1e-05
  %v4868 = vadd.f32 %v4818, 1e-05
  %v4869 = vadd.f32 %v4819, 1e-05
  %v4870 = vrsqrt.pop %v4845
  %v4871 = vrsqrt.pop %v4846
  %v4872 = vrsqrt.pop %v4847
  %v4873 = vrsqrt.pop %v4848
  %v4874 = vrsqrt.pop %v4849
  %v4875 = vrsqrt.pop %v4850
  %v4876 = vrsqrt.pop %v4851
  %v4877 = vrsqrt.pop %v4852
  %v4878 = vrsqrt.pop %v4853
  %v4879 = vrsqrt.pop %v4854
  %v4880 = vrsqrt.pop %v4855
  %v4881 = vrsqrt.pop %v4856
  %v4882 = vrsqrt.pop %v4857
  %v4883 = vrsqrt.pop %v4858
  %v4884 = vrsqrt.pop %v4859
  %v4885 = vrsqrt.pop %v4860
  %v4886 = vrsqrt.pop %v4861
  %v4887 = vrsqrt.pop %v4862
  %v4888 = vrsqrt.pop %v4863
  %v4889 = vrsqrt.pop %v4864
  %v4890 = vrsqrt.pop %v4865
  %v4891 = vrsqrt.pop %v4866
  %v4892 = vrsqrt.pop %v4867
  %v4893 = vrsqrt.pop %v4868
  %v4894 = vrsqrt.pop %v4869
  %v4895 = vmul.f32 %v4820, %v4870
  %v4896 = vmul.f32 %v4821, %v4871
  %v4897 = vmul.f32 %v4822, %v4872
  %v4898 = vmul.f32 %v4823, %v4873
  %v4899 = vmul.f32 %v4824, %v4874
  %v4900 = vmul.f32 %v4825, %v4875
  %v4901 = vmul.f32 %v4826, %v4876
  %v4902 = vmul.f32 %v4827, %v4877
  %v4903 = vmul.f32 %v4828, %v4878
  %v4904 = vmul.f32 %v4829, %v4879
  %v4905 = vmul.f32 %v4830, %v4880
  %v4906 = vmul.f32 %v4831, %v4881
  %v4907 = vmul.f32 %v4832, %v4882
  %v4908 = vmul.f32 %v4833, %v4883
  %v4909 = vmul.f32 %v4834, %v4884
  %v4910 = vmul.f32 %v4835, %v4885
  %v4911 = vmul.f32 %v4836, %v4886
  %v4912 = vmul.f32 %v4837, %v4887
  %v4913 = vmul.f32 %v4838, %v4888
  %v4914 = vmul.f32 %v4839, %v4889
  %v4915 = vmul.f32 %v4840, %v4890
  %v4916 = vmul.f32 %v4841, %v4891
  %v4917 = vmul.f32 %v4842, %v4892
  %v4918 = vmul.f32 %v4843, %v4893
  %v4919 = vmul.f32 %v4844, %v4894
  %v4920 = vmul.f32 %v4895, %v3180
  %v4921 = vmul.f32 %v4896, %v3180
  %v4922 = vmul.f32 %v4897, %v3180
  %v4923 = vmul.f32 %v4898, %v3180
  %v4924 = vmul.f32 %v4899, %v3180
  %v4925 = vmul.f32 %v4900, %v3180
  %v4926 = vmul.f32 %v4901, %v3180
  %v4927 = vmul.f32 %v4902, %v3180
  %v4928 = vmul.f32 %v4903, %v3180
  %v4929 = vmul.f32 %v4904, %v3180
  %v4930 = vmul.f32 %v4905, %v3180
  %v4931 = vmul.f32 %v4906, %v3180
  %v4932 = vmul.f32 %v4907, %v3180
  %v4933 = vmul.f32 %v4908, %v3180
  %v4934 = vmul.f32 %v4909, %v3180
  %v4935 = vmul.f32 %v4910, %v3180
  %v4936 = vmul.f32 %v4911, %v3180
  %v4937 = vmul.f32 %v4912, %v3180
  %v4938 = vmul.f32 %v4913, %v3180
  %v4939 = vmul.f32 %v4914, %v3180
  %v4940 = vmul.f32 %v4915, %v3180
  %v4941 = vmul.f32 %v4916, %v3180
  %v4942 = vmul.f32 %v4917, %v3180
  %v4943 = vmul.f32 %v4918, %v3180
  %v4944 = vmul.f32 %v4919, %v3180
  %v4945 = vadd.f32 %v4920, %v3211
  %v4946 = vadd.f32 %v4921, %v3211
  %v4947 = vadd.f32 %v4922, %v3211
  %v4948 = vadd.f32 %v4923, %v3211
  %v4949 = vadd.f32 %v4924, %v3211
  %v4950 = vadd.f32 %v4925, %v3211
  %v4951 = vadd.f32 %v4926, %v3211
  %v4952 = vadd.f32 %v4927, %v3211
  %v4953 = vadd.f32 %v4928, %v3211
  %v4954 = vadd.f32 %v4929, %v3211
  %v4955 = vadd.f32 %v4930, %v3211
  %v4956 = vadd.f32 %v4931, %v3211
  %v4957 = vadd.f32 %v4932, %v3211
  %v4958 = vadd.f32 %v4933, %v3211
  %v4959 = vadd.f32 %v4934, %v3211
  %v4960 = vadd.f32 %v4935, %v3211
  %v4961 = vadd.f32 %v4936, %v3211
  %v4962 = vadd.f32 %v4937, %v3211
  %v4963 = vadd.f32 %v4938, %v3211
  %v4964 = vadd.f32 %v4939, %v3211
  %v4965 = vadd.f32 %v4940, %v3211
  %v4966 = vadd.f32 %v4941, %v3211
  %v4967 = vadd.f32 %v4942, %v3211
  %v4968 = vadd.f32 %v4943, %v3211
  %v4969 = vadd.f32 %v4944, %v3211
  %v4970 = vmax.f32 %v4945, 0.0
  %v4971 = vmax.f32 %v4946, 0.0
  %v4972 = vmax.f32 %v4947, 0.0
  %v4973 = vmax.f32 %v4948, 0.0
  %v4974 = vmax.f32 %v4949, 0.0
  %v4975 = vmax.f32 %v4950, 0.0
  %v4976 = vmax.f32 %v4951, 0.0
  %v4977 = vmax.f32 %v4952, 0.0
  %v4978 = vmax.f32 %v4953, 0.0
  %v4979 = vmax.f32 %v4954, 0.0
  %v4980 = vmax.f32 %v4955, 0.0
  %v4981 = vmax.f32 %v4956, 0.0
  %v4982 = vmax.f32 %v4957, 0.0
  %v4983 = vmax.f32 %v4958, 0.0
  %v4984 = vmax.f32 %v4959, 0.0
  %v4985 = vmax.f32 %v4960, 0.0
  %v4986 = vmax.f32 %v4961, 0.0
  %v4987 = vmax.f32 %v4962, 0.0
  %v4988 = vmax.f32 %v4963, 0.0
  %v4989 = vmax.f32 %v4964, 0.0
  %v4990 = vmax.f32 %v4965, 0.0
  %v4991 = vmax.f32 %v4966, 0.0
  %v4992 = vmax.f32 %v4967, 0.0
  %v4993 = vmax.f32 %v4968, 0.0
  %v4994 = vmax.f32 %v4969, 0.0
  %v4995 = vpack.c.bf16 %v4971, %v4970
  %v4996 = vpack.c.bf16 %v4973, %v4972
  %v4997 = vpack.c.bf16 %v4975, %v4974
  %v4998 = vpack.c.bf16 %v4977, %v4976
  %v4999 = vpack.c.bf16 %v4979, %v4978
  %v5000 = vpack.c.bf16 %v4981, %v4980
  %v5001 = vpack.c.bf16 %v4983, %v4982
  %v5002 = vpack.c.bf16 %v4985, %v4984
  %v5003 = vpack.c.bf16 %v4987, %v4986
  %v5004 = vpack.c.bf16 %v4989, %v4988
  %v5005 = vpack.c.bf16 %v4991, %v4990
  %v5006 = vpack.c.bf16 %v4993, %v4992
  %v5007 = vpack.c.bf16 %v4994, %v4994
  %v5008 = vld [vmem:[%s19] sm:$0xf]
  %v5009 = vld [vmem:[%s19 + $0x4] sm:$0xf]
  %v5010 = vld [vmem:[%s19 + $0x8] sm:$0xf]
  %v5011 = vld [vmem:[%s19 + $0xc] sm:$0xf]
  %v5012 = vld [vmem:[%s19 + $0x10] sm:$0xf]
  %v5013 = vld [vmem:[%s19 + $0x14] sm:$0xf]
  %v5014 = vld [vmem:[%s19 + $0x18] sm:$0xf]
  %v5015 = vld [vmem:[%s19 + $0x1c] sm:$0xf]
  %v5016 = vld [vmem:[%s19 + $0x20] sm:$0xf]
  %v5017 = vld [vmem:[%s19 + $0x24] sm:$0xf]
  %v5018 = vld [vmem:[%s19 + $0x28] sm:$0xf]
  %v5019 = vld [vmem:[%s19 + $0x2c] sm:$0xf]
  %v5020 = vld [vmem:[%s19 + $0x30] sm:$0xf]
  %v5021 = vld [vmem:[%s19 + $0x34] sm:$0xf]
  %v5022 = vld [vmem:[%s19 + $0x38] sm:$0xf]
  %v5023 = vld [vmem:[%s19 + $0x3c] sm:$0xf]
  %v5024 = vld [vmem:[%s19 + $0x40] sm:$0xf]
  %v5025 = vld [vmem:[%s19 + $0x44] sm:$0xf]
  %v5026 = vld [vmem:[%s19 + $0x48] sm:$0xf]
  %v5027 = vld [vmem:[%s19 + $0x4c] sm:$0xf]
  %v5028 = vld [vmem:[%s19 + $0x50] sm:$0xf]
  %v5029 = vld [vmem:[%s19 + $0x54] sm:$0xf]
  %v5030 = vld [vmem:[%s19 + $0x58] sm:$0xf]
  %v5031 = vld [vmem:[%s19 + $0x5c] sm:$0xf]
  %v5032 = vld [vmem:[%s19 + $0x60] sm:$0xf]
  %v5033 = vld [vmem:[%s19 + $0x64] sm:$0xf]
  %v5034 = vld [vmem:[%s19 + $0x68] sm:$0xf]
  %v5035 = vld [vmem:[%s19 + $0x6c] sm:$0xf]
  %v5036 = vld [vmem:[%s19 + $0x70] sm:$0xf]
  %v5037 = vld [vmem:[%s19 + $0x74] sm:$0xf]
  %v5038 = vld [vmem:[%s19 + $0x78] sm:$0xf]
  %v5039 = vld [vmem:[%s19 + $0x7c] sm:$0xf]
  %v5040 = vld [vmem:[%s20] sm:$0x1]
  %v5042 = vlaneseq
  %v5043 = vshrl.u32 %v5042, 7
  %v5044 = vsub.s32 0, %v5043
  %v5045 = vrot.slane %v5040, %v5044
  %v5079 = vunpack.c.l.b16 %v5008
  %v5080 = vunpack.c.l.b16 %v5009
  %v5081 = vunpack.c.l.b16 %v5010
  %v5082 = vunpack.c.l.b16 %v5011
  %v5083 = vunpack.c.l.b16 %v5012
  %v5084 = vunpack.c.l.b16 %v5013
  %v5085 = vunpack.c.l.b16 %v5014
  %v5086 = vunpack.c.l.b16 %v5015
  %v5087 = vunpack.c.l.b16 %v5016
  %v5088 = vunpack.c.l.b16 %v5017
  %v5089 = vunpack.c.l.b16 %v5018
  %v5090 = vunpack.c.l.b16 %v5019
  %v5091 = vunpack.c.l.b16 %v5020
  %v5092 = vunpack.c.l.b16 %v5021
  %v5093 = vunpack.c.l.b16 %v5022
  %v5094 = vunpack.c.l.b16 %v5023
  %v5095 = vunpack.c.l.b16 %v5024
  %v5096 = vunpack.c.l.b16 %v5025
  %v5097 = vunpack.c.l.b16 %v5026
  %v5098 = vunpack.c.l.b16 %v5027
  %v5099 = vunpack.c.l.b16 %v5028
  %v5100 = vunpack.c.l.b16 %v5029
  %v5101 = vunpack.c.l.b16 %v5030
  %v5102 = vunpack.c.l.b16 %v5031
  %v5103 = vunpack.c.l.b16 %v5032
  %v5104 = vunpack.c.l.b16 %v5033
  %v5105 = vunpack.c.l.b16 %v5034
  %v5106 = vunpack.c.l.b16 %v5035
  %v5107 = vunpack.c.l.b16 %v5036
  %v5108 = vunpack.c.l.b16 %v5037
  %v5109 = vunpack.c.l.b16 %v5038
  %v5110 = vunpack.c.l.b16 %v5039
  %v5111 = vpack.c.b16 %v5080, %v5079
  %v5112 = vpack.c.b16 %v5082, %v5081
  %v5113 = vpack.c.b16 %v5084, %v5083
  %v5114 = vpack.c.b16 %v5086, %v5085
  %v5115 = vpack.c.b16 %v5088, %v5087
  %v5116 = vpack.c.b16 %v5090, %v5089
  %v5117 = vpack.c.b16 %v5092, %v5091
  %v5118 = vpack.c.b16 %v5094, %v5093
  %v5119 = vpack.c.b16 %v5096, %v5095
  %v5120 = vpack.c.b16 %v5098, %v5097
  %v5121 = vpack.c.b16 %v5100, %v5099
  %v5122 = vpack.c.b16 %v5102, %v5101
  %v5123 = vpack.c.b16 %v5104, %v5103
  %v5124 = vpack.c.b16 %v5106, %v5105
  %v5125 = vpack.c.b16 %v5108, %v5107
  %v5126 = vpack.c.b16 %v5110, %v5109
  %5143 = vmatprep.subr.bf16.mxu0 0
  %5144 = vmatpush1.bf16.msra.mxu0 %v5118
  %5145 = vmatprep.subr.bf16.mxu0 0
  %5146 = vmatpush1.bf16.msra.mxu0 %v5117
  %5147 = vmatprep.subr.bf16.mxu0 0
  %5148 = vmatpush1.bf16.msra.mxu0 %v5116
  %5149 = vmatprep.subr.bf16.mxu0 0
  %5150 = vmatpush1.bf16.msra.mxu0 %v5115
  %5151 = vmatprep.subr.bf16.mxu0 0
  %5152 = vmatpush1.bf16.msra.mxu0 %v5114
  %5153 = vmatprep.subr.bf16.mxu0 0
  %5154 = vmatpush1.bf16.msra.mxu0 %v5113
  %5155 = vmatprep.subr.bf16.mxu0 0
  %5156 = vmatpush1.bf16.msra.mxu0 %v5112
  %5157 = vmatprep.subr.bf16.mxu0 0
  %5158 = vmatpush1.bf16.msra.mxu0 %v5111
  %5159 = vmatprep.subr.bf16.mxu0 0
  %5160 = vmatpush2.bf16.msra.mxu0 %v5126
  %5161 = vmatprep.subr.bf16.mxu0 0
  %5162 = vmatpush2.bf16.msra.mxu0 %v5125
  %5163 = vmatprep.subr.bf16.mxu0 0
  %5164 = vmatpush2.bf16.msra.mxu0 %v5124
  %5165 = vmatprep.subr.bf16.mxu0 0
  %5166 = vmatpush2.bf16.msra.mxu0 %v5123
  %5167 = vmatprep.subr.bf16.mxu0 0
  %5168 = vmatpush2.bf16.msra.mxu0 %v5122
  %5169 = vmatprep.subr.bf16.mxu0 0
  %5170 = vmatpush2.bf16.msra.mxu0 %v5121
  %5171 = vmatprep.subr.bf16.mxu0 0
  %5172 = vmatpush2.bf16.msra.mxu0 %v5120
  %5173 = vmatprep.subr.bf16.mxu0 0
  %5174 = vmatpush2.bf16.msra.mxu0 %v5119
  %5175 = vmatprep.mubr.bf16.mxu0 %v4995
  %5176 = vmatmul.mubr.bf16.gmra.mxu0 %v3263
  %v5177 = vpop.f32.mrf.mxu0
  %v5178 = vadd.f32 %v5045, %v5177
  %v5179 = vpop.f32.mrf.mxu0
  %v5180 = vpop.f32.mrf.mxu0
  %v5181 = vadd.f32 %v5045, %v5180
  %v5182 = vpop.f32.mrf.mxu0
  %5183 = vmatprep.mubr.bf16.mxu0 %v4996
  %5184 = vmatmul.mubr.bf16.gmra.mxu0 %v3264
  %v5185 = vpop.f32.mrf.mxu0
  %v5186 = vadd.f32 %v5045, %v5185
  %v5187 = vpop.f32.mrf.mxu0
  %v5188 = vpop.f32.mrf.mxu0
  %v5189 = vadd.f32 %v5045, %v5188
  %v5190 = vpop.f32.mrf.mxu0
  %5191 = vmatprep.mubr.bf16.mxu0 %v4997
  %5192 = vmatmul.mubr.bf16.gmra.mxu0 %v3265
  %v5193 = vpop.f32.mrf.mxu0
  %v5194 = vadd.f32 %v5045, %v5193
  %v5195 = vpop.f32.mrf.mxu0
  %v5196 = vpop.f32.mrf.mxu0
  %v5197 = vadd.f32 %v5045, %v5196
  %v5198 = vpop.f32.mrf.mxu0
  %5199 = vmatprep.mubr.bf16.mxu0 %v4998
  %5200 = vmatmul.mubr.bf16.gmra.mxu0 %v3266
  %v5201 = vpop.f32.mrf.mxu0
  %v5202 = vadd.f32 %v5045, %v5201
  %v5203 = vpop.f32.mrf.mxu0
  %v5204 = vpop.f32.mrf.mxu0
  %v5205 = vadd.f32 %v5045, %v5204
  %v5206 = vpop.f32.mrf.mxu0
  %5207 = vmatprep.mubr.bf16.mxu0 %v4999
  %5208 = vmatmul.mubr.bf16.gmra.mxu0 %v3267
  %v5209 = vpop.f32.mrf.mxu0
  %v5210 = vadd.f32 %v5045, %v5209
  %v5211 = vpop.f32.mrf.mxu0
  %v5212 = vpop.f32.mrf.mxu0
  %v5213 = vadd.f32 %v5045, %v5212
  %v5214 = vpop.f32.mrf.mxu0
  %5215 = vmatprep.mubr.bf16.mxu0 %v5000
  %5216 = vmatmul.mubr.bf16.gmra.mxu0 %v3268
  %v5217 = vpop.f32.mrf.mxu0
  %v5218 = vadd.f32 %v5045, %v5217
  %v5219 = vpop.f32.mrf.mxu0
  %v5220 = vpop.f32.mrf.mxu0
  %v5221 = vadd.f32 %v5045, %v5220
  %v5222 = vpop.f32.mrf.mxu0
  %5223 = vmatprep.mubr.bf16.mxu0 %v5001
  %5224 = vmatmul.mubr.bf16.gmra.mxu0 %v3269
  %v5225 = vpop.f32.mrf.mxu0
  %v5226 = vadd.f32 %v5045, %v5225
  %v5227 = vpop.f32.mrf.mxu0
  %v5228 = vpop.f32.mrf.mxu0
  %v5229 = vadd.f32 %v5045, %v5228
  %v5230 = vpop.f32.mrf.mxu0
  %5231 = vmatprep.mubr.bf16.mxu0 %v5002
  %5232 = vmatmul.mubr.bf16.gmra.mxu0 %v3270
  %v5233 = vpop.f32.mrf.mxu0
  %v5234 = vadd.f32 %v5045, %v5233
  %v5235 = vpop.f32.mrf.mxu0
  %v5236 = vpop.f32.mrf.mxu0
  %v5237 = vadd.f32 %v5045, %v5236
  %v5238 = vpop.f32.mrf.mxu0
  %5239 = vmatprep.mubr.bf16.mxu0 %v5003
  %5240 = vmatmul.mubr.bf16.gmra.mxu0 %v3271
  %v5241 = vpop.f32.mrf.mxu0
  %v5242 = vadd.f32 %v5045, %v5241
  %v5243 = vpop.f32.mrf.mxu0
  %v5244 = vpop.f32.mrf.mxu0
  %v5245 = vadd.f32 %v5045, %v5244
  %v5246 = vpop.f32.mrf.mxu0
  %5247 = vmatprep.mubr.bf16.mxu0 %v5004
  %5248 = vmatmul.mubr.bf16.gmra.mxu0 %v3272
  %v5249 = vpop.f32.mrf.mxu0
  %v5250 = vadd.f32 %v5045, %v5249
  %v5251 = vpop.f32.mrf.mxu0
  %v5252 = vpop.f32.mrf.mxu0
  %v5253 = vadd.f32 %v5045, %v5252
  %v5254 = vpop.f32.mrf.mxu0
  %5255 = vmatprep.mubr.bf16.mxu0 %v5005
  %5256 = vmatmul.mubr.bf16.gmra.mxu0 %v3273
  %v5257 = vpop.f32.mrf.mxu0
  %v5258 = vadd.f32 %v5045, %v5257
  %v5259 = vpop.f32.mrf.mxu0
  %v5260 = vpop.f32.mrf.mxu0
  %v5261 = vadd.f32 %v5045, %v5260
  %v5262 = vpop.f32.mrf.mxu0
  %5263 = vmatprep.mubr.bf16.mxu0 %v5006
  %5264 = vmatmul.mubr.bf16.gmra.mxu0 %v3274
  %v5265 = vpop.f32.mrf.mxu0
  %v5266 = vadd.f32 %v5045, %v5265
  %v5267 = vpop.f32.mrf.mxu0
  %v5268 = vpop.f32.mrf.mxu0
  %v5269 = vadd.f32 %v5045, %v5268
  %v5270 = vpop.f32.mrf.mxu0
  %5271 = vmatprep.mubr.bf16.mxu0 %v5007
  %5272 = vmatmul.mubr.bf16.gmra.mxu0 %v3275
  %v5273 = vpop.f32.mrf.mxu0
  %v5274 = vadd.f32 %v5045, %v5273
  %v5275 = vpop.f32.mrf.mxu0
  %v5276 = vpop.f32.mrf.mxu0
  %v5277 = vpop.f32.mrf.mxu0
  %5278 = vdwg.mxu0
  %5279 = vst [vmem:[%s21] sm:$0xff] %v5178
  %5280 = vst [vmem:[%s21 + $0x8] sm:$0xff] %v5181
  %5281 = vst [vmem:[%s21 + $0x10] sm:$0xff] %v5186
  %5282 = vst [vmem:[%s21 + $0x18] sm:$0xff] %v5189
  %5283 = vst [vmem:[%s21 + $0x20] sm:$0xff] %v5194
  %5284 = vst [vmem:[%s21 + $0x28] sm:$0xff] %v5197
  %5285 = vst [vmem:[%s21 + $0x30] sm:$0xff] %v5202
  %5286 = vst [vmem:[%s21 + $0x38] sm:$0xff] %v5205
  %5287 = vst [vmem:[%s21 + $0x40] sm:$0xff] %v5210
  %5288 = vst [vmem:[%s21 + $0x48] sm:$0xff] %v5213
  %5289 = vst [vmem:[%s21 + $0x50] sm:$0xff] %v5218
  %5290 = vst [vmem:[%s21 + $0x58] sm:$0xff] %v5221
  %5291 = vst [vmem:[%s21 + $0x60] sm:$0xff] %v5226
  %5292 = vst [vmem:[%s21 + $0x68] sm:$0xff] %v5229
  %5293 = vst [vmem:[%s21 + $0x70] sm:$0xff] %v5234
  %5294 = vst [vmem:[%s21 + $0x78] sm:$0xff] %v5237
  %5295 = vst [vmem:[%s21 + $0x80] sm:$0xff] %v5242
  %5296 = vst [vmem:[%s21 + $0x88] sm:$0xff] %v5245
  %5297 = vst [vmem:[%s21 + $0x90] sm:$0xff] %v5250
  %5298 = vst [vmem:[%s21 + $0x98] sm:$0xff] %v5253
  %5299 = vst [vmem:[%s21 + $0xa0] sm:$0xff] %v5258
  %5300 = vst [vmem:[%s21 + $0xa8] sm:$0xff] %v5261
  %5301 = vst [vmem:[%s21 + $0xb0] sm:$0xff] %v5266
  %5302 = vst [vmem:[%s21 + $0xb8] sm:$0xff] %v5269
  %5303 = vst [vmem:[%s21 + $0xc0] sm:$0xff] %v5274
  // Predicated region
  $region86: #{ensemble_critic_forward.1} parent=0 // pred_check
    _
  $region87: #{ensemble_critic_forward.1} parent=0 // pred_check_branch
    %5305 = sbr.rel (0) target = $region89
  $region88: #{ensemble_critic_forward.1} parent=0 // pred_region
    _
  $region89: #{ensemble_critic_forward.1} parent=0 // pred_fallthru
    _
  // Predicated region
  $region90: #{ensemble_critic_forward.1} parent=0 // pred_check
    _
  $region91: #{ensemble_critic_forward.1} parent=0 // pred_check_branch
    %5307 = sbr.rel (0) target = $region93
  $region92: #{ensemble_critic_forward.1} parent=0 // pred_region
    _
  $region93: #{ensemble_critic_forward.1} parent=0 // pred_fallthru
    _

</llo_original>
